<compile_context>
chip_gen: v7x
topology: tpu7x:2x2x1
jax: 0.10.0
libtpu: 0.0.40
codegen_flags: <defaults>
</compile_context>

<pallas_src>
import jax
import jax.numpy as jnp
from jax.experimental import pallas as pl
from jax.experimental.pallas import tpu as pltpu


def _device_kind():
    try:
        return jax.devices()[0].device_kind.lower()
    except Exception:
        return ""


def _make_pointnet_kernel(c_in, compute_dtype, bf16_epilogue):
    """Kernel for one (1, C_in, TN) input block -> (1, emb, TN) output block."""

    def kernel(x_ref, w1, b1, w2, b2, w3, b3, w4, b4, w5, b5, o_ref):
        # x_ref: (1, C_in, TN) f32; w1: (64, C_in) f32; b1: (64, 1) f32;
        # w2..w5: (C_out, C_in) bf16; b2..b5: (C_out, 1) f32 or bf16;
        # o_ref: (1, EMB, TN).
        x = x_ref[0]                                     # (C_in, TN) f32

        # ---- Layer 1 on the VPU: K = C_in (=3) is all fill/drain on the MXU. ----
        w1f = w1[...]                                    # (64, C_in) f32
        h = w1f[:, 0:1] * x[0:1, :]
        for c in range(1, c_in):
            h = h + w1f[:, c:c + 1] * x[c:c + 1, :]
        h = jnp.maximum(h + b1[...], 0.0)                # (64, TN) f32
        if bf16_epilogue:
            h = h.astype(compute_dtype)

        # ---- Layers 2..5 on the MXU: bf16 inputs, f32 accumulation. ----
        for w, b in ((w2, b2), (w3, b3), (w4, b4), (w5, b5)):
            y = jnp.dot(w[...], h.astype(compute_dtype),
                        preferred_element_type=jnp.float32)
            if bf16_epilogue:
                # bias-add + ReLU in bf16 (v6e/v7x have a bf16 VALU)
                h = jnp.maximum(y.astype(compute_dtype) + b[...], 0)
            else:
                # f32 epilogue (safe/fast path on v5e: no bf16 VALU)
                h = jnp.maximum(y + b[...], 0.0)

        o_ref[0] = h.astype(o_ref.dtype)

    return kernel


def pointnet_forward(x_bcn, params, *, tile_n=2048,
                     compute_dtype=jnp.bfloat16,
                     out_dtype=jnp.float32,
                     bf16_epilogue=None,
                     vmem_limit_bytes=None):
    """x_bcn: (B, C_in, N) f32 -> (B, emb_dim, N) in out_dtype.  No transposes."""
    (w1, b1), (w2, b2), (w3, b3), (w4, b4), (w5, b5) = params
    B, C_in, N = x_bcn.shape
    emb_dim = w5.shape[0]

    kind = _device_kind()
    if bf16_epilogue is None:
        # bf16 VALU exists on v6e/v7x; keep f32 epilogue elsewhere (v5e etc.).
        bf16_epilogue = ("v6" in kind) or ("v7" in kind)
    if vmem_limit_bytes is None:
        # v7x has 64 MiB physical VMEM per TC; v5e/v6e have 128 MiB.
        vmem_limit_bytes = (56 if "v7" in kind else 96) * 1024 * 1024

    tile_n = min(tile_n, N)
    # Keep >= 2 grid steps when possible so v7x can shard across its 2 TCs.
    if B * (N // tile_n) < 2 and tile_n % 256 == 0 and N % (tile_n // 2) == 0:
        tile_n //= 2
    assert N % tile_n == 0, "N must be divisible by tile_n"
    assert tile_n % 128 == 0, "tile_n must be a multiple of 128 (lane dim)"

    # Layer 1 stays f32 (VPU path); layers 2..5 weights cast once to bf16.
    w1 = w1.astype(jnp.float32)
    b1 = b1.astype(jnp.float32)
    bias_dtype = compute_dtype if bf16_epilogue else jnp.float32
    ws = [w.astype(compute_dtype) for w in (w2, w3, w4, w5)]
    bs = [b.astype(bias_dtype) for b in (b2, b3, b4, b5)]

    def const_spec(shape):
        # whole-array block, identical for every grid step
        return pl.BlockSpec(shape, lambda b, n: (0,) * len(shape))

    grid = (B, N // tile_n)
    kernel = _make_pointnet_kernel(C_in, compute_dtype, bf16_epilogue)

    out = pl.pallas_call(
        kernel,
        out_shape=jax.ShapeDtypeStruct((B, emb_dim, N), out_dtype),
        grid_spec=pltpu.PrefetchScalarGridSpec(
            num_scalar_prefetch=0,
            grid=grid,
            in_specs=[
                pl.BlockSpec((1, C_in, tile_n), lambda b, n: (b, 0, n)),
                const_spec(w1.shape), const_spec(b1.shape),
                const_spec(ws[0].shape), const_spec(bs[0].shape),
                const_spec(ws[1].shape), const_spec(bs[1].shape),
                const_spec(ws[2].shape), const_spec(bs[2].shape),
                const_spec(ws[3].shape), const_spec(bs[3].shape),
            ],
            out_specs=pl.BlockSpec((1, emb_dim, tile_n), lambda b, n: (b, 0, n)),
        ),
        compiler_params=pltpu.CompilerParams(
            dimension_semantics=("parallel", "parallel"),
            vmem_limit_bytes=vmem_limit_bytes),
    )(x_bcn,
      w1, b1, ws[0], bs[0], ws[1], bs[1], ws[2], bs[2], ws[3], bs[3])

    return out


def init_params(key, channels=3, emb_dim=1024):
    """Deterministic init mirroring PyTorch Conv1d default (uniform +-1/sqrt(fan_in)).
    Weights stored as (C_out, C_in) (= squeezed Conv1d weight), biases as (C_out, 1)."""
    dims = [(channels, 64), (64, 64), (64, 64), (64, 128), (128, emb_dim)]
    params = []
    for (cin, cout) in dims:
        key, kw, kb = jax.random.split(key, 3)
        bound = 1.0 / jnp.sqrt(float(cin))
        w = jax.random.uniform(kw, (cout, cin), jnp.float32, -bound, bound)
        b = jax.random.uniform(kb, (cout, 1), jnp.float32, -bound, bound)
        params.append((w, b))
    return params


def pointnet_ref(x_bcn, params, compute_dtype=jnp.bfloat16, bf16_epilogue=False):
    """Pure-JAX reference mirroring the kernel's precision: layer 1 in f32,
    layers 2..5 with bf16 MXU inputs / f32 accumulation, optional bf16 epilogue."""
    (w1, b1), *rest = params
    h = jnp.einsum('oc,bcn->bon', w1, x_bcn) + b1[None, :, :]
    h = jnp.maximum(h, 0.0)
    if bf16_epilogue:
        h = h.astype(compute_dtype)
    for (w, b) in rest:
        y = jnp.einsum('oc,bcn->bon',
                       w.astype(compute_dtype), h.astype(compute_dtype),
                       preferred_element_type=jnp.float32)
        if bf16_epilogue:
            h = jnp.maximum(y.astype(compute_dtype)
                            + b.astype(compute_dtype)[None, :, :], 0)
        else:
            h = jnp.maximum(y + b[None, :, :], 0.0)
    return h.astype(jnp.float32)


# TODO(synk): use_bn=True (BatchNorm1d) path of the PyTorch module not implemented;
# default use_bn=False forward is fully covered.

if __name__ == "__main__":
    key = jax.random.PRNGKey(0)
    k_in, k_par = jax.random.split(key)

    B, C, N = 2, 3, 512         # small: batch=2, 3 channels, 512 points
    EMB = 256                   # small emb_dim consistent with module structure

    x = jax.random.normal(k_in, (B, C, N), jnp.float32)     # 'bcn' layout
    params = init_params(k_par, channels=C, emb_dim=EMB)

    out = pointnet_forward(x, params)        # tile_n auto-clamps to N=512
    out = jax.block_until_ready(out)

    kind = _device_kind()
    bf16_epi = ("v6" in kind) or ("v7" in kind)
    ref = pointnet_ref(x, params, bf16_epilogue=bf16_epi)

    assert out.shape == (B, EMB, N)
    max_err = float(jnp.max(jnp.abs(out - ref)))
    assert jnp.allclose(out, ref, atol=3e-2, rtol=3e-2), f"max abs err {max_err}"

    print("KERNEL_OK")
</pallas_src>

<mosaic_0001>
module attributes {stable_mosaic.version = 11 : i64} {
  func.func @kernel(%arg0: i32, %arg1: i32, %arg2: memref<1x3x512xf32, #tpu.memory_space<vmem>>, %arg3: memref<64x3xf32, #tpu.memory_space<vmem>>, %arg4: memref<64x1xf32, #tpu.memory_space<vmem>>, %arg5: memref<64x64xbf16, #tpu.memory_space<vmem>>, %arg6: memref<64x1xf32, #tpu.memory_space<vmem>>, %arg7: memref<64x64xbf16, #tpu.memory_space<vmem>>, %arg8: memref<64x1xf32, #tpu.memory_space<vmem>>, %arg9: memref<128x64xbf16, #tpu.memory_space<vmem>>, %arg10: memref<128x1xf32, #tpu.memory_space<vmem>>, %arg11: memref<256x128xbf16, #tpu.memory_space<vmem>>, %arg12: memref<256x1xf32, #tpu.memory_space<vmem>>, %arg13: memref<1x256x512xf32, #tpu.memory_space<vmem>>) attributes {dimension_semantics = [#tpu.dimension_semantics<parallel>, #tpu.dimension_semantics<parallel>], iteration_bounds = array<i64: 2, 1>, scalar_prefetch = 0 : i64, scratch_operands = 0 : i64, tpu.core_type = #tpu.core_type<tc>, window_params = [{transform_indices = @transform_0, window_bounds = array<i64: 1, 3, 512>}, {pipeline_mode = #tpu.pipeline_mode<synchronous>, transform_indices = @transform_1, window_bounds = array<i64: 64, 3>}, {pipeline_mode = #tpu.pipeline_mode<synchronous>, transform_indices = @transform_2, window_bounds = array<i64: 64, 1>}, {pipeline_mode = #tpu.pipeline_mode<synchronous>, transform_indices = @transform_3, window_bounds = array<i64: 64, 64>}, {pipeline_mode = #tpu.pipeline_mode<synchronous>, transform_indices = @transform_4, window_bounds = array<i64: 64, 1>}, {pipeline_mode = #tpu.pipeline_mode<synchronous>, transform_indices = @transform_5, window_bounds = array<i64: 64, 64>}, {pipeline_mode = #tpu.pipeline_mode<synchronous>, transform_indices = @transform_6, window_bounds = array<i64: 64, 1>}, {pipeline_mode = #tpu.pipeline_mode<synchronous>, transform_indices = @transform_7, window_bounds = array<i64: 128, 64>}, {pipeline_mode = #tpu.pipeline_mode<synchronous>, transform_indices = @transform_8, window_bounds = array<i64: 128, 1>}, {pipeline_mode = #tpu.pipeline_mode<synchronous>, transform_indices = @transform_9, window_bounds = array<i64: 256, 128>}, {pipeline_mode = #tpu.pipeline_mode<synchronous>, transform_indices = @transform_10, window_bounds = array<i64: 256, 1>}, {transform_indices = @transform_11, window_bounds = array<i64: 1, 256, 512>}]} {
    %c0 = arith.constant 0 : index
    %c0_0 = arith.constant 0 : index
    %c0_1 = arith.constant 0 : index
    %0 = vector.load %arg2[%c0, %c0_0, %c0_1] : memref<1x3x512xf32, #tpu.memory_space<vmem>>, vector<1x3x512xf32>
    %1 = vector.shape_cast %0 : vector<1x3x512xf32> to vector<3x512xf32>
    %c0_2 = arith.constant 0 : index
    %c0_3 = arith.constant 0 : index
    %2 = vector.load %arg3[%c0_2, %c0_3] : memref<64x3xf32, #tpu.memory_space<vmem>>, vector<64x3xf32>
    %3 = vector.extract_strided_slice %2 {offsets = [0, 0], sizes = [64, 1], strides = [1, 1]} : vector<64x3xf32> to vector<64x1xf32>
    %4 = vector.extract_strided_slice %1 {offsets = [0, 0], sizes = [1, 512], strides = [1, 1]} : vector<3x512xf32> to vector<1x512xf32>
    %5 = vector.broadcast %3 : vector<64x1xf32> to vector<64x512xf32>
    %6 = vector.broadcast %4 : vector<1x512xf32> to vector<64x512xf32>
    %7 = arith.mulf %5, %6 : vector<64x512xf32>
    %8 = vector.extract_strided_slice %2 {offsets = [0, 1], sizes = [64, 1], strides = [1, 1]} : vector<64x3xf32> to vector<64x1xf32>
    %9 = vector.extract_strided_slice %1 {offsets = [1, 0], sizes = [1, 512], strides = [1, 1]} : vector<3x512xf32> to vector<1x512xf32>
    %10 = vector.broadcast %8 : vector<64x1xf32> to vector<64x512xf32>
    %11 = vector.broadcast %9 : vector<1x512xf32> to vector<64x512xf32>
    %12 = arith.mulf %10, %11 : vector<64x512xf32>
    %13 = arith.addf %7, %12 : vector<64x512xf32>
    %14 = vector.extract_strided_slice %2 {offsets = [0, 2], sizes = [64, 1], strides = [1, 1]} : vector<64x3xf32> to vector<64x1xf32>
    %15 = vector.extract_strided_slice %1 {offsets = [2, 0], sizes = [1, 512], strides = [1, 1]} : vector<3x512xf32> to vector<1x512xf32>
    %16 = vector.broadcast %14 : vector<64x1xf32> to vector<64x512xf32>
    %17 = vector.broadcast %15 : vector<1x512xf32> to vector<64x512xf32>
    %18 = arith.mulf %16, %17 : vector<64x512xf32>
    %19 = arith.addf %13, %18 : vector<64x512xf32>
    %c0_4 = arith.constant 0 : index
    %c0_5 = arith.constant 0 : index
    %20 = vector.load %arg4[%c0_4, %c0_5] : memref<64x1xf32, #tpu.memory_space<vmem>>, vector<64x1xf32>
    %21 = vector.broadcast %20 : vector<64x1xf32> to vector<64x512xf32>
    %22 = arith.addf %19, %21 : vector<64x512xf32>
    %cst = arith.constant 0.000000e+00 : f32
    %23 = vector.broadcast %cst : f32 to vector<64x512xf32>
    %24 = arith.maximumf %22, %23 : vector<64x512xf32>
    %c0_6 = arith.constant 0 : index
    %c0_7 = arith.constant 0 : index
    %25 = vector.load %arg5[%c0_6, %c0_7] : memref<64x64xbf16, #tpu.memory_space<vmem>>, vector<64x64xbf16>
    %26 = arith.truncf %24 : vector<64x512xf32> to vector<64x512xbf16>
    %cst_8 = arith.constant dense<0.000000e+00> : vector<64x512xf32>
    %27 = tpu.matmul %25, %26, %cst_8 {dimension_numbers = #tpu.dot_dimension_numbers<[1], [0], [0], [1], [0, 0, 1, 1], [], []>} : vector<64x64xbf16>, vector<64x512xbf16>, vector<64x512xf32> -> vector<64x512xf32>
    %c0_9 = arith.constant 0 : index
    %c0_10 = arith.constant 0 : index
    %28 = vector.load %arg6[%c0_9, %c0_10] : memref<64x1xf32, #tpu.memory_space<vmem>>, vector<64x1xf32>
    %29 = vector.broadcast %28 : vector<64x1xf32> to vector<64x512xf32>
    %30 = arith.addf %27, %29 : vector<64x512xf32>
    %cst_11 = arith.constant 0.000000e+00 : f32
    %31 = vector.broadcast %cst_11 : f32 to vector<64x512xf32>
    %32 = arith.maximumf %30, %31 : vector<64x512xf32>
    %c0_12 = arith.constant 0 : index
    %c0_13 = arith.constant 0 : index
    %33 = vector.load %arg7[%c0_12, %c0_13] : memref<64x64xbf16, #tpu.memory_space<vmem>>, vector<64x64xbf16>
    %34 = arith.truncf %32 : vector<64x512xf32> to vector<64x512xbf16>
    %cst_14 = arith.constant dense<0.000000e+00> : vector<64x512xf32>
    %35 = tpu.matmul %33, %34, %cst_14 {dimension_numbers = #tpu.dot_dimension_numbers<[1], [0], [0], [1], [0, 0, 1, 1], [], []>} : vector<64x64xbf16>, vector<64x512xbf16>, vector<64x512xf32> -> vector<64x512xf32>
    %c0_15 = arith.constant 0 : index
    %c0_16 = arith.constant 0 : index
    %36 = vector.load %arg8[%c0_15, %c0_16] : memref<64x1xf32, #tpu.memory_space<vmem>>, vector<64x1xf32>
    %37 = vector.broadcast %36 : vector<64x1xf32> to vector<64x512xf32>
    %38 = arith.addf %35, %37 : vector<64x512xf32>
    %cst_17 = arith.constant 0.000000e+00 : f32
    %39 = vector.broadcast %cst_17 : f32 to vector<64x512xf32>
    %40 = arith.maximumf %38, %39 : vector<64x512xf32>
    %c0_18 = arith.constant 0 : index
    %c0_19 = arith.constant 0 : index
    %41 = vector.load %arg9[%c0_18, %c0_19] : memref<128x64xbf16, #tpu.memory_space<vmem>>, vector<128x64xbf16>
    %42 = arith.truncf %40 : vector<64x512xf32> to vector<64x512xbf16>
    %cst_20 = arith.constant dense<0.000000e+00> : vector<128x512xf32>
    %43 = tpu.matmul %41, %42, %cst_20 {dimension_numbers = #tpu.dot_dimension_numbers<[1], [0], [0], [1], [0, 0, 1, 1], [], []>} : vector<128x64xbf16>, vector<64x512xbf16>, vector<128x512xf32> -> vector<128x512xf32>
    %c0_21 = arith.constant 0 : index
    %c0_22 = arith.constant 0 : index
    %44 = vector.load %arg10[%c0_21, %c0_22] : memref<128x1xf32, #tpu.memory_space<vmem>>, vector<128x1xf32>
    %45 = vector.broadcast %44 : vector<128x1xf32> to vector<128x512xf32>
    %46 = arith.addf %43, %45 : vector<128x512xf32>
    %cst_23 = arith.constant 0.000000e+00 : f32
    %47 = vector.broadcast %cst_23 : f32 to vector<128x512xf32>
    %48 = arith.maximumf %46, %47 : vector<128x512xf32>
    %c0_24 = arith.constant 0 : index
    %c0_25 = arith.constant 0 : index
    %49 = vector.load %arg11[%c0_24, %c0_25] : memref<256x128xbf16, #tpu.memory_space<vmem>>, vector<256x128xbf16>
    %50 = arith.truncf %48 : vector<128x512xf32> to vector<128x512xbf16>
    %cst_26 = arith.constant dense<0.000000e+00> : vector<256x512xf32>
    %51 = tpu.matmul %49, %50, %cst_26 {dimension_numbers = #tpu.dot_dimension_numbers<[1], [0], [0], [1], [0, 0, 1, 1], [], []>} : vector<256x128xbf16>, vector<128x512xbf16>, vector<256x512xf32> -> vector<256x512xf32>
    %c0_27 = arith.constant 0 : index
    %c0_28 = arith.constant 0 : index
    %52 = vector.load %arg12[%c0_27, %c0_28] : memref<256x1xf32, #tpu.memory_space<vmem>>, vector<256x1xf32>
    %53 = vector.broadcast %52 : vector<256x1xf32> to vector<256x512xf32>
    %54 = arith.addf %51, %53 : vector<256x512xf32>
    %cst_29 = arith.constant 0.000000e+00 : f32
    %55 = vector.broadcast %cst_29 : f32 to vector<256x512xf32>
    %56 = arith.maximumf %54, %55 : vector<256x512xf32>
    %c0_30 = arith.constant 0 : index
    %c0_31 = arith.constant 0 : index
    %c0_32 = arith.constant 0 : index
    %57 = vector.load %arg13[%c0_30, %c0_31, %c0_32] : memref<1x256x512xf32, #tpu.memory_space<vmem>>, vector<1x256x512xf32>
    %58 = vector.shape_cast %57 : vector<1x256x512xf32> to vector<256x512xf32>
    %59 = vector.shape_cast %56 : vector<256x512xf32> to vector<1x256x512xf32>
    tpu.vector_store %arg13[%c0_30, %c0_31, %c0_32], %59 {strides = array<i32>} : memref<1x256x512xf32, #tpu.memory_space<vmem>>, vector<1x256x512xf32>,
    return
  }
  func.func @transform_0(%arg0: i32, %arg1: i32) -> (i32, i32, i32) {
    %c0_i32 = arith.constant 0 : i32
    %c0_i32_0 = arith.constant 0 : i32
    return %arg0, %c0_i32, %arg1 : i32, i32, i32
  }
  func.func @transform_1(%arg0: i32, %arg1: i32) -> (i32, i32) {
    %c0_i32 = arith.constant 0 : i32
    %c0_i32_0 = arith.constant 0 : i32
    %c0_i32_1 = arith.constant 0 : i32
    return %c0_i32, %c0_i32_0 : i32, i32
  }
  func.func @transform_2(%arg0: i32, %arg1: i32) -> (i32, i32) {
    %c0_i32 = arith.constant 0 : i32
    %c0_i32_0 = arith.constant 0 : i32
    %c0_i32_1 = arith.constant 0 : i32
    return %c0_i32, %c0_i32_0 : i32, i32
  }
  func.func @transform_3(%arg0: i32, %arg1: i32) -> (i32, i32) {
    %c0_i32 = arith.constant 0 : i32
    %c0_i32_0 = arith.constant 0 : i32
    %c0_i32_1 = arith.constant 0 : i32
    return %c0_i32, %c0_i32_0 : i32, i32
  }
  func.func @transform_4(%arg0: i32, %arg1: i32) -> (i32, i32) {
    %c0_i32 = arith.constant 0 : i32
    %c0_i32_0 = arith.constant 0 : i32
    %c0_i32_1 = arith.constant 0 : i32
    return %c0_i32, %c0_i32_0 : i32, i32
  }
  func.func @transform_5(%arg0: i32, %arg1: i32) -> (i32, i32) {
    %c0_i32 = arith.constant 0 : i32
    %c0_i32_0 = arith.constant 0 : i32
    %c0_i32_1 = arith.constant 0 : i32
    return %c0_i32, %c0_i32_0 : i32, i32
  }
  func.func @transform_6(%arg0: i32, %arg1: i32) -> (i32, i32) {
    %c0_i32 = arith.constant 0 : i32
    %c0_i32_0 = arith.constant 0 : i32
    %c0_i32_1 = arith.constant 0 : i32
    return %c0_i32, %c0_i32_0 : i32, i32
  }
  func.func @transform_7(%arg0: i32, %arg1: i32) -> (i32, i32) {
    %c0_i32 = arith.constant 0 : i32
    %c0_i32_0 = arith.constant 0 : i32
    %c0_i32_1 = arith.constant 0 : i32
    return %c0_i32, %c0_i32_0 : i32, i32
  }
  func.func @transform_8(%arg0: i32, %arg1: i32) -> (i32, i32) {
    %c0_i32 = arith.constant 0 : i32
    %c0_i32_0 = arith.constant 0 : i32
    %c0_i32_1 = arith.constant 0 : i32
    return %c0_i32, %c0_i32_0 : i32, i32
  }
  func.func @transform_9(%arg0: i32, %arg1: i32) -> (i32, i32) {
    %c0_i32 = arith.constant 0 : i32
    %c0_i32_0 = arith.constant 0 : i32
    %c0_i32_1 = arith.constant 0 : i32
    return %c0_i32, %c0_i32_0 : i32, i32
  }
  func.func @transform_10(%arg0: i32, %arg1: i32) -> (i32, i32) {
    %c0_i32 = arith.constant 0 : i32
    %c0_i32_0 = arith.constant 0 : i32
    %c0_i32_1 = arith.constant 0 : i32
    return %c0_i32, %c0_i32_0 : i32, i32
  }
  func.func @transform_11(%arg0: i32, %arg1: i32) -> (i32, i32, i32) {
    %c0_i32 = arith.constant 0 : i32
    %c0_i32_0 = arith.constant 0 : i32
    return %arg0, %c0_i32, %arg1 : i32, i32, i32
  }
}

</mosaic_0001>

<llo_original>
// kernel: tpu_custom_call.1
$region0: #{tpu_custom_call.1}
  #allocation0 [shape = 'u32[]', space=smem, size = 0x4, offset = 0x4, fixed_abs, tag = 'smem constant byte address 0x4 - core index']
  #allocation1 [shape = 'u32[144,128]{1,0:T(1,128)}', space=vmem, size = 0x12000, scoped, tag = 'internal scratch']
  %s0 = inlined_call_operand.hbm [shape: f32[2,3,512], index: 0, kind: input, shape index: {}]
  %s1 = inlined_call_operand.hbm [shape: f32[64,3], index: 1, kind: input, shape index: {}]
  %s2 = inlined_call_operand.hbm [shape: f32[64,1], index: 2, kind: input, shape index: {}]
  %s3 = inlined_call_operand.hbm [shape: bf16[64,64], index: 3, kind: input, shape index: {}]
  %s4 = inlined_call_operand.hbm [shape: f32[64,1], index: 4, kind: input, shape index: {}]
  %s5 = inlined_call_operand.hbm [shape: bf16[64,64], index: 5, kind: input, shape index: {}]
  %s6 = inlined_call_operand.hbm [shape: f32[64,1], index: 6, kind: input, shape index: {}]
  %s7 = inlined_call_operand.hbm [shape: bf16[128,64], index: 7, kind: input, shape index: {}]
  %s8 = inlined_call_operand.hbm [shape: f32[128,1], index: 8, kind: input, shape index: {}]
  %s9 = inlined_call_operand.hbm [shape: bf16[256,128], index: 9, kind: input, shape index: {}]
  %s10 = inlined_call_operand.hbm [shape: f32[256,1], index: 10, kind: input, shape index: {}]
  %s11 = inlined_call_operand.hbm [shape: f32[2,256,512], index: 11, kind: output, shape index: {}]
  %s12 = sld [smem:[#allocation0]]
  $region121: #{tpu_custom_call.1} parent=0
    _
  %s14 = ssub.s32 1, %s12
  %s15 = scalar_select 0, %s14, %s12
  $region1: #{tpu_custom_call.1} parent=0
    #allocation2 [shape = 'u8[16384]{0}', space=vmem, size = 0x4000, scoped, tag = 'input window, operand 0']
    #allocation3 [shape = 's32[2]{0}', space=sflag, size = 0x8, scoped, tag = 'scoped memory for tpu_custom_call.1']
    #allocation4 [shape = 's32[2]{0}', space=sflag, size = 0x8, scoped, tag = 'scoped memory for tpu_custom_call.1']
    #allocation5 [shape = 'u8[32768]{0}', space=vmem, size = 0x8000, scoped, tag = 'input window, operand 1, single buffered']
    #allocation6 [shape = 's32[1]{0}', space=sflag, size = 0x4, scoped, tag = 'scoped memory for tpu_custom_call.1']
    #allocation7 [shape = 'u8[32768]{0}', space=vmem, size = 0x8000, scoped, tag = 'input window, operand 2, single buffered']
    #allocation8 [shape = 'u8[16384]{0}', space=vmem, size = 0x4000, scoped, tag = 'input window, operand 3, single buffered']
    #allocation9 [shape = 's32[1]{0}', space=sflag, size = 0x4, scoped, tag = 'scoped memory for tpu_custom_call.1']
    #allocation10 [shape = 'u8[32768]{0}', space=vmem, size = 0x8000, scoped, tag = 'input window, operand 4, single buffered']
    #allocation11 [shape = 'u8[16384]{0}', space=vmem, size = 0x4000, scoped, tag = 'input window, operand 5, single buffered']
    #allocation12 [shape = 's32[1]{0}', space=sflag, size = 0x4, scoped, tag = 'scoped memory for tpu_custom_call.1']
    #allocation13 [shape = 'u8[32768]{0}', space=vmem, size = 0x8000, scoped, tag = 'input window, operand 6, single buffered']
    #allocation14 [shape = 'u8[32768]{0}', space=vmem, size = 0x8000, scoped, tag = 'input window, operand 7, single buffered']
    #allocation15 [shape = 's32[1]{0}', space=sflag, size = 0x4, scoped, tag = 'scoped memory for tpu_custom_call.1']
    #allocation16 [shape = 'u8[65536]{0}', space=vmem, size = 0x10000, scoped, tag = 'input window, operand 8, single buffered']
    #allocation17 [shape = 'u8[65536]{0}', space=vmem, size = 0x10000, scoped, tag = 'input window, operand 9, single buffered']
    #allocation18 [shape = 's32[1]{0}', space=sflag, size = 0x4, scoped, tag = 'scoped memory for tpu_custom_call.1']
    #allocation19 [shape = 'u8[131072]{0}', space=vmem, size = 0x20000, scoped, tag = 'input window, operand 10, single buffered']
    #allocation20 [shape = 'u8[1048576]{0}', space=vmem, size = 0x100000, scoped, tag = 'output window, operand 0']
    %16 = vsyncpa [#allocation3], 0
    %s17 = scalar_lea.sflag [#allocation3], 1
    %18 = vsyncpa %s17, 0
    %19 = vsyncpa [#allocation6], 0
    %20 = vsyncpa [#allocation9], 0
    %21 = vsyncpa [#allocation12], 0
    %22 = vsyncpa [#allocation15], 0
    %23 = vsyncpa [#allocation18], 0
    %24 = vsyncpa [#allocation4], 0
    %s25 = scalar_lea.sflag [#allocation4], 1
    %26 = vsyncpa %s25, 0
    loop: start=0, step=1, limit=4
    $region2: #{tpu_custom_call.1} parent=1 // loop_pre_header
      _
    $region3: #{tpu_custom_call.1} parent=1 // loop_header
      %s28 = sphi 0, %s32
      %p29 = scmp.ge.s32.totalorder %s28, 4
      %s35 = sphi 0, %s47
      %s36 = sphi 0, %s43
      %s37 = sphi 0, %s35
      %s38 = sphi 0, %s36
      %s39 = sphi 0, %s37
      %s40 = sphi 0, %s38
      %s52 = sphi 0, %s54
      %s55 = sphi 0, %s52
      %s56 = sphi 0, %s55
      %s72 = sphi 0, %s56
      %s76 = sphi 0, %s76
      %s78 = sphi 0, %s76
      %s79 = sphi 0, %s78
      %s93 = sphi 0, %s79
      %s97 = sphi 0, %s97
      %s99 = sphi 0, %s97
      %s100 = sphi 0, %s99
      %s114 = sphi 0, %s100
      %s118 = sphi 0, %s118
      %s120 = sphi 0, %s118
      %s121 = sphi 0, %s120
      %s135 = sphi 0, %s121
      %s139 = sphi 0, %s139
      %s141 = sphi 0, %s139
      %s142 = sphi 0, %s141
      %s156 = sphi 0, %s142
      %s160 = sphi 0, %s160
      %s162 = sphi 0, %s160
      %s163 = sphi 0, %s162
      %s177 = sphi 0, %s163
      %s181 = sphi 0, %s181
      %s183 = sphi 0, %s181
      %s184 = sphi 0, %s183
      %s198 = sphi 0, %s184
      %s202 = sphi 0, %s202
      %s204 = sphi 0, %s202
      %s205 = sphi 0, %s204
      %s219 = sphi 0, %s205
      %s223 = sphi 0, %s223
      %s225 = sphi 0, %s223
      %s226 = sphi 0, %s225
      %s240 = sphi 0, %s226
      %s244 = sphi 0, %s244
      %s246 = sphi 0, %s244
      %s247 = sphi 0, %s246
      %s261 = sphi 0, %s247
      %s265 = sphi 0, %s265
      %s267 = sphi 0, %s265
      %s268 = sphi 0, %s267
      %s282 = sphi 0, %s268
      %s290 = sphi 0, %s292
      %s293 = sphi 0, %s290
      %s294 = sphi 0, %s293
      %s310 = sphi 0, %s294
    $region4: #{tpu_custom_call.1} parent=1 // loop_header_branch
      %31 = sbr.rel (%p29) target = $region8
    $region5: #{tpu_custom_call.1} parent=1 // loop_body
      %s33 = ssub.s32 %s28, 1
      %s34 = ssub.s32 %s28, 2
      %s41 = sadd.s32 1, %s36
      %p42 = scmp.ge.s32.totalorder %s41, 1
      %s43 = scalar_select %p42, 0, %s41
      %s44 = sadd.s32 1, %s35
      %s45 = scalar_select %p42, %s44, %s35
      %p46 = scmp.ge.s32.totalorder %s45, 2
      %s47 = scalar_select %p46, 0, %s45
      %s48 = ssub.s32 %s35, %s47
      %s49 = ssub.s32 %s36, %s43
      %s50 = sor.u32 %s48, %s49
      %p51 = scmp.eq.s32.totalorder %s50, 0
      %s53 = sadd.s32 %s52, 1
      %s54 = scalar_select %p51, %s52, %s53
      %p57 = pneg %p51
      %p58 = scmp.eq.s32.totalorder %s28, 1
      %p59 = por %p57, %p58
      %p60 = scmp.ne.s32.totalorder %s52, %s55
      %p61 = scmp.eq.s32.totalorder %s28, 0
      %p62 = por %p60, %p61
      %p63 = scmp.ne.s32.totalorder %s52, %s55
      %p64 = scmp.eq.s32.totalorder %s33, 1
      %p65 = por %p63, %p64
      %p66 = scmp.ne.s32.totalorder %s55, %s56
      %p67 = scmp.eq.s32.totalorder %s33, 0
      %p68 = por %p66, %p67
      %p69 = scmp.ne.s32.totalorder %s55, %s56
      %p70 = scmp.eq.s32.totalorder %s34, 1
      %p71 = por %p69, %p70
      %p73 = scmp.ne.s32.totalorder %s56, %s72
      %p74 = scmp.eq.s32.totalorder %s34, 0
      %p75 = por %p73, %p74
      %s77 = sadd.s32 %s76, 1
      %p80 = scmp.eq.s32.totalorder %s28, 1
      %p81 = scmp.ne.s32.totalorder %s76, %s78
      %p82 = scmp.eq.s32.totalorder %s28, 0
      %p83 = por %p81, %p82
      %p84 = scmp.ne.s32.totalorder %s76, %s78
      %p85 = scmp.eq.s32.totalorder %s33, 1
      %p86 = por %p84, %p85
      %p87 = scmp.ne.s32.totalorder %s78, %s79
      %p88 = scmp.eq.s32.totalorder %s33, 0
      %p89 = por %p87, %p88
      %p90 = scmp.ne.s32.totalorder %s78, %s79
      %p91 = scmp.eq.s32.totalorder %s34, 1
      %p92 = por %p90, %p91
      %p94 = scmp.ne.s32.totalorder %s79, %s93
      %p95 = scmp.eq.s32.totalorder %s34, 0
      %p96 = por %p94, %p95
      %s98 = sadd.s32 %s97, 1
      %p101 = scmp.eq.s32.totalorder %s28, 1
      %p102 = scmp.ne.s32.totalorder %s97, %s99
      %p103 = scmp.eq.s32.totalorder %s28, 0
      %p104 = por %p102, %p103
      %p105 = scmp.ne.s32.totalorder %s97, %s99
      %p106 = scmp.eq.s32.totalorder %s33, 1
      %p107 = por %p105, %p106
      %p108 = scmp.ne.s32.totalorder %s99, %s100
      %p109 = scmp.eq.s32.totalorder %s33, 0
      %p110 = por %p108, %p109
      %p111 = scmp.ne.s32.totalorder %s99, %s100
      %p112 = scmp.eq.s32.totalorder %s34, 1
      %p113 = por %p111, %p112
      %p115 = scmp.ne.s32.totalorder %s100, %s114
      %p116 = scmp.eq.s32.totalorder %s34, 0
      %p117 = por %p115, %p116
      %s119 = sadd.s32 %s118, 1
      %p122 = scmp.eq.s32.totalorder %s28, 1
      %p123 = scmp.ne.s32.totalorder %s118, %s120
      %p124 = scmp.eq.s32.totalorder %s28, 0
      %p125 = por %p123, %p124
      %p126 = scmp.ne.s32.totalorder %s118, %s120
      %p127 = scmp.eq.s32.totalorder %s33, 1
      %p128 = por %p126, %p127
      %p129 = scmp.ne.s32.totalorder %s120, %s121
      %p130 = scmp.eq.s32.totalorder %s33, 0
      %p131 = por %p129, %p130
      %p132 = scmp.ne.s32.totalorder %s120, %s121
      %p133 = scmp.eq.s32.totalorder %s34, 1
      %p134 = por %p132, %p133
      %p136 = scmp.ne.s32.totalorder %s121, %s135
      %p137 = scmp.eq.s32.totalorder %s34, 0
      %p138 = por %p136, %p137
      %s140 = sadd.s32 %s139, 1
      %p143 = scmp.eq.s32.totalorder %s28, 1
      %p144 = scmp.ne.s32.totalorder %s139, %s141
      %p145 = scmp.eq.s32.totalorder %s28, 0
      %p146 = por %p144, %p145
      %p147 = scmp.ne.s32.totalorder %s139, %s141
      %p148 = scmp.eq.s32.totalorder %s33, 1
      %p149 = por %p147, %p148
      %p150 = scmp.ne.s32.totalorder %s141, %s142
      %p151 = scmp.eq.s32.totalorder %s33, 0
      %p152 = por %p150, %p151
      %p153 = scmp.ne.s32.totalorder %s141, %s142
      %p154 = scmp.eq.s32.totalorder %s34, 1
      %p155 = por %p153, %p154
      %p157 = scmp.ne.s32.totalorder %s142, %s156
      %p158 = scmp.eq.s32.totalorder %s34, 0
      %p159 = por %p157, %p158
      %s161 = sadd.s32 %s160, 1
      %p164 = scmp.eq.s32.totalorder %s28, 1
      %p165 = scmp.ne.s32.totalorder %s160, %s162
      %p166 = scmp.eq.s32.totalorder %s28, 0
      %p167 = por %p165, %p166
      %p168 = scmp.ne.s32.totalorder %s160, %s162
      %p169 = scmp.eq.s32.totalorder %s33, 1
      %p170 = por %p168, %p169
      %p171 = scmp.ne.s32.totalorder %s162, %s163
      %p172 = scmp.eq.s32.totalorder %s33, 0
      %p173 = por %p171, %p172
      %p174 = scmp.ne.s32.totalorder %s162, %s163
      %p175 = scmp.eq.s32.totalorder %s34, 1
      %p176 = por %p174, %p175
      %p178 = scmp.ne.s32.totalorder %s163, %s177
      %p179 = scmp.eq.s32.totalorder %s34, 0
      %p180 = por %p178, %p179
      %s182 = sadd.s32 %s181, 1
      %p185 = scmp.eq.s32.totalorder %s28, 1
      %p186 = scmp.ne.s32.totalorder %s181, %s183
      %p187 = scmp.eq.s32.totalorder %s28, 0
      %p188 = por %p186, %p187
      %p189 = scmp.ne.s32.totalorder %s181, %s183
      %p190 = scmp.eq.s32.totalorder %s33, 1
      %p191 = por %p189, %p190
      %p192 = scmp.ne.s32.totalorder %s183, %s184
      %p193 = scmp.eq.s32.totalorder %s33, 0
      %p194 = por %p192, %p193
      %p195 = scmp.ne.s32.totalorder %s183, %s184
      %p196 = scmp.eq.s32.totalorder %s34, 1
      %p197 = por %p195, %p196
      %p199 = scmp.ne.s32.totalorder %s184, %s198
      %p200 = scmp.eq.s32.totalorder %s34, 0
      %p201 = por %p199, %p200
      %s203 = sadd.s32 %s202, 1
      %p206 = scmp.eq.s32.totalorder %s28, 1
      %p207 = scmp.ne.s32.totalorder %s202, %s204
      %p208 = scmp.eq.s32.totalorder %s28, 0
      %p209 = por %p207, %p208
      %p210 = scmp.ne.s32.totalorder %s202, %s204
      %p211 = scmp.eq.s32.totalorder %s33, 1
      %p212 = por %p210, %p211
      %p213 = scmp.ne.s32.totalorder %s204, %s205
      %p214 = scmp.eq.s32.totalorder %s33, 0
      %p215 = por %p213, %p214
      %p216 = scmp.ne.s32.totalorder %s204, %s205
      %p217 = scmp.eq.s32.totalorder %s34, 1
      %p218 = por %p216, %p217
      %p220 = scmp.ne.s32.totalorder %s205, %s219
      %p221 = scmp.eq.s32.totalorder %s34, 0
      %p222 = por %p220, %p221
      %s224 = sadd.s32 %s223, 1
      %p227 = scmp.eq.s32.totalorder %s28, 1
      %p228 = scmp.ne.s32.totalorder %s223, %s225
      %p229 = scmp.eq.s32.totalorder %s28, 0
      %p230 = por %p228, %p229
      %p231 = scmp.ne.s32.totalorder %s223, %s225
      %p232 = scmp.eq.s32.totalorder %s33, 1
      %p233 = por %p231, %p232
      %p234 = scmp.ne.s32.totalorder %s225, %s226
      %p235 = scmp.eq.s32.totalorder %s33, 0
      %p236 = por %p234, %p235
      %p237 = scmp.ne.s32.totalorder %s225, %s226
      %p238 = scmp.eq.s32.totalorder %s34, 1
      %p239 = por %p237, %p238
      %p241 = scmp.ne.s32.totalorder %s226, %s240
      %p242 = scmp.eq.s32.totalorder %s34, 0
      %p243 = por %p241, %p242
      %s245 = sadd.s32 %s244, 1
      %p248 = scmp.eq.s32.totalorder %s28, 1
      %p249 = scmp.ne.s32.totalorder %s244, %s246
      %p250 = scmp.eq.s32.totalorder %s28, 0
      %p251 = por %p249, %p250
      %p252 = scmp.ne.s32.totalorder %s244, %s246
      %p253 = scmp.eq.s32.totalorder %s33, 1
      %p254 = por %p252, %p253
      %p255 = scmp.ne.s32.totalorder %s246, %s247
      %p256 = scmp.eq.s32.totalorder %s33, 0
      %p257 = por %p255, %p256
      %p258 = scmp.ne.s32.totalorder %s246, %s247
      %p259 = scmp.eq.s32.totalorder %s34, 1
      %p260 = por %p258, %p259
      %p262 = scmp.ne.s32.totalorder %s247, %s261
      %p263 = scmp.eq.s32.totalorder %s34, 0
      %p264 = por %p262, %p263
      %s266 = sadd.s32 %s265, 1
      %p269 = scmp.eq.s32.totalorder %s28, 1
      %p270 = scmp.ne.s32.totalorder %s265, %s267
      %p271 = scmp.eq.s32.totalorder %s28, 0
      %p272 = por %p270, %p271
      %p273 = scmp.ne.s32.totalorder %s265, %s267
      %p274 = scmp.eq.s32.totalorder %s33, 1
      %p275 = por %p273, %p274
      %p276 = scmp.ne.s32.totalorder %s267, %s268
      %p277 = scmp.eq.s32.totalorder %s33, 0
      %p278 = por %p276, %p277
      %p279 = scmp.ne.s32.totalorder %s267, %s268
      %p280 = scmp.eq.s32.totalorder %s34, 1
      %p281 = por %p279, %p280
      %p283 = scmp.ne.s32.totalorder %s268, %s282
      %p284 = scmp.eq.s32.totalorder %s34, 0
      %p285 = por %p283, %p284
      %s286 = ssub.s32 %s35, %s47
      %s287 = ssub.s32 %s36, %s43
      %s288 = sor.u32 %s286, %s287
      %p289 = scmp.eq.s32.totalorder %s288, 0
      %s291 = sadd.s32 %s290, 1
      %s292 = scalar_select %p289, %s290, %s291
      %p295 = pneg %p289
      %p296 = scmp.eq.s32.totalorder %s28, 1
      %p297 = por %p295, %p296
      %p298 = scmp.ne.s32.totalorder %s290, %s293
      %p299 = scmp.eq.s32.totalorder %s28, 0
      %p300 = por %p298, %p299
      %p301 = scmp.ne.s32.totalorder %s290, %s293
      %p302 = scmp.eq.s32.totalorder %s33, 1
      %p303 = por %p301, %p302
      %p304 = scmp.ne.s32.totalorder %s293, %s294
      %p305 = scmp.eq.s32.totalorder %s33, 0
      %p306 = por %p304, %p305
      %p307 = scmp.ne.s32.totalorder %s293, %s294
      %p308 = scmp.eq.s32.totalorder %s34, 1
      %p309 = por %p307, %p308
      %p311 = scmp.ne.s32.totalorder %s294, %s310
      %p312 = scmp.eq.s32.totalorder %s34, 0
      %p313 = por %p311, %p312
      %p314 = scmp.le.s32.totalorder 1, %s28
      %p315 = scmp.lt.s32.totalorder %s28, 3
      %p316 = pnand %p314, %p315
      %p317 = pneg %p316
      // Predicated region
      $region9: #{tpu_custom_call.1} parent=5 // pred_check
        _
      $region10: #{tpu_custom_call.1} parent=5 // pred_check_branch
        %319 = sbr.rel (%p316) target = $region12
      $region11: #{tpu_custom_call.1} parent=5 // pred_region
        %s320 = ssub.s32 %s28, 1
        // Predicated region
        $region13: #{tpu_custom_call.1} parent=11 // pred_check
          %p321 = pneg %p89
        $region14: #{tpu_custom_call.1} parent=11 // pred_check_branch
          %323 = sbr.rel (%p321) target = $region16
        $region15: #{tpu_custom_call.1} parent=11 // pred_region
          %s325 = ssub.s32 1024, 1024
          %326 = vsyncadd [#allocation6], %s325
          %s327 = sshll.u32 [#allocation5], 4
          %s328 = int_to_ptr.vmem [resolvable:$true] %s327
          %333 = dma.hbm_to_vmem [thread:$0]  %s1, 1024, %s328, [#allocation6], 128, 128, 8
        $region16: #{tpu_custom_call.1} parent=11 // pred_fallthru
          _
        // Predicated region
        $region17: #{tpu_custom_call.1} parent=11 // pred_check
          %p334 = pneg %p110
        $region18: #{tpu_custom_call.1} parent=11 // pred_check_branch
          %336 = sbr.rel (%p334) target = $region20
        $region19: #{tpu_custom_call.1} parent=11 // pred_region
          %s338 = ssub.s32 1024, 1024
          %339 = vsyncadd [#allocation6], %s338
          %s340 = sshll.u32 [#allocation7], 4
          %s341 = int_to_ptr.vmem [resolvable:$true] %s340
          %346 = dma.hbm_to_vmem [thread:$0]  %s2, 1024, %s341, [#allocation6], 128, 128, 8
        $region20: #{tpu_custom_call.1} parent=11 // pred_fallthru
          _
        // Predicated region
        $region21: #{tpu_custom_call.1} parent=11 // pred_check
          %p347 = pneg %p131
        $region22: #{tpu_custom_call.1} parent=11 // pred_check_branch
          %349 = sbr.rel (%p347) target = $region24
        $region23: #{tpu_custom_call.1} parent=11 // pred_region
          %s351 = ssub.s32 512, 512
          %352 = vsyncadd [#allocation9], %s351
          %s353 = sshll.u32 [#allocation8], 4
          %s354 = int_to_ptr.vmem [resolvable:$true] %s353
          %359 = dma.hbm_to_vmem [thread:$0]  %s3, 512, %s354, [#allocation9], 64, 64, 4
        $region24: #{tpu_custom_call.1} parent=11 // pred_fallthru
          _
        // Predicated region
        $region25: #{tpu_custom_call.1} parent=11 // pred_check
          %p360 = pneg %p152
        $region26: #{tpu_custom_call.1} parent=11 // pred_check_branch
          %362 = sbr.rel (%p360) target = $region28
        $region27: #{tpu_custom_call.1} parent=11 // pred_region
          %s364 = ssub.s32 1024, 1024
          %365 = vsyncadd [#allocation9], %s364
          %s366 = sshll.u32 [#allocation10], 4
          %s367 = int_to_ptr.vmem [resolvable:$true] %s366
          %372 = dma.hbm_to_vmem [thread:$0]  %s4, 1024, %s367, [#allocation9], 128, 128, 8
        $region28: #{tpu_custom_call.1} parent=11 // pred_fallthru
          _
        // Predicated region
        $region29: #{tpu_custom_call.1} parent=11 // pred_check
          %p373 = pneg %p173
        $region30: #{tpu_custom_call.1} parent=11 // pred_check_branch
          %375 = sbr.rel (%p373) target = $region32
        $region31: #{tpu_custom_call.1} parent=11 // pred_region
          %s377 = ssub.s32 512, 512
          %378 = vsyncadd [#allocation12], %s377
          %s379 = sshll.u32 [#allocation11], 4
          %s380 = int_to_ptr.vmem [resolvable:$true] %s379
          %385 = dma.hbm_to_vmem [thread:$0]  %s5, 512, %s380, [#allocation12], 64, 64, 4
        $region32: #{tpu_custom_call.1} parent=11 // pred_fallthru
          _
        // Predicated region
        $region33: #{tpu_custom_call.1} parent=11 // pred_check
          %p386 = pneg %p194
        $region34: #{tpu_custom_call.1} parent=11 // pred_check_branch
          %388 = sbr.rel (%p386) target = $region36
        $region35: #{tpu_custom_call.1} parent=11 // pred_region
          %s390 = ssub.s32 1024, 1024
          %391 = vsyncadd [#allocation12], %s390
          %s392 = sshll.u32 [#allocation13], 4
          %s393 = int_to_ptr.vmem [resolvable:$true] %s392
          %398 = dma.hbm_to_vmem [thread:$0]  %s6, 1024, %s393, [#allocation12], 128, 128, 8
        $region36: #{tpu_custom_call.1} parent=11 // pred_fallthru
          _
        // Predicated region
        $region37: #{tpu_custom_call.1} parent=11 // pred_check
          %p399 = pneg %p215
        $region38: #{tpu_custom_call.1} parent=11 // pred_check_branch
          %401 = sbr.rel (%p399) target = $region40
        $region39: #{tpu_custom_call.1} parent=11 // pred_region
          %s403 = ssub.s32 1024, 1024
          %404 = vsyncadd [#allocation15], %s403
          %s405 = sshll.u32 [#allocation14], 4
          %s406 = int_to_ptr.vmem [resolvable:$true] %s405
          %411 = dma.hbm_to_vmem [thread:$0]  %s7, 1024, %s406, [#allocation15], 64, 64, 4
        $region40: #{tpu_custom_call.1} parent=11 // pred_fallthru
          _
        // Predicated region
        $region41: #{tpu_custom_call.1} parent=11 // pred_check
          %p412 = pneg %p236
        $region42: #{tpu_custom_call.1} parent=11 // pred_check_branch
          %414 = sbr.rel (%p412) target = $region44
        $region43: #{tpu_custom_call.1} parent=11 // pred_region
          %s416 = ssub.s32 2048, 2048
          %417 = vsyncadd [#allocation15], %s416
          %s418 = sshll.u32 [#allocation16], 4
          %s419 = int_to_ptr.vmem [resolvable:$true] %s418
          %424 = dma.hbm_to_vmem [thread:$0]  %s8, 2048, %s419, [#allocation15], 128, 128, 8
        $region44: #{tpu_custom_call.1} parent=11 // pred_fallthru
          _
        // Predicated region
        $region45: #{tpu_custom_call.1} parent=11 // pred_check
          %p425 = pneg %p257
        $region46: #{tpu_custom_call.1} parent=11 // pred_check_branch
          %427 = sbr.rel (%p425) target = $region48
        $region47: #{tpu_custom_call.1} parent=11 // pred_region
          %s429 = ssub.s32 2048, 2048
          %430 = vsyncadd [#allocation18], %s429
          %s431 = sshll.u32 [#allocation17], 4
          %s432 = int_to_ptr.vmem [resolvable:$true] %s431
          %437 = dma.hbm_to_vmem [thread:$0]  %s9, 2048, %s432, [#allocation18], 64, 64, 4
        $region48: #{tpu_custom_call.1} parent=11 // pred_fallthru
          _
        // Predicated region
        $region49: #{tpu_custom_call.1} parent=11 // pred_check
          %p438 = pneg %p278
        $region50: #{tpu_custom_call.1} parent=11 // pred_check_branch
          %440 = sbr.rel (%p438) target = $region52
        $region51: #{tpu_custom_call.1} parent=11 // pred_region
          %s442 = ssub.s32 4096, 4096
          %443 = vsyncadd [#allocation18], %s442
          %s444 = sshll.u32 [#allocation19], 4
          %s445 = int_to_ptr.vmem [resolvable:$true] %s444
          %450 = dma.hbm_to_vmem [thread:$0]  %s10, 4096, %s445, [#allocation18], 128, 128, 8
        $region52: #{tpu_custom_call.1} parent=11 // pred_fallthru
          _
      $region12: #{tpu_custom_call.1} parent=5 // pred_fallthru
        _
      %p451 = scmp.lt.s32.totalorder %s28, 2
      // Predicated region
      $region53: #{tpu_custom_call.1} parent=5 // pred_check
        %p452 = pneg %p451
      $region54: #{tpu_custom_call.1} parent=5 // pred_check_branch
        %454 = sbr.rel (%p452) target = $region56
      $region55: #{tpu_custom_call.1} parent=5 // pred_region
        // Predicated region
        $region57: #{tpu_custom_call.1} parent=55 // pred_check
          %p455 = pneg %p62
        $region58: #{tpu_custom_call.1} parent=55 // pred_check_branch
          %457 = sbr.rel (%p455) target = $region60
        $region59: #{tpu_custom_call.1} parent=55 // pred_region
          %s458 = sand.u32 %s52, 1
          %s459 = scalar_lea.sflag [#allocation3], %s458
          %s460 = sand.u32 %s52, 1
          %s461 = smul.addr %s460, 16
          %s462 = scalar_lea.vmem [#allocation2], %s461
          %s463 = smul.u32 4, %s36
          %s465 = ssub.s32 256, 256
          %466 = vsyncadd %s459, %s465
          %s467 = smul.addr %s35, 4
          %s468 = sadd.s32 %s463, %s467
          %s469 = smul.addr %s468, 64
          %s470 = scalar_lea.hbm %s0, %s469
          %s472 = sshll.u32 %s462, 4
          %s473 = int_to_ptr.vmem [resolvable:$true] %s472
          %475 = dma.hbm_to_vmem [thread:$0]  %s470, 256, %s473, %s459
        $region60: #{tpu_custom_call.1} parent=55 // pred_fallthru
          _
      $region56: #{tpu_custom_call.1} parent=5 // pred_fallthru
        _
      %p476 = scmp.le.s32.totalorder 1, %s28
      %p477 = scmp.lt.s32.totalorder %s28, 3
      %p478 = pnand %p476, %p477
      %p479 = pneg %p478
      // Predicated region
      $region61: #{tpu_custom_call.1} parent=5 // pred_check
        _
      $region62: #{tpu_custom_call.1} parent=5 // pred_check_branch
        %481 = sbr.rel (%p478) target = $region64
      $region63: #{tpu_custom_call.1} parent=5 // pred_region
        %s482 = ssub.s32 %s28, 1
        %s483 = sand.u32 %s55, 1
        %s484 = scalar_lea.sflag [#allocation3], %s483
        %s485 = sand.u32 %s55, 1
        %s486 = smul.addr %s485, 16
        %s487 = scalar_lea.vmem [#allocation2], %s486
        // Predicated region
        $region65: #{tpu_custom_call.1} parent=63 // pred_check
          %p488 = pneg %p68
        $region66: #{tpu_custom_call.1} parent=63 // pred_check_branch
          %490 = sbr.rel (%p488) target = $region68
        $region67: #{tpu_custom_call.1} parent=63 // pred_region
          %491 = dma.done %s484, 256
        $region68: #{tpu_custom_call.1} parent=63 // pred_fallthru
          _
        // Predicated region
        $region69: #{tpu_custom_call.1} parent=63 // pred_check
          %p492 = pneg %p89
        $region70: #{tpu_custom_call.1} parent=63 // pred_check_branch
          %494 = sbr.rel (%p492) target = $region72
        $region71: #{tpu_custom_call.1} parent=63 // pred_region
          %495 = dma.done [#allocation6], 1024
        $region72: #{tpu_custom_call.1} parent=63 // pred_fallthru
          _
        // Predicated region
        $region73: #{tpu_custom_call.1} parent=63 // pred_check
          %p496 = pneg %p110
        $region74: #{tpu_custom_call.1} parent=63 // pred_check_branch
          %498 = sbr.rel (%p496) target = $region76
        $region75: #{tpu_custom_call.1} parent=63 // pred_region
          %499 = dma.done [#allocation6], 1024
        $region76: #{tpu_custom_call.1} parent=63 // pred_fallthru
          _
        // Predicated region
        $region77: #{tpu_custom_call.1} parent=63 // pred_check
          %p500 = pneg %p131
        $region78: #{tpu_custom_call.1} parent=63 // pred_check_branch
          %502 = sbr.rel (%p500) target = $region80
        $region79: #{tpu_custom_call.1} parent=63 // pred_region
          %503 = dma.done [#allocation9], 512
        $region80: #{tpu_custom_call.1} parent=63 // pred_fallthru
          _
        // Predicated region
        $region81: #{tpu_custom_call.1} parent=63 // pred_check
          %p504 = pneg %p152
        $region82: #{tpu_custom_call.1} parent=63 // pred_check_branch
          %506 = sbr.rel (%p504) target = $region84
        $region83: #{tpu_custom_call.1} parent=63 // pred_region
          %507 = dma.done [#allocation9], 1024
        $region84: #{tpu_custom_call.1} parent=63 // pred_fallthru
          _
        // Predicated region
        $region85: #{tpu_custom_call.1} parent=63 // pred_check
          %p508 = pneg %p173
        $region86: #{tpu_custom_call.1} parent=63 // pred_check_branch
          %510 = sbr.rel (%p508) target = $region88
        $region87: #{tpu_custom_call.1} parent=63 // pred_region
          %511 = dma.done [#allocation12], 512
        $region88: #{tpu_custom_call.1} parent=63 // pred_fallthru
          _
        // Predicated region
        $region89: #{tpu_custom_call.1} parent=63 // pred_check
          %p512 = pneg %p194
        $region90: #{tpu_custom_call.1} parent=63 // pred_check_branch
          %514 = sbr.rel (%p512) target = $region92
        $region91: #{tpu_custom_call.1} parent=63 // pred_region
          %515 = dma.done [#allocation12], 1024
        $region92: #{tpu_custom_call.1} parent=63 // pred_fallthru
          _
        // Predicated region
        $region93: #{tpu_custom_call.1} parent=63 // pred_check
          %p516 = pneg %p215
        $region94: #{tpu_custom_call.1} parent=63 // pred_check_branch
          %518 = sbr.rel (%p516) target = $region96
        $region95: #{tpu_custom_call.1} parent=63 // pred_region
          %519 = dma.done [#allocation15], 1024
        $region96: #{tpu_custom_call.1} parent=63 // pred_fallthru
          _
        // Predicated region
        $region97: #{tpu_custom_call.1} parent=63 // pred_check
          %p520 = pneg %p236
        $region98: #{tpu_custom_call.1} parent=63 // pred_check_branch
          %522 = sbr.rel (%p520) target = $region100
        $region99: #{tpu_custom_call.1} parent=63 // pred_region
          %523 = dma.done [#allocation15], 2048
        $region100: #{tpu_custom_call.1} parent=63 // pred_fallthru
          _
        // Predicated region
        $region101: #{tpu_custom_call.1} parent=63 // pred_check
          %p524 = pneg %p257
        $region102: #{tpu_custom_call.1} parent=63 // pred_check_branch
          %526 = sbr.rel (%p524) target = $region104
        $region103: #{tpu_custom_call.1} parent=63 // pred_region
          %527 = dma.done [#allocation18], 2048
        $region104: #{tpu_custom_call.1} parent=63 // pred_fallthru
          _
        // Predicated region
        $region105: #{tpu_custom_call.1} parent=63 // pred_check
          %p528 = pneg %p278
        $region106: #{tpu_custom_call.1} parent=63 // pred_check_branch
          %530 = sbr.rel (%p528) target = $region108
        $region107: #{tpu_custom_call.1} parent=63 // pred_region
          %531 = dma.done [#allocation18], 4096
        $region108: #{tpu_custom_call.1} parent=63 // pred_fallthru
          _
        %s532 = sand.u32 %s55, 1
        %s533 = scalar_lea.sflag [#allocation3], %s532
        %s534 = sand.u32 %s55, 1
        %s535 = smul.addr %s534, 16
        %s536 = scalar_lea.vmem [#allocation2], %s535
        %p537 = pneg %p68
        %p538 = pneg %p65
        %p539 = pneg %p89
        %p540 = pneg %p86
        %p541 = pneg %p110
        %p542 = pneg %p107
        %p543 = pneg %p131
        %p544 = pneg %p128
        %p545 = pneg %p152
        %p546 = pneg %p149
        %p547 = pneg %p173
        %p548 = pneg %p170
        %p549 = pneg %p194
        %p550 = pneg %p191
        %p551 = pneg %p215
        %p552 = pneg %p212
        %p553 = pneg %p236
        %p554 = pneg %p233
        %p555 = pneg %p257
        %p556 = pneg %p254
        %p557 = pneg %p278
        %p558 = pneg %p275
        %p559 = pneg %p306
        %p560 = pneg %p303
        %s561 = sand.u32 %s293, 1
        %s562 = scalar_lea.sflag [#allocation4], %s561
        %s563 = sand.u32 %s293, 1
        %s564 = smul.addr %s563, 1024
        %s565 = scalar_lea.vmem [#allocation20], %s564
        %s566 = smul.u32 4, %s38
        %s567 = smul.u32 4, %s38
        %v569 = vld [vmem:[%s487] sm:$0x77]
        %v570 = vld [vmem:[%s487 + $0x8] sm:$0x77]
        %v571 = vld [vmem:[#allocation5] sm:$0xff]
        %v572 = vld [vmem:[#allocation5 + $0x8] sm:$0xff]
        %v573 = vld [vmem:[#allocation5 + $0x10] sm:$0xff]
        %v574 = vld [vmem:[#allocation5 + $0x18] sm:$0xff]
        %v575 = vld [vmem:[#allocation5 + $0x20] sm:$0xff]
        %v576 = vld [vmem:[#allocation5 + $0x28] sm:$0xff]
        %v577 = vld [vmem:[#allocation5 + $0x30] sm:$0xff]
        %v578 = vld [vmem:[#allocation5 + $0x38] sm:$0xff]
        %580 = vset.pattern.permute.xlu0 0
        %581 = vperm.xlu0 %580, %v571
        %v582 = vpop.permute.xlu0 %581
        %585 = vset.pattern.permute.xlu0 0
        %586 = vperm.xlu0 %585, %v572
        %v587 = vpop.permute.xlu0 %586
        %590 = vset.pattern.permute.xlu0 0
        %591 = vperm.xlu0 %590, %v573
        %v592 = vpop.permute.xlu0 %591
        %595 = vset.pattern.permute.xlu0 0
        %596 = vperm.xlu0 %595, %v574
        %v597 = vpop.permute.xlu0 %596
        %600 = vset.pattern.permute.xlu0 0
        %601 = vperm.xlu0 %600, %v575
        %v602 = vpop.permute.xlu0 %601
        %605 = vset.pattern.permute.xlu0 0
        %606 = vperm.xlu0 %605, %v576
        %v607 = vpop.permute.xlu0 %606
        %610 = vset.pattern.permute.xlu0 0
        %611 = vperm.xlu0 %610, %v577
        %v612 = vpop.permute.xlu0 %611
        %615 = vset.pattern.permute.xlu0 0
        %616 = vperm.xlu0 %615, %v578
        %v617 = vpop.permute.xlu0 %616
        %v621 = vlaneseq
        %v622 = vshrl.u32 %v621, 7
        %v623 = vsub.s32 0, %v622
        %v624 = vrot.slane %v569, %v623
        %v625 = vlaneseq
        %v626 = vshrl.u32 %v625, 7
        %v627 = vsub.s32 4, %v626
        %v628 = vrot.slane %v569, %v627
        %v629 = vlaneseq
        %v630 = vshrl.u32 %v629, 7
        %v631 = vsub.s32 0, %v630
        %v632 = vrot.slane %v570, %v631
        %v633 = vlaneseq
        %v634 = vshrl.u32 %v633, 7
        %v635 = vsub.s32 4, %v634
        %v636 = vrot.slane %v570, %v635
        %v641 = vlaneseq
        %v642 = vshrl.u32 %v641, 7
        %v643 = vsub.s32 0, %v642
        %v644 = vrot.slane %v624, %v643
        %v645 = vlaneseq
        %v646 = vshrl.u32 %v645, 7
        %v647 = vsub.s32 0, %v646
        %v648 = vrot.slane %v628, %v647
        %v649 = vlaneseq
        %v650 = vshrl.u32 %v649, 7
        %v651 = vsub.s32 0, %v650
        %v652 = vrot.slane %v632, %v651
        %v653 = vlaneseq
        %v654 = vshrl.u32 %v653, 7
        %v655 = vsub.s32 0, %v654
        %v656 = vrot.slane %v636, %v655
        %v657 = vmul.f32 %v582, %v644
        %v658 = vmul.f32 %v582, %v648
        %v659 = vmul.f32 %v582, %v652
        %v660 = vmul.f32 %v582, %v656
        %v661 = vmul.f32 %v587, %v644
        %v662 = vmul.f32 %v587, %v648
        %v663 = vmul.f32 %v587, %v652
        %v664 = vmul.f32 %v587, %v656
        %v665 = vmul.f32 %v592, %v644
        %v666 = vmul.f32 %v592, %v648
        %v667 = vmul.f32 %v592, %v652
        %v668 = vmul.f32 %v592, %v656
        %v669 = vmul.f32 %v597, %v644
        %v670 = vmul.f32 %v597, %v648
        %v671 = vmul.f32 %v597, %v652
        %v672 = vmul.f32 %v597, %v656
        %v673 = vmul.f32 %v602, %v644
        %v674 = vmul.f32 %v602, %v648
        %v675 = vmul.f32 %v602, %v652
        %v676 = vmul.f32 %v602, %v656
        %v677 = vmul.f32 %v607, %v644
        %v678 = vmul.f32 %v607, %v648
        %v679 = vmul.f32 %v607, %v652
        %v680 = vmul.f32 %v607, %v656
        %v681 = vmul.f32 %v612, %v644
        %v682 = vmul.f32 %v612, %v648
        %v683 = vmul.f32 %v612, %v652
        %v684 = vmul.f32 %v612, %v656
        %v685 = vmul.f32 %v617, %v644
        %v686 = vmul.f32 %v617, %v648
        %v687 = vmul.f32 %v617, %v652
        %v688 = vmul.f32 %v617, %v656
        %689 = vset.pattern.permute.xlu0 1
        %690 = vperm.xlu0 %689, %v571
        %v691 = vpop.permute.xlu0 %690
        %693 = vset.pattern.permute.xlu0 1
        %694 = vperm.xlu0 %693, %v572
        %v695 = vpop.permute.xlu0 %694
        %697 = vset.pattern.permute.xlu0 1
        %698 = vperm.xlu0 %697, %v573
        %v699 = vpop.permute.xlu0 %698
        %701 = vset.pattern.permute.xlu0 1
        %702 = vperm.xlu0 %701, %v574
        %v703 = vpop.permute.xlu0 %702
        %705 = vset.pattern.permute.xlu0 1
        %706 = vperm.xlu0 %705, %v575
        %v707 = vpop.permute.xlu0 %706
        %709 = vset.pattern.permute.xlu0 1
        %710 = vperm.xlu0 %709, %v576
        %v711 = vpop.permute.xlu0 %710
        %713 = vset.pattern.permute.xlu0 1
        %714 = vperm.xlu0 %713, %v577
        %v715 = vpop.permute.xlu0 %714
        %717 = vset.pattern.permute.xlu0 1
        %718 = vperm.xlu0 %717, %v578
        %v719 = vpop.permute.xlu0 %718
        %v721 = vlaneseq
        %v722 = vshrl.u32 %v721, 7
        %v723 = vsub.s32 1, %v722
        %v724 = vrot.slane %v569, %v723
        %v725 = vlaneseq
        %v726 = vshrl.u32 %v725, 7
        %v727 = vsub.s32 5, %v726
        %v728 = vrot.slane %v569, %v727
        %v729 = vlaneseq
        %v730 = vshrl.u32 %v729, 7
        %v731 = vsub.s32 1, %v730
        %v732 = vrot.slane %v570, %v731
        %v733 = vlaneseq
        %v734 = vshrl.u32 %v733, 7
        %v735 = vsub.s32 5, %v734
        %v736 = vrot.slane %v570, %v735
        %v741 = vlaneseq
        %v742 = vshrl.u32 %v741, 7
        %v743 = vsub.s32 1, %v742
        %v744 = vrot.slane %v724, %v743
        %v745 = vlaneseq
        %v746 = vshrl.u32 %v745, 7
        %v747 = vsub.s32 1, %v746
        %v748 = vrot.slane %v728, %v747
        %v749 = vlaneseq
        %v750 = vshrl.u32 %v749, 7
        %v751 = vsub.s32 1, %v750
        %v752 = vrot.slane %v732, %v751
        %v753 = vlaneseq
        %v754 = vshrl.u32 %v753, 7
        %v755 = vsub.s32 1, %v754
        %v756 = vrot.slane %v736, %v755
        %v757 = vmul.f32 %v691, %v744
        %v758 = vmul.f32 %v691, %v748
        %v759 = vmul.f32 %v691, %v752
        %v760 = vmul.f32 %v691, %v756
        %v761 = vmul.f32 %v695, %v744
        %v762 = vmul.f32 %v695, %v748
        %v763 = vmul.f32 %v695, %v752
        %v764 = vmul.f32 %v695, %v756
        %v765 = vmul.f32 %v699, %v744
        %v766 = vmul.f32 %v699, %v748
        %v767 = vmul.f32 %v699, %v752
        %v768 = vmul.f32 %v699, %v756
        %v769 = vmul.f32 %v703, %v744
        %v770 = vmul.f32 %v703, %v748
        %v771 = vmul.f32 %v703, %v752
        %v772 = vmul.f32 %v703, %v756
        %v773 = vmul.f32 %v707, %v744
        %v774 = vmul.f32 %v707, %v748
        %v775 = vmul.f32 %v707, %v752
        %v776 = vmul.f32 %v707, %v756
        %v777 = vmul.f32 %v711, %v744
        %v778 = vmul.f32 %v711, %v748
        %v779 = vmul.f32 %v711, %v752
        %v780 = vmul.f32 %v711, %v756
        %v781 = vmul.f32 %v715, %v744
        %v782 = vmul.f32 %v715, %v748
        %v783 = vmul.f32 %v715, %v752
        %v784 = vmul.f32 %v715, %v756
        %v785 = vmul.f32 %v719, %v744
        %v786 = vmul.f32 %v719, %v748
        %v787 = vmul.f32 %v719, %v752
        %v788 = vmul.f32 %v719, %v756
        %v789 = vadd.f32 %v657, %v757
        %v790 = vadd.f32 %v658, %v758
        %v791 = vadd.f32 %v659, %v759
        %v792 = vadd.f32 %v660, %v760
        %v793 = vadd.f32 %v661, %v761
        %v794 = vadd.f32 %v662, %v762
        %v795 = vadd.f32 %v663, %v763
        %v796 = vadd.f32 %v664, %v764
        %v797 = vadd.f32 %v665, %v765
        %v798 = vadd.f32 %v666, %v766
        %v799 = vadd.f32 %v667, %v767
        %v800 = vadd.f32 %v668, %v768
        %v801 = vadd.f32 %v669, %v769
        %v802 = vadd.f32 %v670, %v770
        %v803 = vadd.f32 %v671, %v771
        %v804 = vadd.f32 %v672, %v772
        %v805 = vadd.f32 %v673, %v773
        %v806 = vadd.f32 %v674, %v774
        %v807 = vadd.f32 %v675, %v775
        %v808 = vadd.f32 %v676, %v776
        %v809 = vadd.f32 %v677, %v777
        %v810 = vadd.f32 %v678, %v778
        %v811 = vadd.f32 %v679, %v779
        %v812 = vadd.f32 %v680, %v780
        %v813 = vadd.f32 %v681, %v781
        %v814 = vadd.f32 %v682, %v782
        %v815 = vadd.f32 %v683, %v783
        %v816 = vadd.f32 %v684, %v784
        %v817 = vadd.f32 %v685, %v785
        %v818 = vadd.f32 %v686, %v786
        %v819 = vadd.f32 %v687, %v787
        %v820 = vadd.f32 %v688, %v788
        %821 = vset.pattern.permute.xlu0 2
        %822 = vperm.xlu0 %821, %v571
        %v823 = vpop.permute.xlu0 %822
        %825 = vset.pattern.permute.xlu0 2
        %826 = vperm.xlu0 %825, %v572
        %v827 = vpop.permute.xlu0 %826
        %829 = vset.pattern.permute.xlu0 2
        %830 = vperm.xlu0 %829, %v573
        %v831 = vpop.permute.xlu0 %830
        %833 = vset.pattern.permute.xlu0 2
        %834 = vperm.xlu0 %833, %v574
        %v835 = vpop.permute.xlu0 %834
        %837 = vset.pattern.permute.xlu0 2
        %838 = vperm.xlu0 %837, %v575
        %v839 = vpop.permute.xlu0 %838
        %841 = vset.pattern.permute.xlu0 2
        %842 = vperm.xlu0 %841, %v576
        %v843 = vpop.permute.xlu0 %842
        %845 = vset.pattern.permute.xlu0 2
        %846 = vperm.xlu0 %845, %v577
        %v847 = vpop.permute.xlu0 %846
        %849 = vset.pattern.permute.xlu0 2
        %850 = vperm.xlu0 %849, %v578
        %v851 = vpop.permute.xlu0 %850
        %v853 = vlaneseq
        %v854 = vshrl.u32 %v853, 7
        %v855 = vsub.s32 2, %v854
        %v856 = vrot.slane %v569, %v855
        %v857 = vlaneseq
        %v858 = vshrl.u32 %v857, 7
        %v859 = vsub.s32 6, %v858
        %v860 = vrot.slane %v569, %v859
        %v861 = vlaneseq
        %v862 = vshrl.u32 %v861, 7
        %v863 = vsub.s32 2, %v862
        %v864 = vrot.slane %v570, %v863
        %v865 = vlaneseq
        %v866 = vshrl.u32 %v865, 7
        %v867 = vsub.s32 6, %v866
        %v868 = vrot.slane %v570, %v867
        %v873 = vlaneseq
        %v874 = vshrl.u32 %v873, 7
        %v875 = vsub.s32 2, %v874
        %v876 = vrot.slane %v856, %v875
        %v877 = vlaneseq
        %v878 = vshrl.u32 %v877, 7
        %v879 = vsub.s32 2, %v878
        %v880 = vrot.slane %v860, %v879
        %v881 = vlaneseq
        %v882 = vshrl.u32 %v881, 7
        %v883 = vsub.s32 2, %v882
        %v884 = vrot.slane %v864, %v883
        %v885 = vlaneseq
        %v886 = vshrl.u32 %v885, 7
        %v887 = vsub.s32 2, %v886
        %v888 = vrot.slane %v868, %v887
        %v889 = vmul.f32 %v823, %v876
        %v890 = vmul.f32 %v823, %v880
        %v891 = vmul.f32 %v823, %v884
        %v892 = vmul.f32 %v823, %v888
        %v893 = vmul.f32 %v827, %v876
        %v894 = vmul.f32 %v827, %v880
        %v895 = vmul.f32 %v827, %v884
        %v896 = vmul.f32 %v827, %v888
        %v897 = vmul.f32 %v831, %v876
        %v898 = vmul.f32 %v831, %v880
        %v899 = vmul.f32 %v831, %v884
        %v900 = vmul.f32 %v831, %v888
        %v901 = vmul.f32 %v835, %v876
        %v902 = vmul.f32 %v835, %v880
        %v903 = vmul.f32 %v835, %v884
        %v904 = vmul.f32 %v835, %v888
        %v905 = vmul.f32 %v839, %v876
        %v906 = vmul.f32 %v839, %v880
        %v907 = vmul.f32 %v839, %v884
        %v908 = vmul.f32 %v839, %v888
        %v909 = vmul.f32 %v843, %v876
        %v910 = vmul.f32 %v843, %v880
        %v911 = vmul.f32 %v843, %v884
        %v912 = vmul.f32 %v843, %v888
        %v913 = vmul.f32 %v847, %v876
        %v914 = vmul.f32 %v847, %v880
        %v915 = vmul.f32 %v847, %v884
        %v916 = vmul.f32 %v847, %v888
        %v917 = vmul.f32 %v851, %v876
        %v918 = vmul.f32 %v851, %v880
        %v919 = vmul.f32 %v851, %v884
        %v920 = vmul.f32 %v851, %v888
        %v921 = vadd.f32 %v789, %v889
        %v922 = vadd.f32 %v790, %v890
        %v923 = vadd.f32 %v791, %v891
        %v924 = vadd.f32 %v792, %v892
        %v925 = vadd.f32 %v793, %v893
        %v926 = vadd.f32 %v794, %v894
        %v927 = vadd.f32 %v795, %v895
        %v928 = vadd.f32 %v796, %v896
        %v929 = vadd.f32 %v797, %v897
        %v930 = vadd.f32 %v798, %v898
        %v931 = vadd.f32 %v799, %v899
        %v932 = vadd.f32 %v800, %v900
        %v933 = vadd.f32 %v801, %v901
        %v934 = vadd.f32 %v802, %v902
        %v935 = vadd.f32 %v803, %v903
        %v936 = vadd.f32 %v804, %v904
        %v937 = vadd.f32 %v805, %v905
        %v938 = vadd.f32 %v806, %v906
        %v939 = vadd.f32 %v807, %v907
        %v940 = vadd.f32 %v808, %v908
        %v941 = vadd.f32 %v809, %v909
        %v942 = vadd.f32 %v810, %v910
        %v943 = vadd.f32 %v811, %v911
        %v944 = vadd.f32 %v812, %v912
        %v945 = vadd.f32 %v813, %v913
        %v946 = vadd.f32 %v814, %v914
        %v947 = vadd.f32 %v815, %v915
        %v948 = vadd.f32 %v816, %v916
        %v949 = vadd.f32 %v817, %v917
        %v950 = vadd.f32 %v818, %v918
        %v951 = vadd.f32 %v819, %v919
        %v952 = vadd.f32 %v820, %v920
        %v953 = vld [vmem:[#allocation7] sm:$0xff]
        %v954 = vld [vmem:[#allocation7 + $0x8] sm:$0xff]
        %v955 = vld [vmem:[#allocation7 + $0x10] sm:$0xff]
        %v956 = vld [vmem:[#allocation7 + $0x18] sm:$0xff]
        %v957 = vld [vmem:[#allocation7 + $0x20] sm:$0xff]
        %v958 = vld [vmem:[#allocation7 + $0x28] sm:$0xff]
        %v959 = vld [vmem:[#allocation7 + $0x30] sm:$0xff]
        %v960 = vld [vmem:[#allocation7 + $0x38] sm:$0xff]
        %962 = vset.pattern.permute.xlu0 0
        %963 = vperm.xlu0 %962, %v953
        %v964 = vpop.permute.xlu0 %963
        %967 = vset.pattern.permute.xlu0 0
        %968 = vperm.xlu0 %967, %v954
        %v969 = vpop.permute.xlu0 %968
        %972 = vset.pattern.permute.xlu0 0
        %973 = vperm.xlu0 %972, %v955
        %v974 = vpop.permute.xlu0 %973
        %977 = vset.pattern.permute.xlu0 0
        %978 = vperm.xlu0 %977, %v956
        %v979 = vpop.permute.xlu0 %978
        %982 = vset.pattern.permute.xlu0 0
        %983 = vperm.xlu0 %982, %v957
        %v984 = vpop.permute.xlu0 %983
        %987 = vset.pattern.permute.xlu0 0
        %988 = vperm.xlu0 %987, %v958
        %v989 = vpop.permute.xlu0 %988
        %992 = vset.pattern.permute.xlu0 0
        %993 = vperm.xlu0 %992, %v959
        %v994 = vpop.permute.xlu0 %993
        %997 = vset.pattern.permute.xlu0 0
        %998 = vperm.xlu0 %997, %v960
        %v999 = vpop.permute.xlu0 %998
        %v1001 = vadd.f32 %v921, %v964
        %v1002 = vadd.f32 %v922, %v964
        %v1003 = vadd.f32 %v923, %v964
        %v1004 = vadd.f32 %v924, %v964
        %v1005 = vadd.f32 %v925, %v969
        %v1006 = vadd.f32 %v926, %v969
        %v1007 = vadd.f32 %v927, %v969
        %v1008 = vadd.f32 %v928, %v969
        %v1009 = vadd.f32 %v929, %v974
        %v1010 = vadd.f32 %v930, %v974
        %v1011 = vadd.f32 %v931, %v974
        %v1012 = vadd.f32 %v932, %v974
        %v1013 = vadd.f32 %v933, %v979
        %v1014 = vadd.f32 %v934, %v979
        %v1015 = vadd.f32 %v935, %v979
        %v1016 = vadd.f32 %v936, %v979
        %v1017 = vadd.f32 %v937, %v984
        %v1018 = vadd.f32 %v938, %v984
        %v1019 = vadd.f32 %v939, %v984
        %v1020 = vadd.f32 %v940, %v984
        %v1021 = vadd.f32 %v941, %v989
        %v1022 = vadd.f32 %v942, %v989
        %v1023 = vadd.f32 %v943, %v989
        %v1024 = vadd.f32 %v944, %v989
        %v1025 = vadd.f32 %v945, %v994
        %v1026 = vadd.f32 %v946, %v994
        %v1027 = vadd.f32 %v947, %v994
        %v1028 = vadd.f32 %v948, %v994
        %v1029 = vadd.f32 %v949, %v999
        %v1030 = vadd.f32 %v950, %v999
        %v1031 = vadd.f32 %v951, %v999
        %v1032 = vadd.f32 %v952, %v999
        %v1033 = vmax.f32 %v1001, 0.0
        %v1034 = vmax.f32 %v1002, 0.0
        %v1035 = vmax.f32 %v1003, 0.0
        %v1036 = vmax.f32 %v1004, 0.0
        %v1037 = vmax.f32 %v1005, 0.0
        %v1038 = vmax.f32 %v1006, 0.0
        %v1039 = vmax.f32 %v1007, 0.0
        %v1040 = vmax.f32 %v1008, 0.0
        %v1041 = vmax.f32 %v1009, 0.0
        %v1042 = vmax.f32 %v1010, 0.0
        %v1043 = vmax.f32 %v1011, 0.0
        %v1044 = vmax.f32 %v1012, 0.0
        %v1045 = vmax.f32 %v1013, 0.0
        %v1046 = vmax.f32 %v1014, 0.0
        %v1047 = vmax.f32 %v1015, 0.0
        %v1048 = vmax.f32 %v1016, 0.0
        %v1049 = vmax.f32 %v1017, 0.0
        %v1050 = vmax.f32 %v1018, 0.0
        %v1051 = vmax.f32 %v1019, 0.0
        %v1052 = vmax.f32 %v1020, 0.0
        %v1053 = vmax.f32 %v1021, 0.0
        %v1054 = vmax.f32 %v1022, 0.0
        %v1055 = vmax.f32 %v1023, 0.0
        %v1056 = vmax.f32 %v1024, 0.0
        %v1057 = vmax.f32 %v1025, 0.0
        %v1058 = vmax.f32 %v1026, 0.0
        %v1059 = vmax.f32 %v1027, 0.0
        %v1060 = vmax.f32 %v1028, 0.0
        %v1061 = vmax.f32 %v1029, 0.0
        %v1062 = vmax.f32 %v1030, 0.0
        %v1063 = vmax.f32 %v1031, 0.0
        %v1064 = vmax.f32 %v1032, 0.0
        %v1065 = vld [vmem:[#allocation8] sm:$0xf]
        %v1066 = vld [vmem:[#allocation8 + $0x4] sm:$0xf]
        %v1067 = vld [vmem:[#allocation8 + $0x8] sm:$0xf]
        %v1068 = vld [vmem:[#allocation8 + $0xc] sm:$0xf]
        %v1069 = vld [vmem:[#allocation8 + $0x10] sm:$0xf]
        %v1070 = vld [vmem:[#allocation8 + $0x14] sm:$0xf]
        %v1071 = vld [vmem:[#allocation8 + $0x18] sm:$0xf]
        %v1072 = vld [vmem:[#allocation8 + $0x1c] sm:$0xf]
        %v1073 = vpack.c.bf16 %v1037, %v1033
        %v1074 = vpack.c.bf16 %v1038, %v1034
        %v1075 = vpack.c.bf16 %v1039, %v1035
        %v1076 = vpack.c.bf16 %v1040, %v1036
        %v1077 = vpack.c.bf16 %v1045, %v1041
        %v1078 = vpack.c.bf16 %v1046, %v1042
        %v1079 = vpack.c.bf16 %v1047, %v1043
        %v1080 = vpack.c.bf16 %v1048, %v1044
        %v1081 = vpack.c.bf16 %v1053, %v1049
        %v1082 = vpack.c.bf16 %v1054, %v1050
        %v1083 = vpack.c.bf16 %v1055, %v1051
        %v1084 = vpack.c.bf16 %v1056, %v1052
        %v1085 = vpack.c.bf16 %v1061, %v1057
        %v1086 = vpack.c.bf16 %v1062, %v1058
        %v1087 = vpack.c.bf16 %v1063, %v1059
        %v1088 = vpack.c.bf16 %v1064, %v1060
        %v1089 = vld [vmem:[#allocation10] sm:$0xff]
        %v1090 = vld [vmem:[#allocation10 + $0x8] sm:$0xff]
        %v1091 = vld [vmem:[#allocation10 + $0x10] sm:$0xff]
        %v1092 = vld [vmem:[#allocation10 + $0x18] sm:$0xff]
        %v1093 = vld [vmem:[#allocation10 + $0x20] sm:$0xff]
        %v1094 = vld [vmem:[#allocation10 + $0x28] sm:$0xff]
        %v1095 = vld [vmem:[#allocation10 + $0x30] sm:$0xff]
        %v1096 = vld [vmem:[#allocation10 + $0x38] sm:$0xff]
        %1098 = vset.pattern.permute.xlu0 0
        %1099 = vperm.xlu0 %1098, %v1089
        %v1100 = vpop.permute.xlu0 %1099
        %1103 = vset.pattern.permute.xlu0 0
        %1104 = vperm.xlu0 %1103, %v1090
        %v1105 = vpop.permute.xlu0 %1104
        %1108 = vset.pattern.permute.xlu0 0
        %1109 = vperm.xlu0 %1108, %v1091
        %v1110 = vpop.permute.xlu0 %1109
        %1113 = vset.pattern.permute.xlu0 0
        %1114 = vperm.xlu0 %1113, %v1092
        %v1115 = vpop.permute.xlu0 %1114
        %1118 = vset.pattern.permute.xlu0 0
        %1119 = vperm.xlu0 %1118, %v1093
        %v1120 = vpop.permute.xlu0 %1119
        %1123 = vset.pattern.permute.xlu0 0
        %1124 = vperm.xlu0 %1123, %v1094
        %v1125 = vpop.permute.xlu0 %1124
        %1128 = vset.pattern.permute.xlu0 0
        %1129 = vperm.xlu0 %1128, %v1095
        %v1130 = vpop.permute.xlu0 %1129
        %1133 = vset.pattern.permute.xlu0 0
        %1134 = vperm.xlu0 %1133, %v1096
        %v1135 = vpop.permute.xlu0 %1134
        %v1145 = vunpack.c.l.b16 %v1065
        %v1146 = vunpack.c.l.b16 %v1066
        %v1147 = vunpack.c.l.b16 %v1067
        %v1148 = vunpack.c.l.b16 %v1068
        %v1149 = vunpack.c.l.b16 %v1069
        %v1150 = vunpack.c.l.b16 %v1070
        %v1151 = vunpack.c.l.b16 %v1071
        %v1152 = vunpack.c.l.b16 %v1072
        %v1153 = vpack.c.b16 %v1146, %v1145
        %v1154 = vpack.c.b16 %v1148, %v1147
        %v1155 = vpack.c.b16 %v1150, %v1149
        %v1156 = vpack.c.b16 %v1152, %v1151
        %vm1157 = vcmask 523264
        %v1159 = vsel %vm1157, %v1153, 0
        %v1162 = vsel %vm1157, %v1154, 0
        %v1165 = vsel %vm1157, %v1155, 0
        %v1168 = vsel %vm1157, %v1156, 0
        %1170 = vmatprep.subr.bf16.mxu0 %v1074
        %1171 = vmatpush1.bf16.msra.mxu0 %v1073
        %1172 = vmatprep.subr.bf16.mxu0 %v1078
        %1173 = vmatpush1.bf16.msra.mxu0 %v1077
        %1174 = vmatprep.subr.bf16.mxu0 %v1082
        %1175 = vmatpush1.bf16.msra.mxu0 %v1081
        %1176 = vmatprep.subr.bf16.mxu0 %v1086
        %1177 = vmatpush1.bf16.msra.mxu0 %v1085
        %1178 = vmatprep.subr.bf16.mxu0 0
        %1179 = vmatpush1.bf16.msra.mxu0 0
        %1180 = vmatprep.subr.bf16.mxu0 0
        %1181 = vmatpush1.bf16.msra.mxu0 0
        %1182 = vmatprep.subr.bf16.mxu0 0
        %1183 = vmatpush1.bf16.msra.mxu0 0
        %1184 = vmatprep.subr.bf16.mxu0 0
        %1185 = vmatpush1.bf16.msra.mxu0 0
        %1186 = vmatprep.subr.bf16.mxu0 0
        %1187 = vmatpush1.bf16.msra.mxu0 0
        %1188 = vmatprep.subr.bf16.mxu0 0
        %1189 = vmatpush1.bf16.msra.mxu0 0
        %1190 = vmatprep.subr.bf16.mxu0 0
        %1191 = vmatpush1.bf16.msra.mxu0 0
        %1192 = vmatprep.subr.bf16.mxu0 0
        %1193 = vmatpush1.bf16.msra.mxu0 0
        %1194 = vmatprep.subr.bf16.mxu0 0
        %1195 = vmatpush1.bf16.msra.mxu0 0
        %1196 = vmatprep.subr.bf16.mxu0 0
        %1197 = vmatpush1.bf16.msra.mxu0 0
        %1198 = vmatprep.subr.bf16.mxu0 0
        %1199 = vmatpush1.bf16.msra.mxu0 0
        %1200 = vmatprep.subr.bf16.mxu0 0
        %1201 = vmatpush1.bf16.msra.mxu0 0
        %1202 = vmatprep.mubr.bf16.mxu0 0
        %1203 = vmatmul.mubr.bf16.gmra.mrb[0].mxu0 %v1159
        %v1204 = vpop.f32.mrb[0].mxu0
        %v1205 = vadd.f32 %v1100, %v1204
        %v1206 = vpop.f32.mrb[0].mxu0
        %v1207 = vadd.f32 %v1100, %v1206
        %v1208 = vpop.f32.mrb[0].mxu0
        %v1209 = vadd.f32 %v1105, %v1208
        %v1210 = vpop.f32.mrb[0].mxu0
        %v1211 = vadd.f32 %v1105, %v1210
        %1212 = vmatprep.mubr.bf16.mxu0 0
        %1213 = vmatmul.mubr.bf16.gmra.mrb[0].mxu0 %v1162
        %v1214 = vpop.f32.mrb[0].mxu0
        %v1215 = vadd.f32 %v1110, %v1214
        %v1216 = vpop.f32.mrb[0].mxu0
        %v1217 = vadd.f32 %v1110, %v1216
        %v1218 = vpop.f32.mrb[0].mxu0
        %v1219 = vadd.f32 %v1115, %v1218
        %v1220 = vpop.f32.mrb[0].mxu0
        %v1221 = vadd.f32 %v1115, %v1220
        %1222 = vmatprep.mubr.bf16.mxu0 0
        %1223 = vmatmul.mubr.bf16.gmra.mrb[0].mxu0 %v1165
        %v1224 = vpop.f32.mrb[0].mxu0
        %v1225 = vadd.f32 %v1120, %v1224
        %v1226 = vpop.f32.mrb[0].mxu0
        %v1227 = vadd.f32 %v1120, %v1226
        %v1228 = vpop.f32.mrb[0].mxu0
        %v1229 = vadd.f32 %v1125, %v1228
        %v1230 = vpop.f32.mrb[0].mxu0
        %v1231 = vadd.f32 %v1125, %v1230
        %1232 = vmatprep.mubr.bf16.mxu0 0
        %1233 = vmatmul.mubr.bf16.gmra.mrb[0].mxu0 %v1168
        %v1234 = vpop.f32.mrb[0].mxu0
        %v1235 = vadd.f32 %v1130, %v1234
        %v1236 = vpop.f32.mrb[0].mxu0
        %v1237 = vadd.f32 %v1130, %v1236
        %v1238 = vpop.f32.mrb[0].mxu0
        %v1239 = vadd.f32 %v1135, %v1238
        %v1240 = vpop.f32.mrb[0].mxu0
        %v1241 = vadd.f32 %v1135, %v1240
        %1242 = vdwg.mxu0
        %1243 = vmatprep.subr.bf16.mxu0 %v1076
        %1244 = vmatpush1.bf16.msra.mxu0 %v1075
        %1245 = vmatprep.subr.bf16.mxu0 %v1080
        %1246 = vmatpush1.bf16.msra.mxu0 %v1079
        %1247 = vmatprep.subr.bf16.mxu0 %v1084
        %1248 = vmatpush1.bf16.msra.mxu0 %v1083
        %1249 = vmatprep.subr.bf16.mxu0 %v1088
        %1250 = vmatpush1.bf16.msra.mxu0 %v1087
        %1251 = vmatprep.subr.bf16.mxu0 0
        %1252 = vmatpush1.bf16.msra.mxu0 0
        %1253 = vmatprep.subr.bf16.mxu0 0
        %1254 = vmatpush1.bf16.msra.mxu0 0
        %1255 = vmatprep.subr.bf16.mxu0 0
        %1256 = vmatpush1.bf16.msra.mxu0 0
        %1257 = vmatprep.subr.bf16.mxu0 0
        %1258 = vmatpush1.bf16.msra.mxu0 0
        %1259 = vmatprep.subr.bf16.mxu0 0
        %1260 = vmatpush1.bf16.msra.mxu0 0
        %1261 = vmatprep.subr.bf16.mxu0 0
        %1262 = vmatpush1.bf16.msra.mxu0 0
        %1263 = vmatprep.subr.bf16.mxu0 0
        %1264 = vmatpush1.bf16.msra.mxu0 0
        %1265 = vmatprep.subr.bf16.mxu0 0
        %1266 = vmatpush1.bf16.msra.mxu0 0
        %1267 = vmatprep.subr.bf16.mxu0 0
        %1268 = vmatpush1.bf16.msra.mxu0 0
        %1269 = vmatprep.subr.bf16.mxu0 0
        %1270 = vmatpush1.bf16.msra.mxu0 0
        %1271 = vmatprep.subr.bf16.mxu0 0
        %1272 = vmatpush1.bf16.msra.mxu0 0
        %1273 = vmatprep.subr.bf16.mxu0 0
        %1274 = vmatpush1.bf16.msra.mxu0 0
        %1275 = vmatprep.mubr.bf16.mxu0 0
        %1276 = vmatmul.mubr.bf16.gmra.mrb[0].mxu0 %v1159
        %v1277 = vpop.f32.mrb[0].mxu0
        %v1278 = vadd.f32 %v1100, %v1277
        %v1279 = vpop.f32.mrb[0].mxu0
        %v1280 = vadd.f32 %v1100, %v1279
        %v1281 = vpop.f32.mrb[0].mxu0
        %v1282 = vadd.f32 %v1105, %v1281
        %v1283 = vpop.f32.mrb[0].mxu0
        %v1284 = vadd.f32 %v1105, %v1283
        %1285 = vmatprep.mubr.bf16.mxu0 0
        %1286 = vmatmul.mubr.bf16.gmra.mrb[0].mxu0 %v1162
        %v1287 = vpop.f32.mrb[0].mxu0
        %v1288 = vadd.f32 %v1110, %v1287
        %v1289 = vpop.f32.mrb[0].mxu0
        %v1290 = vadd.f32 %v1110, %v1289
        %v1291 = vpop.f32.mrb[0].mxu0
        %v1292 = vadd.f32 %v1115, %v1291
        %v1293 = vpop.f32.mrb[0].mxu0
        %v1294 = vadd.f32 %v1115, %v1293
        %1295 = vmatprep.mubr.bf16.mxu0 0
        %1296 = vmatmul.mubr.bf16.gmra.mrb[0].mxu0 %v1165
        %v1297 = vpop.f32.mrb[0].mxu0
        %v1298 = vadd.f32 %v1120, %v1297
        %v1299 = vpop.f32.mrb[0].mxu0
        %v1300 = vadd.f32 %v1120, %v1299
        %v1301 = vpop.f32.mrb[0].mxu0
        %v1302 = vadd.f32 %v1125, %v1301
        %v1303 = vpop.f32.mrb[0].mxu0
        %v1304 = vadd.f32 %v1125, %v1303
        %1305 = vmatprep.mubr.bf16.mxu0 0
        %1306 = vmatmul.mubr.bf16.gmra.mrb[0].mxu0 %v1168
        %v1307 = vpop.f32.mrb[0].mxu0
        %v1308 = vadd.f32 %v1130, %v1307
        %v1309 = vpop.f32.mrb[0].mxu0
        %v1310 = vadd.f32 %v1130, %v1309
        %v1311 = vpop.f32.mrb[0].mxu0
        %v1312 = vadd.f32 %v1135, %v1311
        %v1313 = vpop.f32.mrb[0].mxu0
        %v1314 = vadd.f32 %v1135, %v1313
        %1315 = vdwg.mxu0
        %v1316 = vmax.f32 %v1205, 0.0
        %v1317 = vmax.f32 %v1207, 0.0
        %v1318 = vmax.f32 %v1278, 0.0
        %v1319 = vmax.f32 %v1280, 0.0
        %v1320 = vmax.f32 %v1209, 0.0
        %v1321 = vmax.f32 %v1211, 0.0
        %v1322 = vmax.f32 %v1282, 0.0
        %v1323 = vmax.f32 %v1284, 0.0
        %v1324 = vmax.f32 %v1215, 0.0
        %v1325 = vmax.f32 %v1217, 0.0
        %v1326 = vmax.f32 %v1288, 0.0
        %v1327 = vmax.f32 %v1290, 0.0
        %v1328 = vmax.f32 %v1219, 0.0
        %v1329 = vmax.f32 %v1221, 0.0
        %v1330 = vmax.f32 %v1292, 0.0
        %v1331 = vmax.f32 %v1294, 0.0
        %v1332 = vmax.f32 %v1225, 0.0
        %v1333 = vmax.f32 %v1227, 0.0
        %v1334 = vmax.f32 %v1298, 0.0
        %v1335 = vmax.f32 %v1300, 0.0
        %v1336 = vmax.f32 %v1229, 0.0
        %v1337 = vmax.f32 %v1231, 0.0
        %v1338 = vmax.f32 %v1302, 0.0
        %v1339 = vmax.f32 %v1304, 0.0
        %v1340 = vmax.f32 %v1235, 0.0
        %v1341 = vmax.f32 %v1237, 0.0
        %v1342 = vmax.f32 %v1308, 0.0
        %v1343 = vmax.f32 %v1310, 0.0
        %v1344 = vmax.f32 %v1239, 0.0
        %v1345 = vmax.f32 %v1241, 0.0
        %v1346 = vmax.f32 %v1312, 0.0
        %v1347 = vmax.f32 %v1314, 0.0
        %v1348 = vld [vmem:[#allocation11] sm:$0xf]
        %v1349 = vld [vmem:[#allocation11 + $0x4] sm:$0xf]
        %v1350 = vld [vmem:[#allocation11 + $0x8] sm:$0xf]
        %v1351 = vld [vmem:[#allocation11 + $0xc] sm:$0xf]
        %v1352 = vld [vmem:[#allocation11 + $0x10] sm:$0xf]
        %v1353 = vld [vmem:[#allocation11 + $0x14] sm:$0xf]
        %v1354 = vld [vmem:[#allocation11 + $0x18] sm:$0xf]
        %v1355 = vld [vmem:[#allocation11 + $0x1c] sm:$0xf]
        %v1356 = vpack.c.bf16 %v1320, %v1316
        %v1357 = vpack.c.bf16 %v1321, %v1317
        %v1358 = vpack.c.bf16 %v1322, %v1318
        %v1359 = vpack.c.bf16 %v1323, %v1319
        %v1360 = vpack.c.bf16 %v1328, %v1324
        %v1361 = vpack.c.bf16 %v1329, %v1325
        %v1362 = vpack.c.bf16 %v1330, %v1326
        %v1363 = vpack.c.bf16 %v1331, %v1327
        %v1364 = vpack.c.bf16 %v1336, %v1332
        %v1365 = vpack.c.bf16 %v1337, %v1333
        %v1366 = vpack.c.bf16 %v1338, %v1334
        %v1367 = vpack.c.bf16 %v1339, %v1335
        %v1368 = vpack.c.bf16 %v1344, %v1340
        %v1369 = vpack.c.bf16 %v1345, %v1341
        %v1370 = vpack.c.bf16 %v1346, %v1342
        %v1371 = vpack.c.bf16 %v1347, %v1343
        %v1372 = vld [vmem:[#allocation13] sm:$0xff]
        %v1373 = vld [vmem:[#allocation13 + $0x8] sm:$0xff]
        %v1374 = vld [vmem:[#allocation13 + $0x10] sm:$0xff]
        %v1375 = vld [vmem:[#allocation13 + $0x18] sm:$0xff]
        %v1376 = vld [vmem:[#allocation13 + $0x20] sm:$0xff]
        %v1377 = vld [vmem:[#allocation13 + $0x28] sm:$0xff]
        %v1378 = vld [vmem:[#allocation13 + $0x30] sm:$0xff]
        %v1379 = vld [vmem:[#allocation13 + $0x38] sm:$0xff]
        %1381 = vset.pattern.permute.xlu0 0
        %1382 = vperm.xlu0 %1381, %v1372
        %v1383 = vpop.permute.xlu0 %1382
        %1386 = vset.pattern.permute.xlu0 0
        %1387 = vperm.xlu0 %1386, %v1373
        %v1388 = vpop.permute.xlu0 %1387
        %1391 = vset.pattern.permute.xlu0 0
        %1392 = vperm.xlu0 %1391, %v1374
        %v1393 = vpop.permute.xlu0 %1392
        %1396 = vset.pattern.permute.xlu0 0
        %1397 = vperm.xlu0 %1396, %v1375
        %v1398 = vpop.permute.xlu0 %1397
        %1401 = vset.pattern.permute.xlu0 0
        %1402 = vperm.xlu0 %1401, %v1376
        %v1403 = vpop.permute.xlu0 %1402
        %1406 = vset.pattern.permute.xlu0 0
        %1407 = vperm.xlu0 %1406, %v1377
        %v1408 = vpop.permute.xlu0 %1407
        %1411 = vset.pattern.permute.xlu0 0
        %1412 = vperm.xlu0 %1411, %v1378
        %v1413 = vpop.permute.xlu0 %1412
        %1416 = vset.pattern.permute.xlu0 0
        %1417 = vperm.xlu0 %1416, %v1379
        %v1418 = vpop.permute.xlu0 %1417
        %v1428 = vunpack.c.l.b16 %v1348
        %v1429 = vunpack.c.l.b16 %v1349
        %v1430 = vunpack.c.l.b16 %v1350
        %v1431 = vunpack.c.l.b16 %v1351
        %v1432 = vunpack.c.l.b16 %v1352
        %v1433 = vunpack.c.l.b16 %v1353
        %v1434 = vunpack.c.l.b16 %v1354
        %v1435 = vunpack.c.l.b16 %v1355
        %v1436 = vpack.c.b16 %v1429, %v1428
        %v1437 = vpack.c.b16 %v1431, %v1430
        %v1438 = vpack.c.b16 %v1433, %v1432
        %v1439 = vpack.c.b16 %v1435, %v1434
        %v1441 = vsel %vm1157, %v1436, 0
        %v1444 = vsel %vm1157, %v1437, 0
        %v1447 = vsel %vm1157, %v1438, 0
        %v1450 = vsel %vm1157, %v1439, 0
        %1452 = vmatprep.subr.bf16.mxu0 %v1357
        %1453 = vmatpush1.bf16.msra.mxu0 %v1356
        %1454 = vmatprep.subr.bf16.mxu0 %v1361
        %1455 = vmatpush1.bf16.msra.mxu0 %v1360
        %1456 = vmatprep.subr.bf16.mxu0 %v1365
        %1457 = vmatpush1.bf16.msra.mxu0 %v1364
        %1458 = vmatprep.subr.bf16.mxu0 %v1369
        %1459 = vmatpush1.bf16.msra.mxu0 %v1368
        %1460 = vmatprep.subr.bf16.mxu0 0
        %1461 = vmatpush1.bf16.msra.mxu0 0
        %1462 = vmatprep.subr.bf16.mxu0 0
        %1463 = vmatpush1.bf16.msra.mxu0 0
        %1464 = vmatprep.subr.bf16.mxu0 0
        %1465 = vmatpush1.bf16.msra.mxu0 0
        %1466 = vmatprep.subr.bf16.mxu0 0
        %1467 = vmatpush1.bf16.msra.mxu0 0
        %1468 = vmatprep.subr.bf16.mxu0 0
        %1469 = vmatpush1.bf16.msra.mxu0 0
        %1470 = vmatprep.subr.bf16.mxu0 0
        %1471 = vmatpush1.bf16.msra.mxu0 0
        %1472 = vmatprep.subr.bf16.mxu0 0
        %1473 = vmatpush1.bf16.msra.mxu0 0
        %1474 = vmatprep.subr.bf16.mxu0 0
        %1475 = vmatpush1.bf16.msra.mxu0 0
        %1476 = vmatprep.subr.bf16.mxu0 0
        %1477 = vmatpush1.bf16.msra.mxu0 0
        %1478 = vmatprep.subr.bf16.mxu0 0
        %1479 = vmatpush1.bf16.msra.mxu0 0
        %1480 = vmatprep.subr.bf16.mxu0 0
        %1481 = vmatpush1.bf16.msra.mxu0 0
        %1482 = vmatprep.subr.bf16.mxu0 0
        %1483 = vmatpush1.bf16.msra.mxu0 0
        %1484 = vmatprep.mubr.bf16.mxu0 0
        %1485 = vmatmul.mubr.bf16.gmra.mrb[0].mxu0 %v1441
        %v1486 = vpop.f32.mrb[0].mxu0
        %v1487 = vadd.f32 %v1383, %v1486
        %v1488 = vpop.f32.mrb[0].mxu0
        %v1489 = vadd.f32 %v1383, %v1488
        %v1490 = vpop.f32.mrb[0].mxu0
        %v1491 = vadd.f32 %v1388, %v1490
        %v1492 = vpop.f32.mrb[0].mxu0
        %v1493 = vadd.f32 %v1388, %v1492
        %1494 = vmatprep.mubr.bf16.mxu0 0
        %1495 = vmatmul.mubr.bf16.gmra.mrb[0].mxu0 %v1444
        %v1496 = vpop.f32.mrb[0].mxu0
        %v1497 = vadd.f32 %v1393, %v1496
        %v1498 = vpop.f32.mrb[0].mxu0
        %v1499 = vadd.f32 %v1393, %v1498
        %v1500 = vpop.f32.mrb[0].mxu0
        %v1501 = vadd.f32 %v1398, %v1500
        %v1502 = vpop.f32.mrb[0].mxu0
        %v1503 = vadd.f32 %v1398, %v1502
        %1504 = vmatprep.mubr.bf16.mxu0 0
        %1505 = vmatmul.mubr.bf16.gmra.mrb[0].mxu0 %v1447
        %v1506 = vpop.f32.mrb[0].mxu0
        %v1507 = vadd.f32 %v1403, %v1506
        %v1508 = vpop.f32.mrb[0].mxu0
        %v1509 = vadd.f32 %v1403, %v1508
        %v1510 = vpop.f32.mrb[0].mxu0
        %v1511 = vadd.f32 %v1408, %v1510
        %v1512 = vpop.f32.mrb[0].mxu0
        %v1513 = vadd.f32 %v1408, %v1512
        %1514 = vmatprep.mubr.bf16.mxu0 0
        %1515 = vmatmul.mubr.bf16.gmra.mrb[0].mxu0 %v1450
        %v1516 = vpop.f32.mrb[0].mxu0
        %v1517 = vadd.f32 %v1413, %v1516
        %v1518 = vpop.f32.mrb[0].mxu0
        %v1519 = vadd.f32 %v1413, %v1518
        %v1520 = vpop.f32.mrb[0].mxu0
        %v1521 = vadd.f32 %v1418, %v1520
        %v1522 = vpop.f32.mrb[0].mxu0
        %v1523 = vadd.f32 %v1418, %v1522
        %1524 = vdwg.mxu0
        %1525 = vmatprep.subr.bf16.mxu0 %v1359
        %1526 = vmatpush1.bf16.msra.mxu0 %v1358
        %1527 = vmatprep.subr.bf16.mxu0 %v1363
        %1528 = vmatpush1.bf16.msra.mxu0 %v1362
        %1529 = vmatprep.subr.bf16.mxu0 %v1367
        %1530 = vmatpush1.bf16.msra.mxu0 %v1366
        %1531 = vmatprep.subr.bf16.mxu0 %v1371
        %1532 = vmatpush1.bf16.msra.mxu0 %v1370
        %1533 = vmatprep.subr.bf16.mxu0 0
        %1534 = vmatpush1.bf16.msra.mxu0 0
        %1535 = vmatprep.subr.bf16.mxu0 0
        %1536 = vmatpush1.bf16.msra.mxu0 0
        %1537 = vmatprep.subr.bf16.mxu0 0
        %1538 = vmatpush1.bf16.msra.mxu0 0
        %1539 = vmatprep.subr.bf16.mxu0 0
        %1540 = vmatpush1.bf16.msra.mxu0 0
        %1541 = vmatprep.subr.bf16.mxu0 0
        %1542 = vmatpush1.bf16.msra.mxu0 0
        %1543 = vmatprep.subr.bf16.mxu0 0
        %1544 = vmatpush1.bf16.msra.mxu0 0
        %1545 = vmatprep.subr.bf16.mxu0 0
        %1546 = vmatpush1.bf16.msra.mxu0 0
        %1547 = vmatprep.subr.bf16.mxu0 0
        %1548 = vmatpush1.bf16.msra.mxu0 0
        %1549 = vmatprep.subr.bf16.mxu0 0
        %1550 = vmatpush1.bf16.msra.mxu0 0
        %1551 = vmatprep.subr.bf16.mxu0 0
        %1552 = vmatpush1.bf16.msra.mxu0 0
        %1553 = vmatprep.subr.bf16.mxu0 0
        %1554 = vmatpush1.bf16.msra.mxu0 0
        %1555 = vmatprep.subr.bf16.mxu0 0
        %1556 = vmatpush1.bf16.msra.mxu0 0
        %1557 = vmatprep.mubr.bf16.mxu0 0
        %1558 = vmatmul.mubr.bf16.gmra.mrb[0].mxu0 %v1441
        %v1559 = vpop.f32.mrb[0].mxu0
        %v1560 = vadd.f32 %v1383, %v1559
        %v1561 = vpop.f32.mrb[0].mxu0
        %v1562 = vadd.f32 %v1383, %v1561
        %v1563 = vpop.f32.mrb[0].mxu0
        %v1564 = vadd.f32 %v1388, %v1563
        %v1565 = vpop.f32.mrb[0].mxu0
        %v1566 = vadd.f32 %v1388, %v1565
        %1567 = vmatprep.mubr.bf16.mxu0 0
        %1568 = vmatmul.mubr.bf16.gmra.mrb[0].mxu0 %v1444
        %v1569 = vpop.f32.mrb[0].mxu0
        %v1570 = vadd.f32 %v1393, %v1569
        %v1571 = vpop.f32.mrb[0].mxu0
        %v1572 = vadd.f32 %v1393, %v1571
        %v1573 = vpop.f32.mrb[0].mxu0
        %v1574 = vadd.f32 %v1398, %v1573
        %v1575 = vpop.f32.mrb[0].mxu0
        %v1576 = vadd.f32 %v1398, %v1575
        %1577 = vmatprep.mubr.bf16.mxu0 0
        %1578 = vmatmul.mubr.bf16.gmra.mrb[0].mxu0 %v1447
        %v1579 = vpop.f32.mrb[0].mxu0
        %v1580 = vadd.f32 %v1403, %v1579
        %v1581 = vpop.f32.mrb[0].mxu0
        %v1582 = vadd.f32 %v1403, %v1581
        %v1583 = vpop.f32.mrb[0].mxu0
        %v1584 = vadd.f32 %v1408, %v1583
        %v1585 = vpop.f32.mrb[0].mxu0
        %v1586 = vadd.f32 %v1408, %v1585
        %1587 = vmatprep.mubr.bf16.mxu0 0
        %1588 = vmatmul.mubr.bf16.gmra.mrb[0].mxu0 %v1450
        %v1589 = vpop.f32.mrb[0].mxu0
        %v1590 = vadd.f32 %v1413, %v1589
        %v1591 = vpop.f32.mrb[0].mxu0
        %v1592 = vadd.f32 %v1413, %v1591
        %v1593 = vpop.f32.mrb[0].mxu0
        %v1594 = vadd.f32 %v1418, %v1593
        %v1595 = vpop.f32.mrb[0].mxu0
        %v1596 = vadd.f32 %v1418, %v1595
        %1597 = vdwg.mxu0
        %v1598 = vmax.f32 %v1487, 0.0
        %v1599 = vmax.f32 %v1489, 0.0
        %v1600 = vmax.f32 %v1560, 0.0
        %v1601 = vmax.f32 %v1562, 0.0
        %v1602 = vmax.f32 %v1491, 0.0
        %v1603 = vmax.f32 %v1493, 0.0
        %v1604 = vmax.f32 %v1564, 0.0
        %v1605 = vmax.f32 %v1566, 0.0
        %v1606 = vmax.f32 %v1497, 0.0
        %v1607 = vmax.f32 %v1499, 0.0
        %v1608 = vmax.f32 %v1570, 0.0
        %v1609 = vmax.f32 %v1572, 0.0
        %v1610 = vmax.f32 %v1501, 0.0
        %v1611 = vmax.f32 %v1503, 0.0
        %v1612 = vmax.f32 %v1574, 0.0
        %v1613 = vmax.f32 %v1576, 0.0
        %v1614 = vmax.f32 %v1507, 0.0
        %v1615 = vmax.f32 %v1509, 0.0
        %v1616 = vmax.f32 %v1580, 0.0
        %v1617 = vmax.f32 %v1582, 0.0
        %v1618 = vmax.f32 %v1511, 0.0
        %v1619 = vmax.f32 %v1513, 0.0
        %v1620 = vmax.f32 %v1584, 0.0
        %v1621 = vmax.f32 %v1586, 0.0
        %v1622 = vmax.f32 %v1517, 0.0
        %v1623 = vmax.f32 %v1519, 0.0
        %v1624 = vmax.f32 %v1590, 0.0
        %v1625 = vmax.f32 %v1592, 0.0
        %v1626 = vmax.f32 %v1521, 0.0
        %v1627 = vmax.f32 %v1523, 0.0
        %v1628 = vmax.f32 %v1594, 0.0
        %v1629 = vmax.f32 %v1596, 0.0
        %v1630 = vld [vmem:[#allocation14] sm:$0xf]
        %v1631 = vld [vmem:[#allocation14 + $0x4] sm:$0xf]
        %v1632 = vld [vmem:[#allocation14 + $0x8] sm:$0xf]
        %v1633 = vld [vmem:[#allocation14 + $0xc] sm:$0xf]
        %v1634 = vld [vmem:[#allocation14 + $0x10] sm:$0xf]
        %v1635 = vld [vmem:[#allocation14 + $0x14] sm:$0xf]
        %v1636 = vld [vmem:[#allocation14 + $0x18] sm:$0xf]
        %v1637 = vld [vmem:[#allocation14 + $0x1c] sm:$0xf]
        %v1638 = vld [vmem:[#allocation14 + $0x20] sm:$0xf]
        %v1639 = vld [vmem:[#allocation14 + $0x24] sm:$0xf]
        %v1640 = vld [vmem:[#allocation14 + $0x28] sm:$0xf]
        %v1641 = vld [vmem:[#allocation14 + $0x2c] sm:$0xf]
        %v1642 = vld [vmem:[#allocation14 + $0x30] sm:$0xf]
        %v1643 = vld [vmem:[#allocation14 + $0x34] sm:$0xf]
        %v1644 = vld [vmem:[#allocation14 + $0x38] sm:$0xf]
        %v1645 = vld [vmem:[#allocation14 + $0x3c] sm:$0xf]
        %v1646 = vpack.c.bf16 %v1602, %v1598
        %v1647 = vpack.c.bf16 %v1603, %v1599
        %v1648 = vpack.c.bf16 %v1604, %v1600
        %v1649 = vpack.c.bf16 %v1605, %v1601
        %v1650 = vpack.c.bf16 %v1610, %v1606
        %v1651 = vpack.c.bf16 %v1611, %v1607
        %v1652 = vpack.c.bf16 %v1612, %v1608
        %v1653 = vpack.c.bf16 %v1613, %v1609
        %v1654 = vpack.c.bf16 %v1618, %v1614
        %v1655 = vpack.c.bf16 %v1619, %v1615
        %v1656 = vpack.c.bf16 %v1620, %v1616
        %v1657 = vpack.c.bf16 %v1621, %v1617
        %v1658 = vpack.c.bf16 %v1626, %v1622
        %v1659 = vpack.c.bf16 %v1627, %v1623
        %v1660 = vpack.c.bf16 %v1628, %v1624
        %v1661 = vpack.c.bf16 %v1629, %v1625
        %v1662 = vld [vmem:[#allocation16] sm:$0xff]
        %v1663 = vld [vmem:[#allocation16 + $0x8] sm:$0xff]
        %v1664 = vld [vmem:[#allocation16 + $0x10] sm:$0xff]
        %v1665 = vld [vmem:[#allocation16 + $0x18] sm:$0xff]
        %v1666 = vld [vmem:[#allocation16 + $0x20] sm:$0xff]
        %v1667 = vld [vmem:[#allocation16 + $0x28] sm:$0xff]
        %v1668 = vld [vmem:[#allocation16 + $0x30] sm:$0xff]
        %v1669 = vld [vmem:[#allocation16 + $0x38] sm:$0xff]
        %v1670 = vld [vmem:[#allocation16 + $0x40] sm:$0xff]
        %v1671 = vld [vmem:[#allocation16 + $0x48] sm:$0xff]
        %v1672 = vld [vmem:[#allocation16 + $0x50] sm:$0xff]
        %v1673 = vld [vmem:[#allocation16 + $0x58] sm:$0xff]
        %v1674 = vld [vmem:[#allocation16 + $0x60] sm:$0xff]
        %v1675 = vld [vmem:[#allocation16 + $0x68] sm:$0xff]
        %v1676 = vld [vmem:[#allocation16 + $0x70] sm:$0xff]
        %v1677 = vld [vmem:[#allocation16 + $0x78] sm:$0xff]
        %1679 = vset.pattern.permute.xlu0 0
        %1680 = vperm.xlu0 %1679, %v1662
        %v1681 = vpop.permute.xlu0 %1680
        %1684 = vset.pattern.permute.xlu0 0
        %1685 = vperm.xlu0 %1684, %v1663
        %v1686 = vpop.permute.xlu0 %1685
        %1689 = vset.pattern.permute.xlu0 0
        %1690 = vperm.xlu0 %1689, %v1664
        %v1691 = vpop.permute.xlu0 %1690
        %1694 = vset.pattern.permute.xlu0 0
        %1695 = vperm.xlu0 %1694, %v1665
        %v1696 = vpop.permute.xlu0 %1695
        %1699 = vset.pattern.permute.xlu0 0
        %1700 = vperm.xlu0 %1699, %v1666
        %v1701 = vpop.permute.xlu0 %1700
        %1704 = vset.pattern.permute.xlu0 0
        %1705 = vperm.xlu0 %1704, %v1667
        %v1706 = vpop.permute.xlu0 %1705
        %1709 = vset.pattern.permute.xlu0 0
        %1710 = vperm.xlu0 %1709, %v1668
        %v1711 = vpop.permute.xlu0 %1710
        %1714 = vset.pattern.permute.xlu0 0
        %1715 = vperm.xlu0 %1714, %v1669
        %v1716 = vpop.permute.xlu0 %1715
        %1719 = vset.pattern.permute.xlu0 0
        %1720 = vperm.xlu0 %1719, %v1670
        %v1721 = vpop.permute.xlu0 %1720
        %1724 = vset.pattern.permute.xlu0 0
        %1725 = vperm.xlu0 %1724, %v1671
        %v1726 = vpop.permute.xlu0 %1725
        %1729 = vset.pattern.permute.xlu0 0
        %1730 = vperm.xlu0 %1729, %v1672
        %v1731 = vpop.permute.xlu0 %1730
        %1734 = vset.pattern.permute.xlu0 0
        %1735 = vperm.xlu0 %1734, %v1673
        %v1736 = vpop.permute.xlu0 %1735
        %1739 = vset.pattern.permute.xlu0 0
        %1740 = vperm.xlu0 %1739, %v1674
        %v1741 = vpop.permute.xlu0 %1740
        %1744 = vset.pattern.permute.xlu0 0
        %1745 = vperm.xlu0 %1744, %v1675
        %v1746 = vpop.permute.xlu0 %1745
        %1749 = vset.pattern.permute.xlu0 0
        %1750 = vperm.xlu0 %1749, %v1676
        %v1751 = vpop.permute.xlu0 %1750
        %1754 = vset.pattern.permute.xlu0 0
        %1755 = vperm.xlu0 %1754, %v1677
        %v1756 = vpop.permute.xlu0 %1755
        %v1774 = vunpack.c.l.b16 %v1630
        %v1775 = vunpack.c.l.b16 %v1631
        %v1776 = vunpack.c.l.b16 %v1632
        %v1777 = vunpack.c.l.b16 %v1633
        %v1778 = vunpack.c.l.b16 %v1634
        %v1779 = vunpack.c.l.b16 %v1635
        %v1780 = vunpack.c.l.b16 %v1636
        %v1781 = vunpack.c.l.b16 %v1637
        %v1782 = vunpack.c.l.b16 %v1638
        %v1783 = vunpack.c.l.b16 %v1639
        %v1784 = vunpack.c.l.b16 %v1640
        %v1785 = vunpack.c.l.b16 %v1641
        %v1786 = vunpack.c.l.b16 %v1642
        %v1787 = vunpack.c.l.b16 %v1643
        %v1788 = vunpack.c.l.b16 %v1644
        %v1789 = vunpack.c.l.b16 %v1645
        %v1790 = vpack.c.b16 %v1775, %v1774
        %v1791 = vpack.c.b16 %v1777, %v1776
        %v1792 = vpack.c.b16 %v1779, %v1778
        %v1793 = vpack.c.b16 %v1781, %v1780
        %v1794 = vpack.c.b16 %v1783, %v1782
        %v1795 = vpack.c.b16 %v1785, %v1784
        %v1796 = vpack.c.b16 %v1787, %v1786
        %v1797 = vpack.c.b16 %v1789, %v1788
        %v1799 = vsel %vm1157, %v1790, 0
        %v1802 = vsel %vm1157, %v1791, 0
        %v1805 = vsel %vm1157, %v1792, 0
        %v1808 = vsel %vm1157, %v1793, 0
        %v1811 = vsel %vm1157, %v1794, 0
        %v1814 = vsel %vm1157, %v1795, 0
        %v1817 = vsel %vm1157, %v1796, 0
        %v1820 = vsel %vm1157, %v1797, 0
        %1822 = vmatprep.subr.bf16.mxu0 %v1647
        %1823 = vmatpush1.bf16.msra.mxu0 %v1646
        %1824 = vmatprep.subr.bf16.mxu0 %v1651
        %1825 = vmatpush1.bf16.msra.mxu0 %v1650
        %1826 = vmatprep.subr.bf16.mxu0 %v1655
        %1827 = vmatpush1.bf16.msra.mxu0 %v1654
        %1828 = vmatprep.subr.bf16.mxu0 %v1659
        %1829 = vmatpush1.bf16.msra.mxu0 %v1658
        %1830 = vmatprep.subr.bf16.mxu0 0
        %1831 = vmatpush1.bf16.msra.mxu0 0
        %1832 = vmatprep.subr.bf16.mxu0 0
        %1833 = vmatpush1.bf16.msra.mxu0 0
        %1834 = vmatprep.subr.bf16.mxu0 0
        %1835 = vmatpush1.bf16.msra.mxu0 0
        %1836 = vmatprep.subr.bf16.mxu0 0
        %1837 = vmatpush1.bf16.msra.mxu0 0
        %1838 = vmatprep.subr.bf16.mxu0 0
        %1839 = vmatpush1.bf16.msra.mxu0 0
        %1840 = vmatprep.subr.bf16.mxu0 0
        %1841 = vmatpush1.bf16.msra.mxu0 0
        %1842 = vmatprep.subr.bf16.mxu0 0
        %1843 = vmatpush1.bf16.msra.mxu0 0
        %1844 = vmatprep.subr.bf16.mxu0 0
        %1845 = vmatpush1.bf16.msra.mxu0 0
        %1846 = vmatprep.subr.bf16.mxu0 0
        %1847 = vmatpush1.bf16.msra.mxu0 0
        %1848 = vmatprep.subr.bf16.mxu0 0
        %1849 = vmatpush1.bf16.msra.mxu0 0
        %1850 = vmatprep.subr.bf16.mxu0 0
        %1851 = vmatpush1.bf16.msra.mxu0 0
        %1852 = vmatprep.subr.bf16.mxu0 0
        %1853 = vmatpush1.bf16.msra.mxu0 0
        %1854 = vmatprep.mubr.bf16.mxu0 0
        %1855 = vmatmul.mubr.bf16.gmra.mrb[0].mxu0 %v1799
        %v1856 = vpop.f32.mrb[0].mxu0
        %v1857 = vadd.f32 %v1681, %v1856
        %v1858 = vpop.f32.mrb[0].mxu0
        %v1859 = vadd.f32 %v1681, %v1858
        %v1860 = vpop.f32.mrb[0].mxu0
        %v1861 = vadd.f32 %v1686, %v1860
        %v1862 = vpop.f32.mrb[0].mxu0
        %v1863 = vadd.f32 %v1686, %v1862
        %1864 = vmatprep.mubr.bf16.mxu0 0
        %1865 = vmatmul.mubr.bf16.gmra.mrb[0].mxu0 %v1802
        %v1866 = vpop.f32.mrb[0].mxu0
        %v1867 = vadd.f32 %v1691, %v1866
        %v1868 = vpop.f32.mrb[0].mxu0
        %v1869 = vadd.f32 %v1691, %v1868
        %v1870 = vpop.f32.mrb[0].mxu0
        %v1871 = vadd.f32 %v1696, %v1870
        %v1872 = vpop.f32.mrb[0].mxu0
        %v1873 = vadd.f32 %v1696, %v1872
        %1874 = vmatprep.mubr.bf16.mxu0 0
        %1875 = vmatmul.mubr.bf16.gmra.mrb[0].mxu0 %v1805
        %v1876 = vpop.f32.mrb[0].mxu0
        %v1877 = vadd.f32 %v1701, %v1876
        %v1878 = vpop.f32.mrb[0].mxu0
        %v1879 = vadd.f32 %v1701, %v1878
        %v1880 = vpop.f32.mrb[0].mxu0
        %v1881 = vadd.f32 %v1706, %v1880
        %v1882 = vpop.f32.mrb[0].mxu0
        %v1883 = vadd.f32 %v1706, %v1882
        %1884 = vmatprep.mubr.bf16.mxu0 0
        %1885 = vmatmul.mubr.bf16.gmra.mrb[0].mxu0 %v1808
        %v1886 = vpop.f32.mrb[0].mxu0
        %v1887 = vadd.f32 %v1711, %v1886
        %v1888 = vpop.f32.mrb[0].mxu0
        %v1889 = vadd.f32 %v1711, %v1888
        %v1890 = vpop.f32.mrb[0].mxu0
        %v1891 = vadd.f32 %v1716, %v1890
        %v1892 = vpop.f32.mrb[0].mxu0
        %v1893 = vadd.f32 %v1716, %v1892
        %1894 = vmatprep.mubr.bf16.mxu0 0
        %1895 = vmatmul.mubr.bf16.gmra.mrb[0].mxu0 %v1811
        %v1896 = vpop.f32.mrb[0].mxu0
        %v1897 = vadd.f32 %v1721, %v1896
        %v1898 = vpop.f32.mrb[0].mxu0
        %v1899 = vadd.f32 %v1721, %v1898
        %v1900 = vpop.f32.mrb[0].mxu0
        %v1901 = vadd.f32 %v1726, %v1900
        %v1902 = vpop.f32.mrb[0].mxu0
        %v1903 = vadd.f32 %v1726, %v1902
        %1904 = vmatprep.mubr.bf16.mxu0 0
        %1905 = vmatmul.mubr.bf16.gmra.mrb[0].mxu0 %v1814
        %v1906 = vpop.f32.mrb[0].mxu0
        %v1907 = vadd.f32 %v1731, %v1906
        %v1908 = vpop.f32.mrb[0].mxu0
        %v1909 = vadd.f32 %v1731, %v1908
        %v1910 = vpop.f32.mrb[0].mxu0
        %v1911 = vadd.f32 %v1736, %v1910
        %v1912 = vpop.f32.mrb[0].mxu0
        %v1913 = vadd.f32 %v1736, %v1912
        %1914 = vmatprep.mubr.bf16.mxu0 0
        %1915 = vmatmul.mubr.bf16.gmra.mrb[0].mxu0 %v1817
        %v1916 = vpop.f32.mrb[0].mxu0
        %v1917 = vadd.f32 %v1741, %v1916
        %v1918 = vpop.f32.mrb[0].mxu0
        %v1919 = vadd.f32 %v1741, %v1918
        %v1920 = vpop.f32.mrb[0].mxu0
        %v1921 = vadd.f32 %v1746, %v1920
        %v1922 = vpop.f32.mrb[0].mxu0
        %v1923 = vadd.f32 %v1746, %v1922
        %1924 = vmatprep.mubr.bf16.mxu0 0
        %1925 = vmatmul.mubr.bf16.gmra.mrb[0].mxu0 %v1820
        %v1926 = vpop.f32.mrb[0].mxu0
        %v1927 = vadd.f32 %v1751, %v1926
        %v1928 = vpop.f32.mrb[0].mxu0
        %v1929 = vadd.f32 %v1751, %v1928
        %v1930 = vpop.f32.mrb[0].mxu0
        %v1931 = vadd.f32 %v1756, %v1930
        %v1932 = vpop.f32.mrb[0].mxu0
        %v1933 = vadd.f32 %v1756, %v1932
        %1934 = vdwg.mxu0
        %1935 = vmatprep.subr.bf16.mxu0 %v1649
        %1936 = vmatpush1.bf16.msra.mxu0 %v1648
        %1937 = vmatprep.subr.bf16.mxu0 %v1653
        %1938 = vmatpush1.bf16.msra.mxu0 %v1652
        %1939 = vmatprep.subr.bf16.mxu0 %v1657
        %1940 = vmatpush1.bf16.msra.mxu0 %v1656
        %1941 = vmatprep.subr.bf16.mxu0 %v1661
        %1942 = vmatpush1.bf16.msra.mxu0 %v1660
        %1943 = vmatprep.subr.bf16.mxu0 0
        %1944 = vmatpush1.bf16.msra.mxu0 0
        %1945 = vmatprep.subr.bf16.mxu0 0
        %1946 = vmatpush1.bf16.msra.mxu0 0
        %1947 = vmatprep.subr.bf16.mxu0 0
        %1948 = vmatpush1.bf16.msra.mxu0 0
        %1949 = vmatprep.subr.bf16.mxu0 0
        %1950 = vmatpush1.bf16.msra.mxu0 0
        %1951 = vmatprep.subr.bf16.mxu0 0
        %1952 = vmatpush1.bf16.msra.mxu0 0
        %1953 = vmatprep.subr.bf16.mxu0 0
        %1954 = vmatpush1.bf16.msra.mxu0 0
        %1955 = vmatprep.subr.bf16.mxu0 0
        %1956 = vmatpush1.bf16.msra.mxu0 0
        %1957 = vmatprep.subr.bf16.mxu0 0
        %1958 = vmatpush1.bf16.msra.mxu0 0
        %1959 = vmatprep.subr.bf16.mxu0 0
        %1960 = vmatpush1.bf16.msra.mxu0 0
        %1961 = vmatprep.subr.bf16.mxu0 0
        %1962 = vmatpush1.bf16.msra.mxu0 0
        %1963 = vmatprep.subr.bf16.mxu0 0
        %1964 = vmatpush1.bf16.msra.mxu0 0
        %1965 = vmatprep.subr.bf16.mxu0 0
        %1966 = vmatpush1.bf16.msra.mxu0 0
        %1967 = vmatprep.mubr.bf16.mxu0 0
        %1968 = vmatmul.mubr.bf16.gmra.mrb[0].mxu0 %v1799
        %v1969 = vpop.f32.mrb[0].mxu0
        %v1970 = vadd.f32 %v1681, %v1969
        %v1971 = vpop.f32.mrb[0].mxu0
        %v1972 = vadd.f32 %v1681, %v1971
        %v1973 = vpop.f32.mrb[0].mxu0
        %v1974 = vadd.f32 %v1686, %v1973
        %v1975 = vpop.f32.mrb[0].mxu0
        %v1976 = vadd.f32 %v1686, %v1975
        %1977 = vmatprep.mubr.bf16.mxu0 0
        %1978 = vmatmul.mubr.bf16.gmra.mrb[0].mxu0 %v1802
        %v1979 = vpop.f32.mrb[0].mxu0
        %v1980 = vadd.f32 %v1691, %v1979
        %v1981 = vpop.f32.mrb[0].mxu0
        %v1982 = vadd.f32 %v1691, %v1981
        %v1983 = vpop.f32.mrb[0].mxu0
        %v1984 = vadd.f32 %v1696, %v1983
        %v1985 = vpop.f32.mrb[0].mxu0
        %v1986 = vadd.f32 %v1696, %v1985
        %1987 = vmatprep.mubr.bf16.mxu0 0
        %1988 = vmatmul.mubr.bf16.gmra.mrb[0].mxu0 %v1805
        %v1989 = vpop.f32.mrb[0].mxu0
        %v1990 = vadd.f32 %v1701, %v1989
        %v1991 = vpop.f32.mrb[0].mxu0
        %v1992 = vadd.f32 %v1701, %v1991
        %v1993 = vpop.f32.mrb[0].mxu0
        %v1994 = vadd.f32 %v1706, %v1993
        %v1995 = vpop.f32.mrb[0].mxu0
        %v1996 = vadd.f32 %v1706, %v1995
        %1997 = vmatprep.mubr.bf16.mxu0 0
        %1998 = vmatmul.mubr.bf16.gmra.mrb[0].mxu0 %v1808
        %v1999 = vpop.f32.mrb[0].mxu0
        %v2000 = vadd.f32 %v1711, %v1999
        %v2001 = vpop.f32.mrb[0].mxu0
        %v2002 = vadd.f32 %v1711, %v2001
        %v2003 = vpop.f32.mrb[0].mxu0
        %v2004 = vadd.f32 %v1716, %v2003
        %v2005 = vpop.f32.mrb[0].mxu0
        %v2006 = vadd.f32 %v1716, %v2005
        %2007 = vmatprep.mubr.bf16.mxu0 0
        %2008 = vmatmul.mubr.bf16.gmra.mrb[0].mxu0 %v1811
        %v2009 = vpop.f32.mrb[0].mxu0
        %v2010 = vadd.f32 %v1721, %v2009
        %v2011 = vpop.f32.mrb[0].mxu0
        %v2012 = vadd.f32 %v1721, %v2011
        %v2013 = vpop.f32.mrb[0].mxu0
        %v2014 = vadd.f32 %v1726, %v2013
        %v2015 = vpop.f32.mrb[0].mxu0
        %v2016 = vadd.f32 %v1726, %v2015
        %2017 = vmatprep.mubr.bf16.mxu0 0
        %2018 = vmatmul.mubr.bf16.gmra.mrb[0].mxu0 %v1814
        %v2019 = vpop.f32.mrb[0].mxu0
        %v2020 = vadd.f32 %v1731, %v2019
        %v2021 = vpop.f32.mrb[0].mxu0
        %v2022 = vadd.f32 %v1731, %v2021
        %v2023 = vpop.f32.mrb[0].mxu0
        %v2024 = vadd.f32 %v1736, %v2023
        %v2025 = vpop.f32.mrb[0].mxu0
        %v2026 = vadd.f32 %v1736, %v2025
        %2027 = vmatprep.mubr.bf16.mxu0 0
        %2028 = vmatmul.mubr.bf16.gmra.mrb[0].mxu0 %v1817
        %v2029 = vpop.f32.mrb[0].mxu0
        %v2030 = vadd.f32 %v1741, %v2029
        %v2031 = vpop.f32.mrb[0].mxu0
        %v2032 = vadd.f32 %v1741, %v2031
        %v2033 = vpop.f32.mrb[0].mxu0
        %v2034 = vadd.f32 %v1746, %v2033
        %v2035 = vpop.f32.mrb[0].mxu0
        %v2036 = vadd.f32 %v1746, %v2035
        %2037 = vmatprep.mubr.bf16.mxu0 0
        %2038 = vmatmul.mubr.bf16.gmra.mrb[0].mxu0 %v1820
        %v2039 = vpop.f32.mrb[0].mxu0
        %v2040 = vadd.f32 %v1751, %v2039
        %v2041 = vpop.f32.mrb[0].mxu0
        %v2042 = vadd.f32 %v1751, %v2041
        %v2043 = vpop.f32.mrb[0].mxu0
        %v2044 = vadd.f32 %v1756, %v2043
        %v2045 = vpop.f32.mrb[0].mxu0
        %v2046 = vadd.f32 %v1756, %v2045
        %2047 = vdwg.mxu0
        %v2048 = vmax.f32 %v1857, 0.0
        %v2049 = vmax.f32 %v1859, 0.0
        %v2050 = vmax.f32 %v1970, 0.0
        %v2051 = vmax.f32 %v1972, 0.0
        %v2052 = vmax.f32 %v1861, 0.0
        %v2053 = vmax.f32 %v1863, 0.0
        %v2054 = vmax.f32 %v1974, 0.0
        %v2055 = vmax.f32 %v1976, 0.0
        %v2056 = vmax.f32 %v1867, 0.0
        %v2057 = vmax.f32 %v1869, 0.0
        %v2058 = vmax.f32 %v1980, 0.0
        %v2059 = vmax.f32 %v1982, 0.0
        %v2060 = vmax.f32 %v1871, 0.0
        %v2061 = vmax.f32 %v1873, 0.0
        %v2062 = vmax.f32 %v1984, 0.0
        %v2063 = vmax.f32 %v1986, 0.0
        %v2064 = vmax.f32 %v1877, 0.0
        %v2065 = vmax.f32 %v1879, 0.0
        %v2066 = vmax.f32 %v1990, 0.0
        %v2067 = vmax.f32 %v1992, 0.0
        %v2068 = vmax.f32 %v1881, 0.0
        %v2069 = vmax.f32 %v1883, 0.0
        %v2070 = vmax.f32 %v1994, 0.0
        %v2071 = vmax.f32 %v1996, 0.0
        %v2072 = vmax.f32 %v1887, 0.0
        %v2073 = vmax.f32 %v1889, 0.0
        %v2074 = vmax.f32 %v2000, 0.0
        %v2075 = vmax.f32 %v2002, 0.0
        %v2076 = vmax.f32 %v1891, 0.0
        %v2077 = vmax.f32 %v1893, 0.0
        %v2078 = vmax.f32 %v2004, 0.0
        %v2079 = vmax.f32 %v2006, 0.0
        %v2080 = vmax.f32 %v1897, 0.0
        %v2081 = vmax.f32 %v1899, 0.0
        %v2082 = vmax.f32 %v2010, 0.0
        %v2083 = vmax.f32 %v2012, 0.0
        %v2084 = vmax.f32 %v1901, 0.0
        %v2085 = vmax.f32 %v1903, 0.0
        %v2086 = vmax.f32 %v2014, 0.0
        %v2087 = vmax.f32 %v2016, 0.0
        %v2088 = vmax.f32 %v1907, 0.0
        %v2089 = vmax.f32 %v1909, 0.0
        %v2090 = vmax.f32 %v2020, 0.0
        %v2091 = vmax.f32 %v2022, 0.0
        %v2092 = vmax.f32 %v1911, 0.0
        %v2093 = vmax.f32 %v1913, 0.0
        %v2094 = vmax.f32 %v2024, 0.0
        %v2095 = vmax.f32 %v2026, 0.0
        %v2096 = vmax.f32 %v1917, 0.0
        %v2097 = vmax.f32 %v1919, 0.0
        %v2098 = vmax.f32 %v2030, 0.0
        %v2099 = vmax.f32 %v2032, 0.0
        %v2100 = vmax.f32 %v1921, 0.0
        %v2101 = vmax.f32 %v1923, 0.0
        %v2102 = vmax.f32 %v2034, 0.0
        %v2103 = vmax.f32 %v2036, 0.0
        %v2104 = vmax.f32 %v1927, 0.0
        %v2105 = vmax.f32 %v1929, 0.0
        %v2106 = vmax.f32 %v2040, 0.0
        %v2107 = vmax.f32 %v2042, 0.0
        %v2108 = vmax.f32 %v1931, 0.0
        %v2109 = vmax.f32 %v1933, 0.0
        %v2110 = vmax.f32 %v2044, 0.0
        %v2111 = vmax.f32 %v2046, 0.0
        %v2112 = vld [vmem:[#allocation17] sm:$0xf]
        %v2113 = vld [vmem:[#allocation17 + $0x4] sm:$0xf]
        %v2114 = vld [vmem:[#allocation17 + $0x8] sm:$0xf]
        %v2115 = vld [vmem:[#allocation17 + $0xc] sm:$0xf]
        %v2116 = vld [vmem:[#allocation17 + $0x10] sm:$0xf]
        %v2117 = vld [vmem:[#allocation17 + $0x14] sm:$0xf]
        %v2118 = vld [vmem:[#allocation17 + $0x18] sm:$0xf]
        %v2119 = vld [vmem:[#allocation17 + $0x1c] sm:$0xf]
        %v2120 = vld [vmem:[#allocation17 + $0x20] sm:$0xf]
        %v2121 = vld [vmem:[#allocation17 + $0x24] sm:$0xf]
        %v2122 = vld [vmem:[#allocation17 + $0x28] sm:$0xf]
        %v2123 = vld [vmem:[#allocation17 + $0x2c] sm:$0xf]
        %v2124 = vld [vmem:[#allocation17 + $0x30] sm:$0xf]
        %v2125 = vld [vmem:[#allocation17 + $0x34] sm:$0xf]
        %v2126 = vld [vmem:[#allocation17 + $0x38] sm:$0xf]
        %v2127 = vld [vmem:[#allocation17 + $0x3c] sm:$0xf]
        %v2128 = vld [vmem:[#allocation17 + $0x40] sm:$0xf]
        %v2129 = vld [vmem:[#allocation17 + $0x44] sm:$0xf]
        %v2130 = vld [vmem:[#allocation17 + $0x48] sm:$0xf]
        %v2131 = vld [vmem:[#allocation17 + $0x4c] sm:$0xf]
        %v2132 = vld [vmem:[#allocation17 + $0x50] sm:$0xf]
        %v2133 = vld [vmem:[#allocation17 + $0x54] sm:$0xf]
        %v2134 = vld [vmem:[#allocation17 + $0x58] sm:$0xf]
        %v2135 = vld [vmem:[#allocation17 + $0x5c] sm:$0xf]
        %v2136 = vld [vmem:[#allocation17 + $0x60] sm:$0xf]
        %v2137 = vld [vmem:[#allocation17 + $0x64] sm:$0xf]
        %v2138 = vld [vmem:[#allocation17 + $0x68] sm:$0xf]
        %v2139 = vld [vmem:[#allocation17 + $0x6c] sm:$0xf]
        %v2140 = vld [vmem:[#allocation17 + $0x70] sm:$0xf]
        %v2141 = vld [vmem:[#allocation17 + $0x74] sm:$0xf]
        %v2142 = vld [vmem:[#allocation17 + $0x78] sm:$0xf]
        %v2143 = vld [vmem:[#allocation17 + $0x7c] sm:$0xf]
        %v2144 = vpack.c.bf16 %v2052, %v2048
        %v2145 = vpack.c.bf16 %v2053, %v2049
        %v2146 = vpack.c.bf16 %v2054, %v2050
        %v2147 = vpack.c.bf16 %v2055, %v2051
        %v2148 = vpack.c.bf16 %v2060, %v2056
        %v2149 = vpack.c.bf16 %v2061, %v2057
        %v2150 = vpack.c.bf16 %v2062, %v2058
        %v2151 = vpack.c.bf16 %v2063, %v2059
        %v2152 = vpack.c.bf16 %v2068, %v2064
        %v2153 = vpack.c.bf16 %v2069, %v2065
        %v2154 = vpack.c.bf16 %v2070, %v2066
        %v2155 = vpack.c.bf16 %v2071, %v2067
        %v2156 = vpack.c.bf16 %v2076, %v2072
        %v2157 = vpack.c.bf16 %v2077, %v2073
        %v2158 = vpack.c.bf16 %v2078, %v2074
        %v2159 = vpack.c.bf16 %v2079, %v2075
        %v2160 = vpack.c.bf16 %v2084, %v2080
        %v2161 = vpack.c.bf16 %v2085, %v2081
        %v2162 = vpack.c.bf16 %v2086, %v2082
        %v2163 = vpack.c.bf16 %v2087, %v2083
        %v2164 = vpack.c.bf16 %v2092, %v2088
        %v2165 = vpack.c.bf16 %v2093, %v2089
        %v2166 = vpack.c.bf16 %v2094, %v2090
        %v2167 = vpack.c.bf16 %v2095, %v2091
        %v2168 = vpack.c.bf16 %v2100, %v2096
        %v2169 = vpack.c.bf16 %v2101, %v2097
        %v2170 = vpack.c.bf16 %v2102, %v2098
        %v2171 = vpack.c.bf16 %v2103, %v2099
        %v2172 = vpack.c.bf16 %v2108, %v2104
        %v2173 = vpack.c.bf16 %v2109, %v2105
        %v2174 = vpack.c.bf16 %v2110, %v2106
        %v2175 = vpack.c.bf16 %v2111, %v2107
        %v2176 = vld [vmem:[#allocation19] sm:$0xff]
        %v2177 = vld [vmem:[#allocation19 + $0x8] sm:$0xff]
        %v2178 = vld [vmem:[#allocation19 + $0x10] sm:$0xff]
        %v2179 = vld [vmem:[#allocation19 + $0x18] sm:$0xff]
        %v2180 = vld [vmem:[#allocation19 + $0x20] sm:$0xff]
        %v2181 = vld [vmem:[#allocation19 + $0x28] sm:$0xff]
        %v2182 = vld [vmem:[#allocation19 + $0x30] sm:$0xff]
        %v2183 = vld [vmem:[#allocation19 + $0x38] sm:$0xff]
        %v2184 = vld [vmem:[#allocation19 + $0x40] sm:$0xff]
        %v2185 = vld [vmem:[#allocation19 + $0x48] sm:$0xff]
        %v2186 = vld [vmem:[#allocation19 + $0x50] sm:$0xff]
        %v2187 = vld [vmem:[#allocation19 + $0x58] sm:$0xff]
        %v2188 = vld [vmem:[#allocation19 + $0x60] sm:$0xff]
        %v2189 = vld [vmem:[#allocation19 + $0x68] sm:$0xff]
        %v2190 = vld [vmem:[#allocation19 + $0x70] sm:$0xff]
        %v2191 = vld [vmem:[#allocation19 + $0x78] sm:$0xff]
        %v2192 = vld [vmem:[#allocation19 + $0x80] sm:$0xff]
        %v2193 = vld [vmem:[#allocation19 + $0x88] sm:$0xff]
        %v2194 = vld [vmem:[#allocation19 + $0x90] sm:$0xff]
        %v2195 = vld [vmem:[#allocation19 + $0x98] sm:$0xff]
        %v2196 = vld [vmem:[#allocation19 + $0xa0] sm:$0xff]
        %v2197 = vld [vmem:[#allocation19 + $0xa8] sm:$0xff]
        %v2198 = vld [vmem:[#allocation19 + $0xb0] sm:$0xff]
        %v2199 = vld [vmem:[#allocation19 + $0xb8] sm:$0xff]
        %v2200 = vld [vmem:[#allocation19 + $0xc0] sm:$0xff]
        %v2201 = vld [vmem:[#allocation19 + $0xc8] sm:$0xff]
        %v2202 = vld [vmem:[#allocation19 + $0xd0] sm:$0xff]
        %v2203 = vld [vmem:[#allocation19 + $0xd8] sm:$0xff]
        %v2204 = vld [vmem:[#allocation19 + $0xe0] sm:$0xff]
        %v2205 = vld [vmem:[#allocation19 + $0xe8] sm:$0xff]
        %v2206 = vld [vmem:[#allocation19 + $0xf0] sm:$0xff]
        %v2207 = vld [vmem:[#allocation19 + $0xf8] sm:$0xff]
        %2209 = vset.pattern.permute.xlu0 0
        %2210 = vperm.xlu0 %2209, %v2176
        %v2211 = vpop.permute.xlu0 %2210
        %2214 = vset.pattern.permute.xlu0 0
        %2215 = vperm.xlu0 %2214, %v2177
        %v2216 = vpop.permute.xlu0 %2215
        %2219 = vset.pattern.permute.xlu0 0
        %2220 = vperm.xlu0 %2219, %v2178
        %v2221 = vpop.permute.xlu0 %2220
        %2224 = vset.pattern.permute.xlu0 0
        %2225 = vperm.xlu0 %2224, %v2179
        %v2226 = vpop.permute.xlu0 %2225
        %2229 = vset.pattern.permute.xlu0 0
        %2230 = vperm.xlu0 %2229, %v2180
        %v2231 = vpop.permute.xlu0 %2230
        %2234 = vset.pattern.permute.xlu0 0
        %2235 = vperm.xlu0 %2234, %v2181
        %v2236 = vpop.permute.xlu0 %2235
        %2239 = vset.pattern.permute.xlu0 0
        %2240 = vperm.xlu0 %2239, %v2182
        %v2241 = vpop.permute.xlu0 %2240
        %2244 = vset.pattern.permute.xlu0 0
        %2245 = vperm.xlu0 %2244, %v2183
        %v2246 = vpop.permute.xlu0 %2245
        %2249 = vset.pattern.permute.xlu0 0
        %2250 = vperm.xlu0 %2249, %v2184
        %v2251 = vpop.permute.xlu0 %2250
        %2254 = vset.pattern.permute.xlu0 0
        %2255 = vperm.xlu0 %2254, %v2185
        %v2256 = vpop.permute.xlu0 %2255
        %2259 = vset.pattern.permute.xlu0 0
        %2260 = vperm.xlu0 %2259, %v2186
        %v2261 = vpop.permute.xlu0 %2260
        %2264 = vset.pattern.permute.xlu0 0
        %2265 = vperm.xlu0 %2264, %v2187
        %v2266 = vpop.permute.xlu0 %2265
        %2269 = vset.pattern.permute.xlu0 0
        %2270 = vperm.xlu0 %2269, %v2188
        %v2271 = vpop.permute.xlu0 %2270
        %2274 = vset.pattern.permute.xlu0 0
        %2275 = vperm.xlu0 %2274, %v2189
        %v2276 = vpop.permute.xlu0 %2275
        %2279 = vset.pattern.permute.xlu0 0
        %2280 = vperm.xlu0 %2279, %v2190
        %v2281 = vpop.permute.xlu0 %2280
        %2284 = vset.pattern.permute.xlu0 0
        %2285 = vperm.xlu0 %2284, %v2191
        %v2286 = vpop.permute.xlu0 %2285
        %2289 = vset.pattern.permute.xlu0 0
        %2290 = vperm.xlu0 %2289, %v2192
        %v2291 = vpop.permute.xlu0 %2290
        %2294 = vset.pattern.permute.xlu0 0
        %2295 = vperm.xlu0 %2294, %v2193
        %v2296 = vpop.permute.xlu0 %2295
        %2299 = vset.pattern.permute.xlu0 0
        %2300 = vperm.xlu0 %2299, %v2194
        %v2301 = vpop.permute.xlu0 %2300
        %2304 = vset.pattern.permute.xlu0 0
        %2305 = vperm.xlu0 %2304, %v2195
        %v2306 = vpop.permute.xlu0 %2305
        %2309 = vset.pattern.permute.xlu0 0
        %2310 = vperm.xlu0 %2309, %v2196
        %v2311 = vpop.permute.xlu0 %2310
        %2314 = vset.pattern.permute.xlu0 0
        %2315 = vperm.xlu0 %2314, %v2197
        %v2316 = vpop.permute.xlu0 %2315
        %2319 = vset.pattern.permute.xlu0 0
        %2320 = vperm.xlu0 %2319, %v2198
        %v2321 = vpop.permute.xlu0 %2320
        %2324 = vset.pattern.permute.xlu0 0
        %2325 = vperm.xlu0 %2324, %v2199
        %v2326 = vpop.permute.xlu0 %2325
        %2329 = vset.pattern.permute.xlu0 0
        %2330 = vperm.xlu0 %2329, %v2200
        %v2331 = vpop.permute.xlu0 %2330
        %2334 = vset.pattern.permute.xlu0 0
        %2335 = vperm.xlu0 %2334, %v2201
        %v2336 = vpop.permute.xlu0 %2335
        %2339 = vset.pattern.permute.xlu0 0
        %2340 = vperm.xlu0 %2339, %v2202
        %v2341 = vpop.permute.xlu0 %2340
        %2344 = vset.pattern.permute.xlu0 0
        %2345 = vperm.xlu0 %2344, %v2203
        %v2346 = vpop.permute.xlu0 %2345
        %2349 = vset.pattern.permute.xlu0 0
        %2350 = vperm.xlu0 %2349, %v2204
        %v2351 = vpop.permute.xlu0 %2350
        %2354 = vset.pattern.permute.xlu0 0
        %2355 = vperm.xlu0 %2354, %v2205
        %v2356 = vpop.permute.xlu0 %2355
        %2359 = vset.pattern.permute.xlu0 0
        %2360 = vperm.xlu0 %2359, %v2206
        %v2361 = vpop.permute.xlu0 %2360
        %2364 = vset.pattern.permute.xlu0 0
        %2365 = vperm.xlu0 %2364, %v2207
        %v2366 = vpop.permute.xlu0 %2365
        %v2400 = vunpack.c.l.b16 %v2112
        %v2401 = vunpack.c.l.b16 %v2113
        %v2402 = vunpack.c.l.b16 %v2114
        %v2403 = vunpack.c.l.b16 %v2115
        %v2404 = vunpack.c.l.b16 %v2116
        %v2405 = vunpack.c.l.b16 %v2117
        %v2406 = vunpack.c.l.b16 %v2118
        %v2407 = vunpack.c.l.b16 %v2119
        %v2408 = vunpack.c.l.b16 %v2120
        %v2409 = vunpack.c.l.b16 %v2121
        %v2410 = vunpack.c.l.b16 %v2122
        %v2411 = vunpack.c.l.b16 %v2123
        %v2412 = vunpack.c.l.b16 %v2124
        %v2413 = vunpack.c.l.b16 %v2125
        %v2414 = vunpack.c.l.b16 %v2126
        %v2415 = vunpack.c.l.b16 %v2127
        %v2416 = vunpack.c.l.b16 %v2128
        %v2417 = vunpack.c.l.b16 %v2129
        %v2418 = vunpack.c.l.b16 %v2130
        %v2419 = vunpack.c.l.b16 %v2131
        %v2420 = vunpack.c.l.b16 %v2132
        %v2421 = vunpack.c.l.b16 %v2133
        %v2422 = vunpack.c.l.b16 %v2134
        %v2423 = vunpack.c.l.b16 %v2135
        %v2424 = vunpack.c.l.b16 %v2136
        %v2425 = vunpack.c.l.b16 %v2137
        %v2426 = vunpack.c.l.b16 %v2138
        %v2427 = vunpack.c.l.b16 %v2139
        %v2428 = vunpack.c.l.b16 %v2140
        %v2429 = vunpack.c.l.b16 %v2141
        %v2430 = vunpack.c.l.b16 %v2142
        %v2431 = vunpack.c.l.b16 %v2143
        %v2432 = vpack.c.b16 %v2401, %v2400
        %v2433 = vpack.c.b16 %v2403, %v2402
        %v2434 = vpack.c.b16 %v2405, %v2404
        %v2435 = vpack.c.b16 %v2407, %v2406
        %v2436 = vpack.c.b16 %v2409, %v2408
        %v2437 = vpack.c.b16 %v2411, %v2410
        %v2438 = vpack.c.b16 %v2413, %v2412
        %v2439 = vpack.c.b16 %v2415, %v2414
        %v2440 = vpack.c.b16 %v2417, %v2416
        %v2441 = vpack.c.b16 %v2419, %v2418
        %v2442 = vpack.c.b16 %v2421, %v2420
        %v2443 = vpack.c.b16 %v2423, %v2422
        %v2444 = vpack.c.b16 %v2425, %v2424
        %v2445 = vpack.c.b16 %v2427, %v2426
        %v2446 = vpack.c.b16 %v2429, %v2428
        %v2447 = vpack.c.b16 %v2431, %v2430
        %2464 = vmatprep.subr.bf16.mxu0 %v2145
        %2465 = vmatpush1.bf16.msra.mxu0 %v2144
        %2466 = vmatprep.subr.bf16.mxu0 %v2149
        %2467 = vmatpush1.bf16.msra.mxu0 %v2148
        %2468 = vmatprep.subr.bf16.mxu0 %v2153
        %2469 = vmatpush1.bf16.msra.mxu0 %v2152
        %2470 = vmatprep.subr.bf16.mxu0 %v2157
        %2471 = vmatpush1.bf16.msra.mxu0 %v2156
        %2472 = vmatprep.subr.bf16.mxu0 %v2161
        %2473 = vmatpush1.bf16.msra.mxu0 %v2160
        %2474 = vmatprep.subr.bf16.mxu0 %v2165
        %2475 = vmatpush1.bf16.msra.mxu0 %v2164
        %2476 = vmatprep.subr.bf16.mxu0 %v2169
        %2477 = vmatpush1.bf16.msra.mxu0 %v2168
        %2478 = vmatprep.subr.bf16.mxu0 %v2173
        %2479 = vmatpush1.bf16.msra.mxu0 %v2172
        %2480 = vmatprep.subr.bf16.mxu0 0
        %2481 = vmatpush1.bf16.msra.mxu0 0
        %2482 = vmatprep.subr.bf16.mxu0 0
        %2483 = vmatpush1.bf16.msra.mxu0 0
        %2484 = vmatprep.subr.bf16.mxu0 0
        %2485 = vmatpush1.bf16.msra.mxu0 0
        %2486 = vmatprep.subr.bf16.mxu0 0
        %2487 = vmatpush1.bf16.msra.mxu0 0
        %2488 = vmatprep.subr.bf16.mxu0 0
        %2489 = vmatpush1.bf16.msra.mxu0 0
        %2490 = vmatprep.subr.bf16.mxu0 0
        %2491 = vmatpush1.bf16.msra.mxu0 0
        %2492 = vmatprep.subr.bf16.mxu0 0
        %2493 = vmatpush1.bf16.msra.mxu0 0
        %2494 = vmatprep.subr.bf16.mxu0 0
        %2495 = vmatpush1.bf16.msra.mxu0 0
        %2496 = vmatprep.mubr.bf16.mxu0 0
        %2497 = vmatmul.mubr.bf16.gmra.mrb[0].mxu0 %v2432
        %v2498 = vpop.f32.mrb[0].mxu0
        %v2499 = vadd.f32 %v2211, %v2498
        %v2500 = vpop.f32.mrb[0].mxu0
        %v2501 = vadd.f32 %v2211, %v2500
        %v2502 = vpop.f32.mrb[0].mxu0
        %v2503 = vadd.f32 %v2216, %v2502
        %v2504 = vpop.f32.mrb[0].mxu0
        %v2505 = vadd.f32 %v2216, %v2504
        %2506 = vmatprep.mubr.bf16.mxu0 0
        %2507 = vmatmul.mubr.bf16.gmra.mrb[0].mxu0 %v2433
        %v2508 = vpop.f32.mrb[0].mxu0
        %v2509 = vadd.f32 %v2221, %v2508
        %v2510 = vpop.f32.mrb[0].mxu0
        %v2511 = vadd.f32 %v2221, %v2510
        %v2512 = vpop.f32.mrb[0].mxu0
        %v2513 = vadd.f32 %v2226, %v2512
        %v2514 = vpop.f32.mrb[0].mxu0
        %v2515 = vadd.f32 %v2226, %v2514
        %2516 = vmatprep.mubr.bf16.mxu0 0
        %2517 = vmatmul.mubr.bf16.gmra.mrb[0].mxu0 %v2434
        %v2518 = vpop.f32.mrb[0].mxu0
        %v2519 = vadd.f32 %v2231, %v2518
        %v2520 = vpop.f32.mrb[0].mxu0
        %v2521 = vadd.f32 %v2231, %v2520
        %v2522 = vpop.f32.mrb[0].mxu0
        %v2523 = vadd.f32 %v2236, %v2522
        %v2524 = vpop.f32.mrb[0].mxu0
        %v2525 = vadd.f32 %v2236, %v2524
        %2526 = vmatprep.mubr.bf16.mxu0 0
        %2527 = vmatmul.mubr.bf16.gmra.mrb[0].mxu0 %v2435
        %v2528 = vpop.f32.mrb[0].mxu0
        %v2529 = vadd.f32 %v2241, %v2528
        %v2530 = vpop.f32.mrb[0].mxu0
        %v2531 = vadd.f32 %v2241, %v2530
        %v2532 = vpop.f32.mrb[0].mxu0
        %v2533 = vadd.f32 %v2246, %v2532
        %v2534 = vpop.f32.mrb[0].mxu0
        %v2535 = vadd.f32 %v2246, %v2534
        %2536 = vmatprep.mubr.bf16.mxu0 0
        %2537 = vmatmul.mubr.bf16.gmra.mrb[0].mxu0 %v2436
        %v2538 = vpop.f32.mrb[0].mxu0
        %v2539 = vadd.f32 %v2251, %v2538
        %v2540 = vpop.f32.mrb[0].mxu0
        %v2541 = vadd.f32 %v2251, %v2540
        %v2542 = vpop.f32.mrb[0].mxu0
        %v2543 = vadd.f32 %v2256, %v2542
        %v2544 = vpop.f32.mrb[0].mxu0
        %v2545 = vadd.f32 %v2256, %v2544
        %2546 = vmatprep.mubr.bf16.mxu0 0
        %2547 = vmatmul.mubr.bf16.gmra.mrb[0].mxu0 %v2437
        %v2548 = vpop.f32.mrb[0].mxu0
        %v2549 = vadd.f32 %v2261, %v2548
        %v2550 = vpop.f32.mrb[0].mxu0
        %v2551 = vadd.f32 %v2261, %v2550
        %v2552 = vpop.f32.mrb[0].mxu0
        %v2553 = vadd.f32 %v2266, %v2552
        %v2554 = vpop.f32.mrb[0].mxu0
        %v2555 = vadd.f32 %v2266, %v2554
        %2556 = vmatprep.mubr.bf16.mxu0 0
        %2557 = vmatmul.mubr.bf16.gmra.mrb[0].mxu0 %v2438
        %v2558 = vpop.f32.mrb[0].mxu0
        %v2559 = vadd.f32 %v2271, %v2558
        %v2560 = vpop.f32.mrb[0].mxu0
        %v2561 = vadd.f32 %v2271, %v2560
        %v2562 = vpop.f32.mrb[0].mxu0
        %v2563 = vadd.f32 %v2276, %v2562
        %v2564 = vpop.f32.mrb[0].mxu0
        %v2565 = vadd.f32 %v2276, %v2564
        %2566 = vmatprep.mubr.bf16.mxu0 0
        %2567 = vmatmul.mubr.bf16.gmra.mrb[0].mxu0 %v2439
        %v2568 = vpop.f32.mrb[0].mxu0
        %v2569 = vadd.f32 %v2281, %v2568
        %v2570 = vpop.f32.mrb[0].mxu0
        %v2571 = vadd.f32 %v2281, %v2570
        %v2572 = vpop.f32.mrb[0].mxu0
        %v2573 = vadd.f32 %v2286, %v2572
        %v2574 = vpop.f32.mrb[0].mxu0
        %v2575 = vadd.f32 %v2286, %v2574
        %2576 = vmatprep.mubr.bf16.mxu0 0
        %2577 = vmatmul.mubr.bf16.gmra.mrb[0].mxu0 %v2440
        %v2578 = vpop.f32.mrb[0].mxu0
        %v2579 = vadd.f32 %v2291, %v2578
        %v2580 = vpop.f32.mrb[0].mxu0
        %v2581 = vadd.f32 %v2291, %v2580
        %v2582 = vpop.f32.mrb[0].mxu0
        %v2583 = vadd.f32 %v2296, %v2582
        %v2584 = vpop.f32.mrb[0].mxu0
        %v2585 = vadd.f32 %v2296, %v2584
        %2586 = vmatprep.mubr.bf16.mxu0 0
        %2587 = vmatmul.mubr.bf16.gmra.mrb[0].mxu0 %v2441
        %v2588 = vpop.f32.mrb[0].mxu0
        %v2589 = vadd.f32 %v2301, %v2588
        %v2590 = vpop.f32.mrb[0].mxu0
        %v2591 = vadd.f32 %v2301, %v2590
        %v2592 = vpop.f32.mrb[0].mxu0
        %v2593 = vadd.f32 %v2306, %v2592
        %v2594 = vpop.f32.mrb[0].mxu0
        %v2595 = vadd.f32 %v2306, %v2594
        %2596 = vmatprep.mubr.bf16.mxu0 0
        %2597 = vmatmul.mubr.bf16.gmra.mrb[0].mxu0 %v2442
        %v2598 = vpop.f32.mrb[0].mxu0
        %v2599 = vadd.f32 %v2311, %v2598
        %v2600 = vpop.f32.mrb[0].mxu0
        %v2601 = vadd.f32 %v2311, %v2600
        %v2602 = vpop.f32.mrb[0].mxu0
        %v2603 = vadd.f32 %v2316, %v2602
        %v2604 = vpop.f32.mrb[0].mxu0
        %v2605 = vadd.f32 %v2316, %v2604
        %2606 = vmatprep.mubr.bf16.mxu0 0
        %2607 = vmatmul.mubr.bf16.gmra.mrb[0].mxu0 %v2443
        %v2608 = vpop.f32.mrb[0].mxu0
        %v2609 = vadd.f32 %v2321, %v2608
        %v2610 = vpop.f32.mrb[0].mxu0
        %v2611 = vadd.f32 %v2321, %v2610
        %v2612 = vpop.f32.mrb[0].mxu0
        %v2613 = vadd.f32 %v2326, %v2612
        %v2614 = vpop.f32.mrb[0].mxu0
        %v2615 = vadd.f32 %v2326, %v2614
        %2616 = vmatprep.mubr.bf16.mxu0 0
        %2617 = vmatmul.mubr.bf16.gmra.mrb[0].mxu0 %v2444
        %v2618 = vpop.f32.mrb[0].mxu0
        %v2619 = vadd.f32 %v2331, %v2618
        %v2620 = vpop.f32.mrb[0].mxu0
        %v2621 = vadd.f32 %v2331, %v2620
        %v2622 = vpop.f32.mrb[0].mxu0
        %v2623 = vadd.f32 %v2336, %v2622
        %v2624 = vpop.f32.mrb[0].mxu0
        %v2625 = vadd.f32 %v2336, %v2624
        %2626 = vmatprep.mubr.bf16.mxu0 0
        %2627 = vmatmul.mubr.bf16.gmra.mrb[0].mxu0 %v2445
        %v2628 = vpop.f32.mrb[0].mxu0
        %v2629 = vadd.f32 %v2341, %v2628
        %v2630 = vpop.f32.mrb[0].mxu0
        %v2631 = vadd.f32 %v2341, %v2630
        %v2632 = vpop.f32.mrb[0].mxu0
        %v2633 = vadd.f32 %v2346, %v2632
        %v2634 = vpop.f32.mrb[0].mxu0
        %v2635 = vadd.f32 %v2346, %v2634
        %2636 = vmatprep.mubr.bf16.mxu0 0
        %2637 = vmatmul.mubr.bf16.gmra.mrb[0].mxu0 %v2446
        %v2638 = vpop.f32.mrb[0].mxu0
        %v2639 = vadd.f32 %v2351, %v2638
        %v2640 = vpop.f32.mrb[0].mxu0
        %v2641 = vadd.f32 %v2351, %v2640
        %v2642 = vpop.f32.mrb[0].mxu0
        %v2643 = vadd.f32 %v2356, %v2642
        %v2644 = vpop.f32.mrb[0].mxu0
        %v2645 = vadd.f32 %v2356, %v2644
        %2646 = vmatprep.mubr.bf16.mxu0 0
        %2647 = vmatmul.mubr.bf16.gmra.mrb[0].mxu0 %v2447
        %v2648 = vpop.f32.mrb[0].mxu0
        %v2649 = vadd.f32 %v2361, %v2648
        %v2650 = vpop.f32.mrb[0].mxu0
        %v2651 = vadd.f32 %v2361, %v2650
        %v2652 = vpop.f32.mrb[0].mxu0
        %v2653 = vadd.f32 %v2366, %v2652
        %v2654 = vpop.f32.mrb[0].mxu0
        %v2655 = vadd.f32 %v2366, %v2654
        %2656 = vdwg.mxu0
        %2657 = vmatprep.subr.bf16.mxu0 %v2147
        %2658 = vmatpush1.bf16.msra.mxu0 %v2146
        %2659 = vmatprep.subr.bf16.mxu0 %v2151
        %2660 = vmatpush1.bf16.msra.mxu0 %v2150
        %2661 = vmatprep.subr.bf16.mxu0 %v2155
        %2662 = vmatpush1.bf16.msra.mxu0 %v2154
        %2663 = vmatprep.subr.bf16.mxu0 %v2159
        %2664 = vmatpush1.bf16.msra.mxu0 %v2158
        %2665 = vmatprep.subr.bf16.mxu0 %v2163
        %2666 = vmatpush1.bf16.msra.mxu0 %v2162
        %2667 = vmatprep.subr.bf16.mxu0 %v2167
        %2668 = vmatpush1.bf16.msra.mxu0 %v2166
        %2669 = vmatprep.subr.bf16.mxu0 %v2171
        %2670 = vmatpush1.bf16.msra.mxu0 %v2170
        %2671 = vmatprep.subr.bf16.mxu0 %v2175
        %2672 = vmatpush1.bf16.msra.mxu0 %v2174
        %2673 = vmatprep.subr.bf16.mxu0 0
        %2674 = vmatpush1.bf16.msra.mxu0 0
        %2675 = vmatprep.subr.bf16.mxu0 0
        %2676 = vmatpush1.bf16.msra.mxu0 0
        %2677 = vmatprep.subr.bf16.mxu0 0
        %2678 = vmatpush1.bf16.msra.mxu0 0
        %2679 = vmatprep.subr.bf16.mxu0 0
        %2680 = vmatpush1.bf16.msra.mxu0 0
        %2681 = vmatprep.subr.bf16.mxu0 0
        %2682 = vmatpush1.bf16.msra.mxu0 0
        %2683 = vmatprep.subr.bf16.mxu0 0
        %2684 = vmatpush1.bf16.msra.mxu0 0
        %2685 = vmatprep.subr.bf16.mxu0 0
        %2686 = vmatpush1.bf16.msra.mxu0 0
        %2687 = vmatprep.subr.bf16.mxu0 0
        %2688 = vmatpush1.bf16.msra.mxu0 0
        %2689 = vmatprep.mubr.bf16.mxu0 0
        %2690 = vmatmul.mubr.bf16.gmra.mrb[0].mxu0 %v2432
        %v2691 = vpop.f32.mrb[0].mxu0
        %v2692 = vadd.f32 %v2211, %v2691
        %v2693 = vpop.f32.mrb[0].mxu0
        %v2694 = vadd.f32 %v2211, %v2693
        %v2695 = vpop.f32.mrb[0].mxu0
        %v2696 = vadd.f32 %v2216, %v2695
        %v2697 = vpop.f32.mrb[0].mxu0
        %v2698 = vadd.f32 %v2216, %v2697
        %2699 = vmatprep.mubr.bf16.mxu0 0
        %2700 = vmatmul.mubr.bf16.gmra.mrb[0].mxu0 %v2433
        %v2701 = vpop.f32.mrb[0].mxu0
        %v2702 = vadd.f32 %v2221, %v2701
        %v2703 = vpop.f32.mrb[0].mxu0
        %v2704 = vadd.f32 %v2221, %v2703
        %v2705 = vpop.f32.mrb[0].mxu0
        %v2706 = vadd.f32 %v2226, %v2705
        %v2707 = vpop.f32.mrb[0].mxu0
        %v2708 = vadd.f32 %v2226, %v2707
        %2709 = vmatprep.mubr.bf16.mxu0 0
        %2710 = vmatmul.mubr.bf16.gmra.mrb[0].mxu0 %v2434
        %v2711 = vpop.f32.mrb[0].mxu0
        %v2712 = vadd.f32 %v2231, %v2711
        %v2713 = vpop.f32.mrb[0].mxu0
        %v2714 = vadd.f32 %v2231, %v2713
        %v2715 = vpop.f32.mrb[0].mxu0
        %v2716 = vadd.f32 %v2236, %v2715
        %v2717 = vpop.f32.mrb[0].mxu0
        %v2718 = vadd.f32 %v2236, %v2717
        %2719 = vmatprep.mubr.bf16.mxu0 0
        %2720 = vmatmul.mubr.bf16.gmra.mrb[0].mxu0 %v2435
        %v2721 = vpop.f32.mrb[0].mxu0
        %v2722 = vadd.f32 %v2241, %v2721
        %v2723 = vpop.f32.mrb[0].mxu0
        %v2724 = vadd.f32 %v2241, %v2723
        %v2725 = vpop.f32.mrb[0].mxu0
        %v2726 = vadd.f32 %v2246, %v2725
        %v2727 = vpop.f32.mrb[0].mxu0
        %v2728 = vadd.f32 %v2246, %v2727
        %2729 = vmatprep.mubr.bf16.mxu0 0
        %2730 = vmatmul.mubr.bf16.gmra.mrb[0].mxu0 %v2436
        %v2731 = vpop.f32.mrb[0].mxu0
        %v2732 = vadd.f32 %v2251, %v2731
        %v2733 = vpop.f32.mrb[0].mxu0
        %v2734 = vadd.f32 %v2251, %v2733
        %v2735 = vpop.f32.mrb[0].mxu0
        %v2736 = vadd.f32 %v2256, %v2735
        %v2737 = vpop.f32.mrb[0].mxu0
        %v2738 = vadd.f32 %v2256, %v2737
        %2739 = vmatprep.mubr.bf16.mxu0 0
        %2740 = vmatmul.mubr.bf16.gmra.mrb[0].mxu0 %v2437
        %v2741 = vpop.f32.mrb[0].mxu0
        %v2742 = vadd.f32 %v2261, %v2741
        %v2743 = vpop.f32.mrb[0].mxu0
        %v2744 = vadd.f32 %v2261, %v2743
        %v2745 = vpop.f32.mrb[0].mxu0
        %v2746 = vadd.f32 %v2266, %v2745
        %v2747 = vpop.f32.mrb[0].mxu0
        %v2748 = vadd.f32 %v2266, %v2747
        %2749 = vmatprep.mubr.bf16.mxu0 0
        %2750 = vmatmul.mubr.bf16.gmra.mrb[0].mxu0 %v2438
        %v2751 = vpop.f32.mrb[0].mxu0
        %v2752 = vadd.f32 %v2271, %v2751
        %v2753 = vpop.f32.mrb[0].mxu0
        %v2754 = vadd.f32 %v2271, %v2753
        %v2755 = vpop.f32.mrb[0].mxu0
        %v2756 = vadd.f32 %v2276, %v2755
        %v2757 = vpop.f32.mrb[0].mxu0
        %v2758 = vadd.f32 %v2276, %v2757
        %2759 = vmatprep.mubr.bf16.mxu0 0
        %2760 = vmatmul.mubr.bf16.gmra.mrb[0].mxu0 %v2439
        %v2761 = vpop.f32.mrb[0].mxu0
        %v2762 = vadd.f32 %v2281, %v2761
        %v2763 = vpop.f32.mrb[0].mxu0
        %v2764 = vadd.f32 %v2281, %v2763
        %v2765 = vpop.f32.mrb[0].mxu0
        %v2766 = vadd.f32 %v2286, %v2765
        %v2767 = vpop.f32.mrb[0].mxu0
        %v2768 = vadd.f32 %v2286, %v2767
        %2769 = vmatprep.mubr.bf16.mxu0 0
        %2770 = vmatmul.mubr.bf16.gmra.mrb[0].mxu0 %v2440
        %v2771 = vpop.f32.mrb[0].mxu0
        %v2772 = vadd.f32 %v2291, %v2771
        %v2773 = vpop.f32.mrb[0].mxu0
        %v2774 = vadd.f32 %v2291, %v2773
        %v2775 = vpop.f32.mrb[0].mxu0
        %v2776 = vadd.f32 %v2296, %v2775
        %v2777 = vpop.f32.mrb[0].mxu0
        %v2778 = vadd.f32 %v2296, %v2777
        %2779 = vmatprep.mubr.bf16.mxu0 0
        %2780 = vmatmul.mubr.bf16.gmra.mrb[0].mxu0 %v2441
        %v2781 = vpop.f32.mrb[0].mxu0
        %v2782 = vadd.f32 %v2301, %v2781
        %v2783 = vpop.f32.mrb[0].mxu0
        %v2784 = vadd.f32 %v2301, %v2783
        %v2785 = vpop.f32.mrb[0].mxu0
        %v2786 = vadd.f32 %v2306, %v2785
        %v2787 = vpop.f32.mrb[0].mxu0
        %v2788 = vadd.f32 %v2306, %v2787
        %2789 = vmatprep.mubr.bf16.mxu0 0
        %2790 = vmatmul.mubr.bf16.gmra.mrb[0].mxu0 %v2442
        %v2791 = vpop.f32.mrb[0].mxu0
        %v2792 = vadd.f32 %v2311, %v2791
        %v2793 = vpop.f32.mrb[0].mxu0
        %v2794 = vadd.f32 %v2311, %v2793
        %v2795 = vpop.f32.mrb[0].mxu0
        %v2796 = vadd.f32 %v2316, %v2795
        %v2797 = vpop.f32.mrb[0].mxu0
        %v2798 = vadd.f32 %v2316, %v2797
        %2799 = vmatprep.mubr.bf16.mxu0 0
        %2800 = vmatmul.mubr.bf16.gmra.mrb[0].mxu0 %v2443
        %v2801 = vpop.f32.mrb[0].mxu0
        %v2802 = vadd.f32 %v2321, %v2801
        %v2803 = vpop.f32.mrb[0].mxu0
        %v2804 = vadd.f32 %v2321, %v2803
        %v2805 = vpop.f32.mrb[0].mxu0
        %v2806 = vadd.f32 %v2326, %v2805
        %v2807 = vpop.f32.mrb[0].mxu0
        %v2808 = vadd.f32 %v2326, %v2807
        %2809 = vmatprep.mubr.bf16.mxu0 0
        %2810 = vmatmul.mubr.bf16.gmra.mrb[0].mxu0 %v2444
        %v2811 = vpop.f32.mrb[0].mxu0
        %v2812 = vadd.f32 %v2331, %v2811
        %v2813 = vpop.f32.mrb[0].mxu0
        %v2814 = vadd.f32 %v2331, %v2813
        %v2815 = vpop.f32.mrb[0].mxu0
        %v2816 = vadd.f32 %v2336, %v2815
        %v2817 = vpop.f32.mrb[0].mxu0
        %v2818 = vadd.f32 %v2336, %v2817
        %2819 = vmatprep.mubr.bf16.mxu0 0
        %2820 = vmatmul.mubr.bf16.gmra.mrb[0].mxu0 %v2445
        %v2821 = vpop.f32.mrb[0].mxu0
        %v2822 = vadd.f32 %v2341, %v2821
        %v2823 = vpop.f32.mrb[0].mxu0
        %v2824 = vadd.f32 %v2341, %v2823
        %v2825 = vpop.f32.mrb[0].mxu0
        %v2826 = vadd.f32 %v2346, %v2825
        %v2827 = vpop.f32.mrb[0].mxu0
        %v2828 = vadd.f32 %v2346, %v2827
        %2829 = vmatprep.mubr.bf16.mxu0 0
        %2830 = vmatmul.mubr.bf16.gmra.mrb[0].mxu0 %v2446
        %v2831 = vpop.f32.mrb[0].mxu0
        %v2832 = vadd.f32 %v2351, %v2831
        %v2833 = vpop.f32.mrb[0].mxu0
        %v2834 = vadd.f32 %v2351, %v2833
        %v2835 = vpop.f32.mrb[0].mxu0
        %v2836 = vadd.f32 %v2356, %v2835
        %v2837 = vpop.f32.mrb[0].mxu0
        %v2838 = vadd.f32 %v2356, %v2837
        %2839 = vmatprep.mubr.bf16.mxu0 0
        %2840 = vmatmul.mubr.bf16.gmra.mrb[0].mxu0 %v2447
        %v2841 = vpop.f32.mrb[0].mxu0
        %v2842 = vadd.f32 %v2361, %v2841
        %v2843 = vpop.f32.mrb[0].mxu0
        %v2844 = vadd.f32 %v2361, %v2843
        %v2845 = vpop.f32.mrb[0].mxu0
        %v2846 = vadd.f32 %v2366, %v2845
        %v2847 = vpop.f32.mrb[0].mxu0
        %v2848 = vadd.f32 %v2366, %v2847
        %2849 = vdwg.mxu0
        %v2850 = vmax.f32 %v2499, 0.0
        %v2851 = vmax.f32 %v2501, 0.0
        %v2852 = vmax.f32 %v2692, 0.0
        %v2853 = vmax.f32 %v2694, 0.0
        %v2854 = vmax.f32 %v2503, 0.0
        %v2855 = vmax.f32 %v2505, 0.0
        %v2856 = vmax.f32 %v2696, 0.0
        %v2857 = vmax.f32 %v2698, 0.0
        %v2858 = vmax.f32 %v2509, 0.0
        %v2859 = vmax.f32 %v2511, 0.0
        %v2860 = vmax.f32 %v2702, 0.0
        %v2861 = vmax.f32 %v2704, 0.0
        %v2862 = vmax.f32 %v2513, 0.0
        %v2863 = vmax.f32 %v2515, 0.0
        %v2864 = vmax.f32 %v2706, 0.0
        %v2865 = vmax.f32 %v2708, 0.0
        %v2866 = vmax.f32 %v2519, 0.0
        %v2867 = vmax.f32 %v2521, 0.0
        %v2868 = vmax.f32 %v2712, 0.0
        %v2869 = vmax.f32 %v2714, 0.0
        %v2870 = vmax.f32 %v2523, 0.0
        %v2871 = vmax.f32 %v2525, 0.0
        %v2872 = vmax.f32 %v2716, 0.0
        %v2873 = vmax.f32 %v2718, 0.0
        %v2874 = vmax.f32 %v2529, 0.0
        %v2875 = vmax.f32 %v2531, 0.0
        %v2876 = vmax.f32 %v2722, 0.0
        %v2877 = vmax.f32 %v2724, 0.0
        %v2878 = vmax.f32 %v2533, 0.0
        %v2879 = vmax.f32 %v2535, 0.0
        %v2880 = vmax.f32 %v2726, 0.0
        %v2881 = vmax.f32 %v2728, 0.0
        %v2882 = vmax.f32 %v2539, 0.0
        %v2883 = vmax.f32 %v2541, 0.0
        %v2884 = vmax.f32 %v2732, 0.0
        %v2885 = vmax.f32 %v2734, 0.0
        %v2886 = vmax.f32 %v2543, 0.0
        %v2887 = vmax.f32 %v2545, 0.0
        %v2888 = vmax.f32 %v2736, 0.0
        %v2889 = vmax.f32 %v2738, 0.0
        %v2890 = vmax.f32 %v2549, 0.0
        %v2891 = vmax.f32 %v2551, 0.0
        %v2892 = vmax.f32 %v2742, 0.0
        %v2893 = vmax.f32 %v2744, 0.0
        %v2894 = vmax.f32 %v2553, 0.0
        %v2895 = vmax.f32 %v2555, 0.0
        %v2896 = vmax.f32 %v2746, 0.0
        %v2897 = vmax.f32 %v2748, 0.0
        %v2898 = vmax.f32 %v2559, 0.0
        %v2899 = vmax.f32 %v2561, 0.0
        %v2900 = vmax.f32 %v2752, 0.0
        %v2901 = vmax.f32 %v2754, 0.0
        %v2902 = vmax.f32 %v2563, 0.0
        %v2903 = vmax.f32 %v2565, 0.0
        %v2904 = vmax.f32 %v2756, 0.0
        %v2905 = vmax.f32 %v2758, 0.0
        %v2906 = vmax.f32 %v2569, 0.0
        %v2907 = vmax.f32 %v2571, 0.0
        %v2908 = vmax.f32 %v2762, 0.0
        %v2909 = vmax.f32 %v2764, 0.0
        %v2910 = vmax.f32 %v2573, 0.0
        %v2911 = vmax.f32 %v2575, 0.0
        %v2912 = vmax.f32 %v2766, 0.0
        %v2913 = vmax.f32 %v2768, 0.0
        %v2914 = vmax.f32 %v2579, 0.0
        %v2915 = vmax.f32 %v2581, 0.0
        %v2916 = vmax.f32 %v2772, 0.0
        %v2917 = vmax.f32 %v2774, 0.0
        %v2918 = vmax.f32 %v2583, 0.0
        %v2919 = vmax.f32 %v2585, 0.0
        %v2920 = vmax.f32 %v2776, 0.0
        %v2921 = vmax.f32 %v2778, 0.0
        %v2922 = vmax.f32 %v2589, 0.0
        %v2923 = vmax.f32 %v2591, 0.0
        %v2924 = vmax.f32 %v2782, 0.0
        %v2925 = vmax.f32 %v2784, 0.0
        %v2926 = vmax.f32 %v2593, 0.0
        %v2927 = vmax.f32 %v2595, 0.0
        %v2928 = vmax.f32 %v2786, 0.0
        %v2929 = vmax.f32 %v2788, 0.0
        %v2930 = vmax.f32 %v2599, 0.0
        %v2931 = vmax.f32 %v2601, 0.0
        %v2932 = vmax.f32 %v2792, 0.0
        %v2933 = vmax.f32 %v2794, 0.0
        %v2934 = vmax.f32 %v2603, 0.0
        %v2935 = vmax.f32 %v2605, 0.0
        %v2936 = vmax.f32 %v2796, 0.0
        %v2937 = vmax.f32 %v2798, 0.0
        %v2938 = vmax.f32 %v2609, 0.0
        %v2939 = vmax.f32 %v2611, 0.0
        %v2940 = vmax.f32 %v2802, 0.0
        %v2941 = vmax.f32 %v2804, 0.0
        %v2942 = vmax.f32 %v2613, 0.0
        %v2943 = vmax.f32 %v2615, 0.0
        %v2944 = vmax.f32 %v2806, 0.0
        %v2945 = vmax.f32 %v2808, 0.0
        %v2946 = vmax.f32 %v2619, 0.0
        %v2947 = vmax.f32 %v2621, 0.0
        %v2948 = vmax.f32 %v2812, 0.0
        %v2949 = vmax.f32 %v2814, 0.0
        %v2950 = vmax.f32 %v2623, 0.0
        %v2951 = vmax.f32 %v2625, 0.0
        %v2952 = vmax.f32 %v2816, 0.0
        %v2953 = vmax.f32 %v2818, 0.0
        %v2954 = vmax.f32 %v2629, 0.0
        %v2955 = vmax.f32 %v2631, 0.0
        %v2956 = vmax.f32 %v2822, 0.0
        %v2957 = vmax.f32 %v2824, 0.0
        %v2958 = vmax.f32 %v2633, 0.0
        %v2959 = vmax.f32 %v2635, 0.0
        %v2960 = vmax.f32 %v2826, 0.0
        %v2961 = vmax.f32 %v2828, 0.0
        %v2962 = vmax.f32 %v2639, 0.0
        %v2963 = vmax.f32 %v2641, 0.0
        %v2964 = vmax.f32 %v2832, 0.0
        %v2965 = vmax.f32 %v2834, 0.0
        %v2966 = vmax.f32 %v2643, 0.0
        %v2967 = vmax.f32 %v2645, 0.0
        %v2968 = vmax.f32 %v2836, 0.0
        %v2969 = vmax.f32 %v2838, 0.0
        %v2970 = vmax.f32 %v2649, 0.0
        %v2971 = vmax.f32 %v2651, 0.0
        %v2972 = vmax.f32 %v2842, 0.0
        %v2973 = vmax.f32 %v2844, 0.0
        %v2974 = vmax.f32 %v2653, 0.0
        %v2975 = vmax.f32 %v2655, 0.0
        %v2976 = vmax.f32 %v2846, 0.0
        %v2977 = vmax.f32 %v2848, 0.0
        %2978 = vst [vmem:[%s565] sm:$0xff] %v2850
        %2979 = vst [vmem:[%s565 + $0x8] sm:$0xff] %v2851
        %2980 = vst [vmem:[%s565 + $0x10] sm:$0xff] %v2852
        %2981 = vst [vmem:[%s565 + $0x18] sm:$0xff] %v2853
        %2982 = vst [vmem:[%s565 + $0x20] sm:$0xff] %v2854
        %2983 = vst [vmem:[%s565 + $0x28] sm:$0xff] %v2855
        %2984 = vst [vmem:[%s565 + $0x30] sm:$0xff] %v2856
        %2985 = vst [vmem:[%s565 + $0x38] sm:$0xff] %v2857
        %2986 = vst [vmem:[%s565 + $0x40] sm:$0xff] %v2858
        %2987 = vst [vmem:[%s565 + $0x48] sm:$0xff] %v2859
        %2988 = vst [vmem:[%s565 + $0x50] sm:$0xff] %v2860
        %2989 = vst [vmem:[%s565 + $0x58] sm:$0xff] %v2861
        %2990 = vst [vmem:[%s565 + $0x60] sm:$0xff] %v2862
        %2991 = vst [vmem:[%s565 + $0x68] sm:$0xff] %v2863
        %2992 = vst [vmem:[%s565 + $0x70] sm:$0xff] %v2864
        %2993 = vst [vmem:[%s565 + $0x78] sm:$0xff] %v2865
        %2994 = vst [vmem:[%s565 + $0x80] sm:$0xff] %v2866
        %2995 = vst [vmem:[%s565 + $0x88] sm:$0xff] %v2867
        %2996 = vst [vmem:[%s565 + $0x90] sm:$0xff] %v2868
        %2997 = vst [vmem:[%s565 + $0x98] sm:$0xff] %v2869
        %2998 = vst [vmem:[%s565 + $0xa0] sm:$0xff] %v2870
        %2999 = vst [vmem:[%s565 + $0xa8] sm:$0xff] %v2871
        %3000 = vst [vmem:[%s565 + $0xb0] sm:$0xff] %v2872
        %3001 = vst [vmem:[%s565 + $0xb8] sm:$0xff] %v2873
        %3002 = vst [vmem:[%s565 + $0xc0] sm:$0xff] %v2874
        %3003 = vst [vmem:[%s565 + $0xc8] sm:$0xff] %v2875
        %3004 = vst [vmem:[%s565 + $0xd0] sm:$0xff] %v2876
        %3005 = vst [vmem:[%s565 + $0xd8] sm:$0xff] %v2877
        %3006 = vst [vmem:[%s565 + $0xe0] sm:$0xff] %v2878
        %3007 = vst [vmem:[%s565 + $0xe8] sm:$0xff] %v2879
        %3008 = vst [vmem:[%s565 + $0xf0] sm:$0xff] %v2880
        %3009 = vst [vmem:[%s565 + $0xf8] sm:$0xff] %v2881
        %3010 = vst [vmem:[%s565 + $0x100] sm:$0xff] %v2882
        %3011 = vst [vmem:[%s565 + $0x108] sm:$0xff] %v2883
        %3012 = vst [vmem:[%s565 + $0x110] sm:$0xff] %v2884
        %3013 = vst [vmem:[%s565 + $0x118] sm:$0xff] %v2885
        %3014 = vst [vmem:[%s565 + $0x120] sm:$0xff] %v2886
        %3015 = vst [vmem:[%s565 + $0x128] sm:$0xff] %v2887
        %3016 = vst [vmem:[%s565 + $0x130] sm:$0xff] %v2888
        %3017 = vst [vmem:[%s565 + $0x138] sm:$0xff] %v2889
        %3018 = vst [vmem:[%s565 + $0x140] sm:$0xff] %v2890
        %3019 = vst [vmem:[%s565 + $0x148] sm:$0xff] %v2891
        %3020 = vst [vmem:[%s565 + $0x150] sm:$0xff] %v2892
        %3021 = vst [vmem:[%s565 + $0x158] sm:$0xff] %v2893
        %3022 = vst [vmem:[%s565 + $0x160] sm:$0xff] %v2894
        %3023 = vst [vmem:[%s565 + $0x168] sm:$0xff] %v2895
        %3024 = vst [vmem:[%s565 + $0x170] sm:$0xff] %v2896
        %3025 = vst [vmem:[%s565 + $0x178] sm:$0xff] %v2897
        %3026 = vst [vmem:[%s565 + $0x180] sm:$0xff] %v2898
        %3027 = vst [vmem:[%s565 + $0x188] sm:$0xff] %v2899
        %3028 = vst [vmem:[%s565 + $0x190] sm:$0xff] %v2900
        %3029 = vst [vmem:[%s565 + $0x198] sm:$0xff] %v2901
        %3030 = vst [vmem:[%s565 + $0x1a0] sm:$0xff] %v2902
        %3031 = vst [vmem:[%s565 + $0x1a8] sm:$0xff] %v2903
        %3032 = vst [vmem:[%s565 + $0x1b0] sm:$0xff] %v2904
        %3033 = vst [vmem:[%s565 + $0x1b8] sm:$0xff] %v2905
        %3034 = vst [vmem:[%s565 + $0x1c0] sm:$0xff] %v2906
        %3035 = vst [vmem:[%s565 + $0x1c8] sm:$0xff] %v2907
        %3036 = vst [vmem:[%s565 + $0x1d0] sm:$0xff] %v2908
        %3037 = vst [vmem:[%s565 + $0x1d8] sm:$0xff] %v2909
        %3038 = vst [vmem:[%s565 + $0x1e0] sm:$0xff] %v2910
        %3039 = vst [vmem:[%s565 + $0x1e8] sm:$0xff] %v2911
        %3040 = vst [vmem:[%s565 + $0x1f0] sm:$0xff] %v2912
        %3041 = vst [vmem:[%s565 + $0x1f8] sm:$0xff] %v2913
        %3042 = vst [vmem:[%s565 + $0x200] sm:$0xff] %v2914
        %3043 = vst [vmem:[%s565 + $0x208] sm:$0xff] %v2915
        %3044 = vst [vmem:[%s565 + $0x210] sm:$0xff] %v2916
        %3045 = vst [vmem:[%s565 + $0x218] sm:$0xff] %v2917
        %3046 = vst [vmem:[%s565 + $0x220] sm:$0xff] %v2918
        %3047 = vst [vmem:[%s565 + $0x228] sm:$0xff] %v2919
        %3048 = vst [vmem:[%s565 + $0x230] sm:$0xff] %v2920
        %3049 = vst [vmem:[%s565 + $0x238] sm:$0xff] %v2921
        %3050 = vst [vmem:[%s565 + $0x240] sm:$0xff] %v2922
        %3051 = vst [vmem:[%s565 + $0x248] sm:$0xff] %v2923
        %3052 = vst [vmem:[%s565 + $0x250] sm:$0xff] %v2924
        %3053 = vst [vmem:[%s565 + $0x258] sm:$0xff] %v2925
        %3054 = vst [vmem:[%s565 + $0x260] sm:$0xff] %v2926
        %3055 = vst [vmem:[%s565 + $0x268] sm:$0xff] %v2927
        %3056 = vst [vmem:[%s565 + $0x270] sm:$0xff] %v2928
        %3057 = vst [vmem:[%s565 + $0x278] sm:$0xff] %v2929
        %3058 = vst [vmem:[%s565 + $0x280] sm:$0xff] %v2930
        %3059 = vst [vmem:[%s565 + $0x288] sm:$0xff] %v2931
        %3060 = vst [vmem:[%s565 + $0x290] sm:$0xff] %v2932
        %3061 = vst [vmem:[%s565 + $0x298] sm:$0xff] %v2933
        %3062 = vst [vmem:[%s565 + $0x2a0] sm:$0xff] %v2934
        %3063 = vst [vmem:[%s565 + $0x2a8] sm:$0xff] %v2935
        %3064 = vst [vmem:[%s565 + $0x2b0] sm:$0xff] %v2936
        %3065 = vst [vmem:[%s565 + $0x2b8] sm:$0xff] %v2937
        %3066 = vst [vmem:[%s565 + $0x2c0] sm:$0xff] %v2938
        %3067 = vst [vmem:[%s565 + $0x2c8] sm:$0xff] %v2939
        %3068 = vst [vmem:[%s565 + $0x2d0] sm:$0xff] %v2940
        %3069 = vst [vmem:[%s565 + $0x2d8] sm:$0xff] %v2941
        %3070 = vst [vmem:[%s565 + $0x2e0] sm:$0xff] %v2942
        %3071 = vst [vmem:[%s565 + $0x2e8] sm:$0xff] %v2943
        %3072 = vst [vmem:[%s565 + $0x2f0] sm:$0xff] %v2944
        %3073 = vst [vmem:[%s565 + $0x2f8] sm:$0xff] %v2945
        %3074 = vst [vmem:[%s565 + $0x300] sm:$0xff] %v2946
        %3075 = vst [vmem:[%s565 + $0x308] sm:$0xff] %v2947
        %3076 = vst [vmem:[%s565 + $0x310] sm:$0xff] %v2948
        %3077 = vst [vmem:[%s565 + $0x318] sm:$0xff] %v2949
        %3078 = vst [vmem:[%s565 + $0x320] sm:$0xff] %v2950
        %3079 = vst [vmem:[%s565 + $0x328] sm:$0xff] %v2951
        %3080 = vst [vmem:[%s565 + $0x330] sm:$0xff] %v2952
        %3081 = vst [vmem:[%s565 + $0x338] sm:$0xff] %v2953
        %3082 = vst [vmem:[%s565 + $0x340] sm:$0xff] %v2954
        %3083 = vst [vmem:[%s565 + $0x348] sm:$0xff] %v2955
        %3084 = vst [vmem:[%s565 + $0x350] sm:$0xff] %v2956
        %3085 = vst [vmem:[%s565 + $0x358] sm:$0xff] %v2957
        %3086 = vst [vmem:[%s565 + $0x360] sm:$0xff] %v2958
        %3087 = vst [vmem:[%s565 + $0x368] sm:$0xff] %v2959
        %3088 = vst [vmem:[%s565 + $0x370] sm:$0xff] %v2960
        %3089 = vst [vmem:[%s565 + $0x378] sm:$0xff] %v2961
        %3090 = vst [vmem:[%s565 + $0x380] sm:$0xff] %v2962
        %3091 = vst [vmem:[%s565 + $0x388] sm:$0xff] %v2963
        %3092 = vst [vmem:[%s565 + $0x390] sm:$0xff] %v2964
        %3093 = vst [vmem:[%s565 + $0x398] sm:$0xff] %v2965
        %3094 = vst [vmem:[%s565 + $0x3a0] sm:$0xff] %v2966
        %3095 = vst [vmem:[%s565 + $0x3a8] sm:$0xff] %v2967
        %3096 = vst [vmem:[%s565 + $0x3b0] sm:$0xff] %v2968
        %3097 = vst [vmem:[%s565 + $0x3b8] sm:$0xff] %v2969
        %3098 = vst [vmem:[%s565 + $0x3c0] sm:$0xff] %v2970
        %3099 = vst [vmem:[%s565 + $0x3c8] sm:$0xff] %v2971
        %3100 = vst [vmem:[%s565 + $0x3d0] sm:$0xff] %v2972
        %3101 = vst [vmem:[%s565 + $0x3d8] sm:$0xff] %v2973
        %3102 = vst [vmem:[%s565 + $0x3e0] sm:$0xff] %v2974
        %3103 = vst [vmem:[%s565 + $0x3e8] sm:$0xff] %v2975
        %3104 = vst [vmem:[%s565 + $0x3f0] sm:$0xff] %v2976
        %3105 = vst [vmem:[%s565 + $0x3f8] sm:$0xff] %v2977
        %s3106 = sand.u32 %s293, 1
        %s3107 = scalar_lea.sflag [#allocation4], %s3106
        %s3108 = sand.u32 %s293, 1
        %s3109 = smul.addr %s3108, 1024
        %s3110 = scalar_lea.vmem [#allocation20], %s3109
        // Predicated region
        $region109: #{tpu_custom_call.1} parent=63 // pred_check
          %p3111 = pneg %p303
        $region110: #{tpu_custom_call.1} parent=63 // pred_check_branch
          %3113 = sbr.rel (%p3111) target = $region112
        $region111: #{tpu_custom_call.1} parent=63 // pred_region
          %s3114 = smul.u32 4, %s38
          %s3116 = ssub.s32 16384, 16384
          %3117 = vsyncadd %s3107, %s3116
          %s3118 = smul.addr %s37, 128
          %s3119 = sadd.s32 %s3114, %s3118
          %s3120 = smul.addr %s3119, 128
          %s3121 = scalar_lea.hbm %s11, %s3120
          %s3122 = sshll.u32 %s3110, 4
          %s3123 = int_to_ptr.vmem [resolvable:$true] %s3122
          %3128 = dma.vmem_to_hbm [thread:$0]  %s3123, 16384, %s3121, %s3107, 512, 512, 32
        $region112: #{tpu_custom_call.1} parent=63 // pred_fallthru
          _
      $region64: #{tpu_custom_call.1} parent=5 // pred_fallthru
        _
      %p3129 = scmp.le.s32.totalorder 2, %s28
      // Predicated region
      $region113: #{tpu_custom_call.1} parent=5 // pred_check
        %p3130 = pneg %p3129
      $region114: #{tpu_custom_call.1} parent=5 // pred_check_branch
        %3132 = sbr.rel (%p3130) target = $region116
      $region115: #{tpu_custom_call.1} parent=5 // pred_region
        %s3133 = ssub.s32 %s28, 2
        // Predicated region
        $region117: #{tpu_custom_call.1} parent=115 // pred_check
          %p3134 = pneg %p309
        $region118: #{tpu_custom_call.1} parent=115 // pred_check_branch
          %3136 = sbr.rel (%p3134) target = $region120
        $region119: #{tpu_custom_call.1} parent=115 // pred_region
          %s3137 = sand.u32 %s294, 1
          %s3138 = scalar_lea.sflag [#allocation4], %s3137
          %s3139 = sand.u32 %s294, 1
          %s3140 = smul.addr %s3139, 1024
          %s3141 = scalar_lea.vmem [#allocation20], %s3140
          %3142 = dma.done %s3138, 16384
        $region120: #{tpu_custom_call.1} parent=115 // pred_fallthru
          _
      $region116: #{tpu_custom_call.1} parent=5 // pred_fallthru
        _
    $region6: #{tpu_custom_call.1} parent=1 // loop_footer
      %s32 = sadd.s32 1, %s28
    $region7: #{tpu_custom_call.1} parent=1 // loop_footer_branch
      %27 = sbr.rel target = $region3
    $region8: #{tpu_custom_call.1} parent=1 // loop_exit
      _
    %3143 = vsyncpa [#allocation3], 1
    %s3144 = scalar_lea.sflag [#allocation3], 1
    %3145 = vsyncpa %s3144, 1
    %3146 = vsyncpa [#allocation6], 1
    %3147 = vsyncpa [#allocation9], 1
    %3148 = vsyncpa [#allocation12], 1
    %3149 = vsyncpa [#allocation15], 1
    %3150 = vsyncpa [#allocation18], 1
    %3151 = vsyncpa [#allocation4], 1
    %s3152 = scalar_lea.sflag [#allocation4], 1
    %3153 = vsyncpa %s3152, 1

</llo_original>
